<compile_context>
chip_gen: v5e
topology: v5e:2x2
jax: 0.10.0
libtpu: 0.0.40
codegen_flags: <defaults>
</compile_context>

<pallas_src>
import functools

import jax
import jax.numpy as jnp
from jax.experimental import pallas as pl
from jax.experimental.pallas import tpu as pltpu

NEG_SLOPE = 0.01   # nn.LeakyReLU default negative_slope
BN_EPS = 1e-5      # nn.BatchNorm2d default eps


# ----------------------------- Pallas kernels --------------------------------

def _conv_tile(xf_ref, w_ref, p_ref, *, th, W, Cin, Cout):
    """3x3/s1/p1 conv for output rows [i*th, i*th+th) of one image.

    xf_ref : (1, S, Cin)   row-padded, column-UNpadded, spatially flattened
                           image; S = (H+2)*W + 2 (one zero element at each
                           end keeps every tap slice in bounds).
    w_ref  : (Cout, 9*Cin) tap-major folded weights (tap = kh*3 + kw).
    p_ref  : (L, 9*Cin)    VMEM scratch for the im2col patch, L = th*W.

    Returns the conv tile as (Cout, L) float32 (lane-dense, NCHW order).
    """
    i = pl.program_id(1)
    L = th * W
    h0 = i * th

    # Column-edge masks: with no column padding, the kw=0 / kw=2 taps wrap into
    # the neighbouring row at w==0 / w==W-1 and must be zeroed.
    j = jax.lax.broadcasted_iota(jnp.int32, (L, 1), 0)
    wpos = j % W
    not_left = wpos != 0
    not_right = wpos != (W - 1)

    # Assemble the (L, 9*Cin) im2col patch once per tile: one contiguous
    # dynamic-sublane slice per tap (no windowed reshapes / relayouts).
    for kh in range(3):
        for kw in range(3):
            tap = kh * 3 + kw
            s = (h0 + kh) * W + kw
            sl = xf_ref[0, pl.ds(s, L), :]                     # (L, Cin)
            if kw == 0:
                sl = jnp.where(not_left, sl, 0)
            elif kw == 2:
                sl = jnp.where(not_right, sl, 0)
            p_ref[:, tap * Cin:(tap + 1) * Cin] = sl.astype(p_ref.dtype)

    # Single MXU contraction with K = 9*Cin (both operands contract their
    # minor dim, flash-attention style); output (Cout, L) is lane-dense.
    return jax.lax.dot_general(
        w_ref[...], p_ref[...],
        dimension_numbers=(((1,), (1,)), ((), ())),
        preferred_element_type=jnp.float32)


def _stats_kernel(xf_ref, w_ref, tsum_ref, tm2_ref, p_ref, *, th, W, Cin, Cout):
    """Pass 1: per-(image, tile) per-channel sum and centered sum of squares."""
    L = th * W
    y = _conv_tile(xf_ref, w_ref, p_ref, th=th, W=W, Cin=Cin, Cout=Cout)
    s = jnp.sum(y, axis=1, keepdims=True)                      # (Cout, 1)
    mu = s * (1.0 / L)
    d = y - mu
    m2 = jnp.sum(d * d, axis=1, keepdims=True)                 # (Cout, 1)
    tsum_ref[...] = s.reshape(1, 1, Cout, 1)
    tm2_ref[...] = m2.reshape(1, 1, Cout, 1)


def _conv_bn_lrelu_kernel(xf_ref, ws_ref, shift_ref, o_ref, p_ref,
                          *, th, W, Cin, Cout):
    """Pass 2: conv with BN-scale-folded weights, + shift, + LeakyReLU."""
    y = _conv_tile(xf_ref, ws_ref, p_ref, th=th, W=W, Cin=Cin, Cout=Cout)
    y = y + shift_ref[...]                                      # (Cout,1) broadcasts on lanes
    o_ref[0] = jnp.where(y >= 0, y, NEG_SLOPE * y).astype(o_ref.dtype)


# ------------------------------- helpers --------------------------------------

def _round_up(x, m):
    return (x + m - 1) // m * m


def _pick_tile(H, W, Cin, Cout, mxu_bytes, budget=4 << 20):
    """Largest divisor-of-H row tile whose per-tile working set (f32 accumulator
    + im2col patch) fits the budget and whose flat length is lane-aligned."""
    per_row = W * (4 * Cout + mxu_bytes * (9 * Cin + Cin)) + 1
    max_th = max(1, min(budget // per_row, 8192 // max(W, 1)))
    cand = [t for t in range(1, H + 1) if H % t == 0 and (t * W) % 128 == 0]
    best = None
    for t in cand:
        if t <= max_th:
            best = t
    if best is None:
        best = cand[0] if cand else H      # full-extent blocks are always legal
    return best, H // best


def _compiler_params(vmem_needed):
    try:
        cap = pltpu.get_tpu_info().vmem_capacity_bytes   # 128 MiB v5e/v6e, 64 MiB v7x
    except Exception:
        cap = 64 * 1024 * 1024
    # cap//2 leaves compiler scratch headroom (matters most on v7x's 64 MiB).
    limit = int(min(cap // 2, max(vmem_needed, 32 * 1024 * 1024)))
    return pltpu.CompilerParams(
        dimension_semantics=("parallel", "parallel"),    # megacore can shard both
        vmem_limit_bytes=limit)


# -------------------------------- wrapper --------------------------------------

@functools.partial(jax.jit, static_argnames=("mxu_dtype",))
def single_conv_relu_batch_fwd(x_nchw, w_oihw, bias, gamma, beta,
                               *, mxu_dtype=jnp.float32):
    """Forward pass equivalent to the PyTorch module (training-mode BN).

    mxu_dtype=jnp.bfloat16 feeds the MXU at its native rate and halves the
    resident-image VMEM / DMA bytes; stats, BN fold and output stay float32.
    """
    del bias  # conv bias followed by training-mode BatchNorm cancels exactly
              # (NOTE: not valid for eval-mode / running-stats BN).
    N, Cin, H, W = x_nchw.shape
    Cout = w_oihw.shape[0]
    M = N * H * W

    # Layout: channel-minor, rows zero-padded, columns NOT padded, spatial axis
    # flattened onto sublanes, one zero element at each end of the flat axis.
    #   xf[n, 1 + hp*W + w, c] = x_padded[n, c, hp, w]
    # (XLA fuses the transpose+pads into a single copy of the input.)
    xr = jnp.pad(jnp.transpose(x_nchw, (0, 2, 3, 1)).astype(mxu_dtype),
                 ((0, 0), (1, 1), (0, 0), (0, 0)))              # (N, H+2, W, Cin)
    xf = jnp.pad(xr.reshape(N, (H + 2) * W, Cin), ((0, 0), (1, 1), (0, 0)))
    S = (H + 2) * W + 2

    # Tap-major folded weights: Wm[co, (kh*3+kw)*Cin + ci] = w[co, ci, kh, kw].
    wm = jnp.transpose(w_oihw, (0, 2, 3, 1)).reshape(Cout, 9 * Cin).astype(jnp.float32)

    mxu_bytes = jnp.dtype(mxu_dtype).itemsize
    th, nt = _pick_tile(H, W, Cin, Cout, mxu_bytes)
    L = th * W
    grid = (N, nt)

    # Rough layout-padded VMEM working set, for the scoped-VMEM limit.
    in_blk = _round_up(S, 8) * _round_up(Cin, 128) * mxu_bytes
    w_blk = _round_up(Cout, 8) * _round_up(9 * Cin, 128) * 4
    out_blk = _round_up(Cout, 8) * _round_up(L, 128) * 4
    p_blk = _round_up(L, 8) * _round_up(9 * Cin, 128) * mxu_bytes
    vmem_needed = 2 * in_blk + 2 * w_blk + 2 * out_blk + p_blk + (2 << 20)
    cparams = _compiler_params(vmem_needed)

    # TODO(synk): for very large images with tiny Cin the lane-padded resident
    # image block can exceed v7x's 64 MiB VMEM; add a halo'd H-tiling of xf
    # (and single-buffer it, pipeline_mode=pl.Buffered(1)) for that regime.
    xf_spec = pl.BlockSpec((1, S, Cin), lambda n, i: (n, 0, 0))
    w_spec = pl.BlockSpec((Cout, 9 * Cin), lambda n, i: (0, 0))
    scratch = [pltpu.VMEM((L, 9 * Cin), mxu_dtype)]

    # ---- pass 1: fused-im2col conv + per-tile channel statistics ----
    kern1 = functools.partial(_stats_kernel, th=th, W=W, Cin=Cin, Cout=Cout)
    tsum, tm2 = pl.pallas_call(
        kern1,
        out_shape=(jax.ShapeDtypeStruct((N, nt, Cout, 1), jnp.float32),
                   jax.ShapeDtypeStruct((N, nt, Cout, 1), jnp.float32)),
        grid=grid,
        in_specs=[xf_spec, w_spec],
        out_specs=(pl.BlockSpec((1, 1, Cout, 1), lambda n, i: (n, i, 0, 0)),
                   pl.BlockSpec((1, 1, Cout, 1), lambda n, i: (n, i, 0, 0))),
        scratch_shapes=scratch,
        compiler_params=cparams,
    )(xf, wm.astype(mxu_dtype))

    # ---- tiny per-channel BN fold (Chan parallel-variance combination) ----
    mean = jnp.sum(tsum, axis=(0, 1, 3)) / M                               # (Cout,)
    tmean = tsum / L                                                       # (N, nt, Cout, 1)
    m2 = (jnp.sum(tm2, axis=(0, 1, 3))
          + L * jnp.sum((tmean - mean.reshape(1, 1, Cout, 1)) ** 2, axis=(0, 1, 3)))
    var = jnp.maximum(m2 / M, 0.0)                                         # biased (training BN)
    inv_std = jax.lax.rsqrt(var + BN_EPS)
    scale_v = gamma.astype(jnp.float32) * inv_std
    shift_v = beta.astype(jnp.float32) - mean * scale_v

    # BN scale folded into the pass-2 weights; only the shift stays in-kernel.
    wm_scaled = (scale_v[:, None] * wm).astype(mxu_dtype)
    shift = shift_v.reshape(Cout, 1)

    # ---- pass 2: recompute conv, fused shift + LeakyReLU, lane-dense NCHW out ----
    # TODO(synk): for wide-channel layers (Cin >= 128) a variant that writes the
    # bf16 conv output in pass 1 and makes pass 2 a pure elementwise sweep can
    # beat this recompute; pick per shape class.
    kern2 = functools.partial(_conv_bn_lrelu_kernel, th=th, W=W, Cin=Cin, Cout=Cout)
    y = pl.pallas_call(
        kern2,
        out_shape=jax.ShapeDtypeStruct((N, Cout, H * W), jnp.float32),
        grid=grid,
        in_specs=[xf_spec, w_spec,
                  pl.BlockSpec((Cout, 1), lambda n, i: (0, 0))],
        out_specs=pl.BlockSpec((1, Cout, L), lambda n, i: (n, 0, i)),
        scratch_shapes=scratch,
        compiler_params=cparams,
    )(xf, wm_scaled, shift)

    return y.reshape(N, Cout, H, W)                     # metadata-only reshape


# --------------------------- plain-JAX reference -------------------------------

def _reference(x_nchw, w_oihw, bias, gamma, beta):
    y = jax.lax.conv_general_dilated(
        x_nchw, w_oihw, window_strides=(1, 1), padding=((1, 1), (1, 1)),
        dimension_numbers=("NCHW", "OIHW", "NCHW"))
    y = y + bias.reshape(1, -1, 1, 1)
    mean = jnp.mean(y, axis=(0, 2, 3), keepdims=True)
    var = jnp.var(y, axis=(0, 2, 3), keepdims=True)
    y = (y - mean) / jnp.sqrt(var + BN_EPS)
    y = y * gamma.reshape(1, -1, 1, 1) + beta.reshape(1, -1, 1, 1)
    return jnp.where(y >= 0, y, NEG_SLOPE * y)


if __name__ == "__main__":
    key = jax.random.PRNGKey(0)
    k1, k2, k3, k4, k5 = jax.random.split(key, 5)

    N, Cin, Cout, H, W = 2, 4, 8, 16, 16
    x = jax.random.normal(k1, (N, Cin, H, W), jnp.float32)

    # deterministic parameter init (Conv2d-like uniform bounds)
    fan_in = Cin * 3 * 3
    bound = 1.0 / (fan_in ** 0.5)
    w = jax.random.uniform(k2, (Cout, Cin, 3, 3), jnp.float32, -bound, bound)
    b = jax.random.uniform(k3, (Cout,), jnp.float32, -bound, bound)
    gamma = jax.random.uniform(k4, (Cout,), jnp.float32, 0.5, 1.5)
    beta = jax.random.uniform(k5, (Cout,), jnp.float32, -0.1, 0.1)

    ref = _reference(x, w, b, gamma, beta)

    # f32 MXU path (bit-accurate check)
    out = jax.block_until_ready(single_conv_relu_batch_fwd(x, w, b, gamma, beta))
    assert out.shape == (N, Cout, H, W)
    err = float(jnp.max(jnp.abs(out - ref)))
    assert jnp.allclose(out, ref, atol=1e-4, rtol=1e-4), f"f32 max abs err {err}"

    # bf16 MXU path (perf configuration; looser tolerance)
    out_bf16 = jax.block_until_ready(
        single_conv_relu_batch_fwd(x, w, b, gamma, beta, mxu_dtype=jnp.bfloat16))
    err_bf16 = float(jnp.max(jnp.abs(out_bf16 - ref)))
    assert err_bf16 < 0.2, f"bf16 max abs err {err_bf16}"

    print("KERNEL_OK")
</pallas_src>

<mosaic_0001>
module attributes {stable_mosaic.version = 11 : i64} {
  func.func @_stats_kernel(%arg0: i32, %arg1: i32, %arg2: memref<1x290x4xf32, #tpu.memory_space<vmem>>, %arg3: memref<8x36xf32, #tpu.memory_space<vmem>>, %arg4: memref<1x1x8x1xf32, #tpu.memory_space<vmem>>, %arg5: memref<1x1x8x1xf32, #tpu.memory_space<vmem>>, %arg6: memref<256x36xf32, #tpu.memory_space<vmem>>) attributes {dimension_semantics = [#tpu.dimension_semantics<parallel>, #tpu.dimension_semantics<parallel>], iteration_bounds = array<i64: 2, 1>, scalar_prefetch = 0 : i64, scratch_operands = 1 : i64, tpu.core_type = #tpu.core_type<tc>, window_params = [{transform_indices = @transform_0, window_bounds = array<i64: 1, 290, 4>}, {pipeline_mode = #tpu.pipeline_mode<synchronous>, transform_indices = @transform_1, window_bounds = array<i64: 8, 36>}, {transform_indices = @transform_2, window_bounds = array<i64: 1, 1, 8, 1>}, {transform_indices = @transform_3, window_bounds = array<i64: 1, 1, 8, 1>}]} {
    %c16_i32 = arith.constant 16 : i32
    %0 = arith.muli %arg1, %c16_i32 : i32
    %1 = tpu.iota {dimensions = array<i32: 0>} : vector<256x1xi32>
    %c16_i32_0 = arith.constant 16 : i32
    %c0_i32 = arith.constant 0 : i32
    %2 = arith.cmpi eq, %c16_i32_0, %c0_i32 : i32
    %c1_i32 = arith.constant 1 : i32
    %3 = arith.select %2, %c1_i32, %c16_i32_0 : i32
    %4 = vector.broadcast %3 : i32 to vector<256x1xi32>
    %5 = arith.remsi %1, %4 : vector<256x1xi32>
    %c0_i32_1 = arith.constant 0 : i32
    %6 = vector.broadcast %c0_i32_1 : i32 to vector<256x1xi32>
    %7 = arith.cmpi ne, %5, %6 : vector<256x1xi32>
    %c0_i32_2 = arith.constant 0 : i32
    %8 = vector.broadcast %c0_i32_2 : i32 to vector<256x1xi32>
    %9 = arith.cmpi slt, %5, %8 : vector<256x1xi32>
    %c0_i32_3 = arith.constant 0 : i32
    %10 = arith.cmpi slt, %3, %c0_i32_3 : i32
    %11 = vector.broadcast %10 : i1 to vector<256x1xi1>
    %12 = vector.broadcast %11 : vector<256x1xi1> to vector<256x1xi1>
    %13 = arith.xori %9, %12 : vector<256x1xi1>
    %14 = arith.andi %13, %7 : vector<256x1xi1>
    %15 = vector.broadcast %3 : i32 to vector<256x1xi32>
    %16 = arith.addi %5, %15 : vector<256x1xi32>
    %17 = arith.select %14, %16, %5 : vector<256x1xi1>, vector<256x1xi32>
    %c0_i32_4 = arith.constant 0 : i32
    %18 = vector.broadcast %c0_i32_4 : i32 to vector<256x1xi32>
    %19 = arith.cmpi ne, %17, %18 : vector<256x1xi32>
    %c15_i32 = arith.constant 15 : i32
    %20 = vector.broadcast %c15_i32 : i32 to vector<256x1xi32>
    %21 = arith.cmpi ne, %17, %20 : vector<256x1xi32>
    %c0_i32_5 = arith.constant 0 : i32
    %22 = arith.addi %0, %c0_i32_5 : i32
    %c16_i32_6 = arith.constant 16 : i32
    %23 = arith.muli %22, %c16_i32_6 : i32
    %c0_i32_7 = arith.constant 0 : i32
    %24 = arith.addi %23, %c0_i32_7 : i32
    %c0 = arith.constant 0 : index
    %25 = arith.index_cast %24 : i32 to index
    %c0_8 = arith.constant 0 : index
    %26 = vector.load %arg2[%c0, %25, %c0_8] : memref<1x290x4xf32, #tpu.memory_space<vmem>>, vector<1x256x4xf32>
    %27 = vector.shape_cast %26 : vector<1x256x4xf32> to vector<256x4xf32>
    %c0_i32_9 = arith.constant 0 : i32
    %28 = arith.sitofp %c0_i32_9 : i32 to f32
    %29 = vector.shape_cast %19 : vector<256x1xi1> to vector<256x1xi1>
    %30 = vector.broadcast %29 : vector<256x1xi1> to vector<256x4xi1>
    %31 = vector.broadcast %28 : f32 to vector<256x4xf32>
    %32 = arith.select %30, %27, %31 : vector<256x4xi1>, vector<256x4xf32>
    %c0_10 = arith.constant 0 : index
    %c0_11 = arith.constant 0 : index
    %33 = vector.load %arg6[%c0_10, %c0_11] : memref<256x36xf32, #tpu.memory_space<vmem>>, vector<256x4xf32>
    tpu.vector_store %arg6[%c0_10, %c0_11], %32 {strides = array<i32>} : memref<256x36xf32, #tpu.memory_space<vmem>>, vector<256x4xf32>,
    %c0_i32_12 = arith.constant 0 : i32
    %34 = arith.addi %0, %c0_i32_12 : i32
    %c16_i32_13 = arith.constant 16 : i32
    %35 = arith.muli %34, %c16_i32_13 : i32
    %c1_i32_14 = arith.constant 1 : i32
    %36 = arith.addi %35, %c1_i32_14 : i32
    %c0_15 = arith.constant 0 : index
    %37 = arith.index_cast %36 : i32 to index
    %c0_16 = arith.constant 0 : index
    %38 = vector.load %arg2[%c0_15, %37, %c0_16] : memref<1x290x4xf32, #tpu.memory_space<vmem>>, vector<1x256x4xf32>
    %39 = vector.shape_cast %38 : vector<1x256x4xf32> to vector<256x4xf32>
    %c0_17 = arith.constant 0 : index
    %c4 = arith.constant 4 : index
    %40 = vector.load %arg6[%c0_17, %c4] : memref<256x36xf32, #tpu.memory_space<vmem>>, vector<256x4xf32>
    tpu.vector_store %arg6[%c0_17, %c4], %39 {strides = array<i32>} : memref<256x36xf32, #tpu.memory_space<vmem>>, vector<256x4xf32>,
    %c0_i32_18 = arith.constant 0 : i32
    %41 = arith.addi %0, %c0_i32_18 : i32
    %c16_i32_19 = arith.constant 16 : i32
    %42 = arith.muli %41, %c16_i32_19 : i32
    %c2_i32 = arith.constant 2 : i32
    %43 = arith.addi %42, %c2_i32 : i32
    %c0_20 = arith.constant 0 : index
    %44 = arith.index_cast %43 : i32 to index
    %c0_21 = arith.constant 0 : index
    %45 = vector.load %arg2[%c0_20, %44, %c0_21] : memref<1x290x4xf32, #tpu.memory_space<vmem>>, vector<1x256x4xf32>
    %46 = vector.shape_cast %45 : vector<1x256x4xf32> to vector<256x4xf32>
    %c0_i32_22 = arith.constant 0 : i32
    %47 = arith.sitofp %c0_i32_22 : i32 to f32
    %48 = vector.shape_cast %21 : vector<256x1xi1> to vector<256x1xi1>
    %49 = vector.broadcast %48 : vector<256x1xi1> to vector<256x4xi1>
    %50 = vector.broadcast %47 : f32 to vector<256x4xf32>
    %51 = arith.select %49, %46, %50 : vector<256x4xi1>, vector<256x4xf32>
    %c0_23 = arith.constant 0 : index
    %c8 = arith.constant 8 : index
    %52 = vector.load %arg6[%c0_23, %c8] : memref<256x36xf32, #tpu.memory_space<vmem>>, vector<256x4xf32>
    tpu.vector_store %arg6[%c0_23, %c8], %51 {strides = array<i32>} : memref<256x36xf32, #tpu.memory_space<vmem>>, vector<256x4xf32>,
    %c1_i32_24 = arith.constant 1 : i32
    %53 = arith.addi %0, %c1_i32_24 : i32
    %c16_i32_25 = arith.constant 16 : i32
    %54 = arith.muli %53, %c16_i32_25 : i32
    %c0_i32_26 = arith.constant 0 : i32
    %55 = arith.addi %54, %c0_i32_26 : i32
    %c0_27 = arith.constant 0 : index
    %56 = arith.index_cast %55 : i32 to index
    %c0_28 = arith.constant 0 : index
    %57 = vector.load %arg2[%c0_27, %56, %c0_28] : memref<1x290x4xf32, #tpu.memory_space<vmem>>, vector<1x256x4xf32>
    %58 = vector.shape_cast %57 : vector<1x256x4xf32> to vector<256x4xf32>
    %c0_i32_29 = arith.constant 0 : i32
    %59 = arith.sitofp %c0_i32_29 : i32 to f32
    %60 = vector.shape_cast %19 : vector<256x1xi1> to vector<256x1xi1>
    %61 = vector.broadcast %60 : vector<256x1xi1> to vector<256x4xi1>
    %62 = vector.broadcast %59 : f32 to vector<256x4xf32>
    %63 = arith.select %61, %58, %62 : vector<256x4xi1>, vector<256x4xf32>
    %c0_30 = arith.constant 0 : index
    %c12 = arith.constant 12 : index
    %64 = vector.load %arg6[%c0_30, %c12] : memref<256x36xf32, #tpu.memory_space<vmem>>, vector<256x4xf32>
    tpu.vector_store %arg6[%c0_30, %c12], %63 {strides = array<i32>} : memref<256x36xf32, #tpu.memory_space<vmem>>, vector<256x4xf32>,
    %c1_i32_31 = arith.constant 1 : i32
    %65 = arith.addi %0, %c1_i32_31 : i32
    %c16_i32_32 = arith.constant 16 : i32
    %66 = arith.muli %65, %c16_i32_32 : i32
    %c1_i32_33 = arith.constant 1 : i32
    %67 = arith.addi %66, %c1_i32_33 : i32
    %c0_34 = arith.constant 0 : index
    %68 = arith.index_cast %67 : i32 to index
    %c0_35 = arith.constant 0 : index
    %69 = vector.load %arg2[%c0_34, %68, %c0_35] : memref<1x290x4xf32, #tpu.memory_space<vmem>>, vector<1x256x4xf32>
    %70 = vector.shape_cast %69 : vector<1x256x4xf32> to vector<256x4xf32>
    %c0_36 = arith.constant 0 : index
    %c16 = arith.constant 16 : index
    %71 = vector.load %arg6[%c0_36, %c16] : memref<256x36xf32, #tpu.memory_space<vmem>>, vector<256x4xf32>
    tpu.vector_store %arg6[%c0_36, %c16], %70 {strides = array<i32>} : memref<256x36xf32, #tpu.memory_space<vmem>>, vector<256x4xf32>,
    %c1_i32_37 = arith.constant 1 : i32
    %72 = arith.addi %0, %c1_i32_37 : i32
    %c16_i32_38 = arith.constant 16 : i32
    %73 = arith.muli %72, %c16_i32_38 : i32
    %c2_i32_39 = arith.constant 2 : i32
    %74 = arith.addi %73, %c2_i32_39 : i32
    %c0_40 = arith.constant 0 : index
    %75 = arith.index_cast %74 : i32 to index
    %c0_41 = arith.constant 0 : index
    %76 = vector.load %arg2[%c0_40, %75, %c0_41] : memref<1x290x4xf32, #tpu.memory_space<vmem>>, vector<1x256x4xf32>
    %77 = vector.shape_cast %76 : vector<1x256x4xf32> to vector<256x4xf32>
    %c0_i32_42 = arith.constant 0 : i32
    %78 = arith.sitofp %c0_i32_42 : i32 to f32
    %79 = vector.shape_cast %21 : vector<256x1xi1> to vector<256x1xi1>
    %80 = vector.broadcast %79 : vector<256x1xi1> to vector<256x4xi1>
    %81 = vector.broadcast %78 : f32 to vector<256x4xf32>
    %82 = arith.select %80, %77, %81 : vector<256x4xi1>, vector<256x4xf32>
    %c0_43 = arith.constant 0 : index
    %c20 = arith.constant 20 : index
    %83 = vector.load %arg6[%c0_43, %c20] : memref<256x36xf32, #tpu.memory_space<vmem>>, vector<256x4xf32>
    tpu.vector_store %arg6[%c0_43, %c20], %82 {strides = array<i32>} : memref<256x36xf32, #tpu.memory_space<vmem>>, vector<256x4xf32>,
    %c2_i32_44 = arith.constant 2 : i32
    %84 = arith.addi %0, %c2_i32_44 : i32
    %c16_i32_45 = arith.constant 16 : i32
    %85 = arith.muli %84, %c16_i32_45 : i32
    %c0_i32_46 = arith.constant 0 : i32
    %86 = arith.addi %85, %c0_i32_46 : i32
    %c0_47 = arith.constant 0 : index
    %87 = arith.index_cast %86 : i32 to index
    %c0_48 = arith.constant 0 : index
    %88 = vector.load %arg2[%c0_47, %87, %c0_48] : memref<1x290x4xf32, #tpu.memory_space<vmem>>, vector<1x256x4xf32>
    %89 = vector.shape_cast %88 : vector<1x256x4xf32> to vector<256x4xf32>
    %c0_i32_49 = arith.constant 0 : i32
    %90 = arith.sitofp %c0_i32_49 : i32 to f32
    %91 = vector.shape_cast %19 : vector<256x1xi1> to vector<256x1xi1>
    %92 = vector.broadcast %91 : vector<256x1xi1> to vector<256x4xi1>
    %93 = vector.broadcast %90 : f32 to vector<256x4xf32>
    %94 = arith.select %92, %89, %93 : vector<256x4xi1>, vector<256x4xf32>
    %c0_50 = arith.constant 0 : index
    %c24 = arith.constant 24 : index
    %95 = vector.load %arg6[%c0_50, %c24] : memref<256x36xf32, #tpu.memory_space<vmem>>, vector<256x4xf32>
    tpu.vector_store %arg6[%c0_50, %c24], %94 {strides = array<i32>} : memref<256x36xf32, #tpu.memory_space<vmem>>, vector<256x4xf32>,
    %c2_i32_51 = arith.constant 2 : i32
    %96 = arith.addi %0, %c2_i32_51 : i32
    %c16_i32_52 = arith.constant 16 : i32
    %97 = arith.muli %96, %c16_i32_52 : i32
    %c1_i32_53 = arith.constant 1 : i32
    %98 = arith.addi %97, %c1_i32_53 : i32
    %c0_54 = arith.constant 0 : index
    %99 = arith.index_cast %98 : i32 to index
    %c0_55 = arith.constant 0 : index
    %100 = vector.load %arg2[%c0_54, %99, %c0_55] : memref<1x290x4xf32, #tpu.memory_space<vmem>>, vector<1x256x4xf32>
    %101 = vector.shape_cast %100 : vector<1x256x4xf32> to vector<256x4xf32>
    %c0_56 = arith.constant 0 : index
    %c28 = arith.constant 28 : index
    %102 = vector.load %arg6[%c0_56, %c28] : memref<256x36xf32, #tpu.memory_space<vmem>>, vector<256x4xf32>
    tpu.vector_store %arg6[%c0_56, %c28], %101 {strides = array<i32>} : memref<256x36xf32, #tpu.memory_space<vmem>>, vector<256x4xf32>,
    %c2_i32_57 = arith.constant 2 : i32
    %103 = arith.addi %0, %c2_i32_57 : i32
    %c16_i32_58 = arith.constant 16 : i32
    %104 = arith.muli %103, %c16_i32_58 : i32
    %c2_i32_59 = arith.constant 2 : i32
    %105 = arith.addi %104, %c2_i32_59 : i32
    %c0_60 = arith.constant 0 : index
    %106 = arith.index_cast %105 : i32 to index
    %c0_61 = arith.constant 0 : index
    %107 = vector.load %arg2[%c0_60, %106, %c0_61] : memref<1x290x4xf32, #tpu.memory_space<vmem>>, vector<1x256x4xf32>
    %108 = vector.shape_cast %107 : vector<1x256x4xf32> to vector<256x4xf32>
    %c0_i32_62 = arith.constant 0 : i32
    %109 = arith.sitofp %c0_i32_62 : i32 to f32
    %110 = vector.shape_cast %21 : vector<256x1xi1> to vector<256x1xi1>
    %111 = vector.broadcast %110 : vector<256x1xi1> to vector<256x4xi1>
    %112 = vector.broadcast %109 : f32 to vector<256x4xf32>
    %113 = arith.select %111, %108, %112 : vector<256x4xi1>, vector<256x4xf32>
    %c0_63 = arith.constant 0 : index
    %c32 = arith.constant 32 : index
    %114 = vector.load %arg6[%c0_63, %c32] : memref<256x36xf32, #tpu.memory_space<vmem>>, vector<256x4xf32>
    tpu.vector_store %arg6[%c0_63, %c32], %113 {strides = array<i32>} : memref<256x36xf32, #tpu.memory_space<vmem>>, vector<256x4xf32>,
    %c0_64 = arith.constant 0 : index
    %c0_65 = arith.constant 0 : index
    %115 = vector.load %arg3[%c0_64, %c0_65] : memref<8x36xf32, #tpu.memory_space<vmem>>, vector<8x36xf32>
    %c0_66 = arith.constant 0 : index
    %c0_67 = arith.constant 0 : index
    %116 = vector.load %arg6[%c0_66, %c0_67] : memref<256x36xf32, #tpu.memory_space<vmem>>, vector<256x36xf32>
    %cst = arith.constant dense<0.000000e+00> : vector<8x256xf32>
    %117 = tpu.matmul %115, %116, %cst {dimension_numbers = #tpu.dot_dimension_numbers<[1], [1], [0], [0], [0, 0, 1, 0], [], []>} : vector<8x36xf32>, vector<256x36xf32>, vector<8x256xf32> -> vector<8x256xf32>
    %cst_68 = arith.constant dense<0.000000e+00> : vector<8xf32>
    %118 = vector.multi_reduction <add>, %117, %cst_68 [1] : vector<8x256xf32> to vector<8xf32>
    %119 = vector.shape_cast %118 : vector<8xf32> to vector<8x1xf32>
    %cst_69 = arith.constant 3.906250e-03 : f32
    %120 = vector.broadcast %cst_69 : f32 to vector<8x1xf32>
    %121 = arith.mulf %119, %120 : vector<8x1xf32>
    %122 = vector.broadcast %121 : vector<8x1xf32> to vector<8x256xf32>
    %123 = arith.subf %117, %122 : vector<8x256xf32>
    %124 = arith.mulf %123, %123 : vector<8x256xf32>
    %cst_70 = arith.constant dense<0.000000e+00> : vector<8xf32>
    %125 = vector.multi_reduction <add>, %124, %cst_70 [1] : vector<8x256xf32> to vector<8xf32>
    %126 = vector.shape_cast %125 : vector<8xf32> to vector<8x1xf32>
    %127 = vector.shape_cast %119 : vector<8x1xf32> to vector<1x1x8x1xf32>
    %c0_71 = arith.constant 0 : index
    %c0_72 = arith.constant 0 : index
    %c0_73 = arith.constant 0 : index
    %c0_74 = arith.constant 0 : index
    %128 = vector.load %arg4[%c0_71, %c0_72, %c0_73, %c0_74] : memref<1x1x8x1xf32, #tpu.memory_space<vmem>>, vector<1x1x8x1xf32>
    tpu.vector_store %arg4[%c0_71, %c0_72, %c0_73, %c0_74], %127 {strides = array<i32>} : memref<1x1x8x1xf32, #tpu.memory_space<vmem>>, vector<1x1x8x1xf32>,
    %129 = vector.shape_cast %126 : vector<8x1xf32> to vector<1x1x8x1xf32>
    %c0_75 = arith.constant 0 : index
    %c0_76 = arith.constant 0 : index
    %c0_77 = arith.constant 0 : index
    %c0_78 = arith.constant 0 : index
    %130 = vector.load %arg5[%c0_75, %c0_76, %c0_77, %c0_78] : memref<1x1x8x1xf32, #tpu.memory_space<vmem>>, vector<1x1x8x1xf32>
    tpu.vector_store %arg5[%c0_75, %c0_76, %c0_77, %c0_78], %129 {strides = array<i32>} : memref<1x1x8x1xf32, #tpu.memory_space<vmem>>, vector<1x1x8x1xf32>,
    return
  }
  func.func @transform_0(%arg0: i32, %arg1: i32) -> (i32, i32, i32) {
    %c0_i32 = arith.constant 0 : i32
    %c0_i32_0 = arith.constant 0 : i32
    %c0_i32_1 = arith.constant 0 : i32
    return %arg0, %c0_i32, %c0_i32_0 : i32, i32, i32
  }
  func.func @transform_1(%arg0: i32, %arg1: i32) -> (i32, i32) {
    %c0_i32 = arith.constant 0 : i32
    %c0_i32_0 = arith.constant 0 : i32
    %c0_i32_1 = arith.constant 0 : i32
    return %c0_i32, %c0_i32_0 : i32, i32
  }
  func.func @transform_2(%arg0: i32, %arg1: i32) -> (i32, i32, i32, i32) {
    %c0_i32 = arith.constant 0 : i32
    %c0_i32_0 = arith.constant 0 : i32
    %c0_i32_1 = arith.constant 0 : i32
    return %arg0, %arg1, %c0_i32, %c0_i32_0 : i32, i32, i32, i32
  }
  func.func @transform_3(%arg0: i32, %arg1: i32) -> (i32, i32, i32, i32) {
    %c0_i32 = arith.constant 0 : i32
    %c0_i32_0 = arith.constant 0 : i32
    %c0_i32_1 = arith.constant 0 : i32
    return %arg0, %arg1, %c0_i32, %c0_i32_0 : i32, i32, i32, i32
  }
}

module attributes {stable_mosaic.version = 11 : i64} {
  func.func @_conv_bn_lrelu_kernel(%arg0: i32, %arg1: i32, %arg2: memref<1x290x4xf32, #tpu.memory_space<vmem>>, %arg3: memref<8x36xf32, #tpu.memory_space<vmem>>, %arg4: memref<8x1xf32, #tpu.memory_space<vmem>>, %arg5: memref<1x8x256xf32, #tpu.memory_space<vmem>>, %arg6: memref<256x36xf32, #tpu.memory_space<vmem>>) attributes {dimension_semantics = [#tpu.dimension_semantics<parallel>, #tpu.dimension_semantics<parallel>], iteration_bounds = array<i64: 2, 1>, scalar_prefetch = 0 : i64, scratch_operands = 1 : i64, tpu.core_type = #tpu.core_type<tc>, window_params = [{transform_indices = @transform_0, window_bounds = array<i64: 1, 290, 4>}, {pipeline_mode = #tpu.pipeline_mode<synchronous>, transform_indices = @transform_1, window_bounds = array<i64: 8, 36>}, {pipeline_mode = #tpu.pipeline_mode<synchronous>, transform_indices = @transform_2, window_bounds = array<i64: 8, 1>}, {transform_indices = @transform_3, window_bounds = array<i64: 1, 8, 256>}]} {
    %c16_i32 = arith.constant 16 : i32
    %0 = arith.muli %arg1, %c16_i32 : i32
    %1 = tpu.iota {dimensions = array<i32: 0>} : vector<256x1xi32>
    %c16_i32_0 = arith.constant 16 : i32
    %c0_i32 = arith.constant 0 : i32
    %2 = arith.cmpi eq, %c16_i32_0, %c0_i32 : i32
    %c1_i32 = arith.constant 1 : i32
    %3 = arith.select %2, %c1_i32, %c16_i32_0 : i32
    %4 = vector.broadcast %3 : i32 to vector<256x1xi32>
    %5 = arith.remsi %1, %4 : vector<256x1xi32>
    %c0_i32_1 = arith.constant 0 : i32
    %6 = vector.broadcast %c0_i32_1 : i32 to vector<256x1xi32>
    %7 = arith.cmpi ne, %5, %6 : vector<256x1xi32>
    %c0_i32_2 = arith.constant 0 : i32
    %8 = vector.broadcast %c0_i32_2 : i32 to vector<256x1xi32>
    %9 = arith.cmpi slt, %5, %8 : vector<256x1xi32>
    %c0_i32_3 = arith.constant 0 : i32
    %10 = arith.cmpi slt, %3, %c0_i32_3 : i32
    %11 = vector.broadcast %10 : i1 to vector<256x1xi1>
    %12 = vector.broadcast %11 : vector<256x1xi1> to vector<256x1xi1>
    %13 = arith.xori %9, %12 : vector<256x1xi1>
    %14 = arith.andi %13, %7 : vector<256x1xi1>
    %15 = vector.broadcast %3 : i32 to vector<256x1xi32>
    %16 = arith.addi %5, %15 : vector<256x1xi32>
    %17 = arith.select %14, %16, %5 : vector<256x1xi1>, vector<256x1xi32>
    %c0_i32_4 = arith.constant 0 : i32
    %18 = vector.broadcast %c0_i32_4 : i32 to vector<256x1xi32>
    %19 = arith.cmpi ne, %17, %18 : vector<256x1xi32>
    %c15_i32 = arith.constant 15 : i32
    %20 = vector.broadcast %c15_i32 : i32 to vector<256x1xi32>
    %21 = arith.cmpi ne, %17, %20 : vector<256x1xi32>
    %c0_i32_5 = arith.constant 0 : i32
    %22 = arith.addi %0, %c0_i32_5 : i32
    %c16_i32_6 = arith.constant 16 : i32
    %23 = arith.muli %22, %c16_i32_6 : i32
    %c0_i32_7 = arith.constant 0 : i32
    %24 = arith.addi %23, %c0_i32_7 : i32
    %c0 = arith.constant 0 : index
    %25 = arith.index_cast %24 : i32 to index
    %c0_8 = arith.constant 0 : index
    %26 = vector.load %arg2[%c0, %25, %c0_8] : memref<1x290x4xf32, #tpu.memory_space<vmem>>, vector<1x256x4xf32>
    %27 = vector.shape_cast %26 : vector<1x256x4xf32> to vector<256x4xf32>
    %c0_i32_9 = arith.constant 0 : i32
    %28 = arith.sitofp %c0_i32_9 : i32 to f32
    %29 = vector.shape_cast %19 : vector<256x1xi1> to vector<256x1xi1>
    %30 = vector.broadcast %29 : vector<256x1xi1> to vector<256x4xi1>
    %31 = vector.broadcast %28 : f32 to vector<256x4xf32>
    %32 = arith.select %30, %27, %31 : vector<256x4xi1>, vector<256x4xf32>
    %c0_10 = arith.constant 0 : index
    %c0_11 = arith.constant 0 : index
    %33 = vector.load %arg6[%c0_10, %c0_11] : memref<256x36xf32, #tpu.memory_space<vmem>>, vector<256x4xf32>
    tpu.vector_store %arg6[%c0_10, %c0_11], %32 {strides = array<i32>} : memref<256x36xf32, #tpu.memory_space<vmem>>, vector<256x4xf32>,
    %c0_i32_12 = arith.constant 0 : i32
    %34 = arith.addi %0, %c0_i32_12 : i32
    %c16_i32_13 = arith.constant 16 : i32
    %35 = arith.muli %34, %c16_i32_13 : i32
    %c1_i32_14 = arith.constant 1 : i32
    %36 = arith.addi %35, %c1_i32_14 : i32
    %c0_15 = arith.constant 0 : index
    %37 = arith.index_cast %36 : i32 to index
    %c0_16 = arith.constant 0 : index
    %38 = vector.load %arg2[%c0_15, %37, %c0_16] : memref<1x290x4xf32, #tpu.memory_space<vmem>>, vector<1x256x4xf32>
    %39 = vector.shape_cast %38 : vector<1x256x4xf32> to vector<256x4xf32>
    %c0_17 = arith.constant 0 : index
    %c4 = arith.constant 4 : index
    %40 = vector.load %arg6[%c0_17, %c4] : memref<256x36xf32, #tpu.memory_space<vmem>>, vector<256x4xf32>
    tpu.vector_store %arg6[%c0_17, %c4], %39 {strides = array<i32>} : memref<256x36xf32, #tpu.memory_space<vmem>>, vector<256x4xf32>,
    %c0_i32_18 = arith.constant 0 : i32
    %41 = arith.addi %0, %c0_i32_18 : i32
    %c16_i32_19 = arith.constant 16 : i32
    %42 = arith.muli %41, %c16_i32_19 : i32
    %c2_i32 = arith.constant 2 : i32
    %43 = arith.addi %42, %c2_i32 : i32
    %c0_20 = arith.constant 0 : index
    %44 = arith.index_cast %43 : i32 to index
    %c0_21 = arith.constant 0 : index
    %45 = vector.load %arg2[%c0_20, %44, %c0_21] : memref<1x290x4xf32, #tpu.memory_space<vmem>>, vector<1x256x4xf32>
    %46 = vector.shape_cast %45 : vector<1x256x4xf32> to vector<256x4xf32>
    %c0_i32_22 = arith.constant 0 : i32
    %47 = arith.sitofp %c0_i32_22 : i32 to f32
    %48 = vector.shape_cast %21 : vector<256x1xi1> to vector<256x1xi1>
    %49 = vector.broadcast %48 : vector<256x1xi1> to vector<256x4xi1>
    %50 = vector.broadcast %47 : f32 to vector<256x4xf32>
    %51 = arith.select %49, %46, %50 : vector<256x4xi1>, vector<256x4xf32>
    %c0_23 = arith.constant 0 : index
    %c8 = arith.constant 8 : index
    %52 = vector.load %arg6[%c0_23, %c8] : memref<256x36xf32, #tpu.memory_space<vmem>>, vector<256x4xf32>
    tpu.vector_store %arg6[%c0_23, %c8], %51 {strides = array<i32>} : memref<256x36xf32, #tpu.memory_space<vmem>>, vector<256x4xf32>,
    %c1_i32_24 = arith.constant 1 : i32
    %53 = arith.addi %0, %c1_i32_24 : i32
    %c16_i32_25 = arith.constant 16 : i32
    %54 = arith.muli %53, %c16_i32_25 : i32
    %c0_i32_26 = arith.constant 0 : i32
    %55 = arith.addi %54, %c0_i32_26 : i32
    %c0_27 = arith.constant 0 : index
    %56 = arith.index_cast %55 : i32 to index
    %c0_28 = arith.constant 0 : index
    %57 = vector.load %arg2[%c0_27, %56, %c0_28] : memref<1x290x4xf32, #tpu.memory_space<vmem>>, vector<1x256x4xf32>
    %58 = vector.shape_cast %57 : vector<1x256x4xf32> to vector<256x4xf32>
    %c0_i32_29 = arith.constant 0 : i32
    %59 = arith.sitofp %c0_i32_29 : i32 to f32
    %60 = vector.shape_cast %19 : vector<256x1xi1> to vector<256x1xi1>
    %61 = vector.broadcast %60 : vector<256x1xi1> to vector<256x4xi1>
    %62 = vector.broadcast %59 : f32 to vector<256x4xf32>
    %63 = arith.select %61, %58, %62 : vector<256x4xi1>, vector<256x4xf32>
    %c0_30 = arith.constant 0 : index
    %c12 = arith.constant 12 : index
    %64 = vector.load %arg6[%c0_30, %c12] : memref<256x36xf32, #tpu.memory_space<vmem>>, vector<256x4xf32>
    tpu.vector_store %arg6[%c0_30, %c12], %63 {strides = array<i32>} : memref<256x36xf32, #tpu.memory_space<vmem>>, vector<256x4xf32>,
    %c1_i32_31 = arith.constant 1 : i32
    %65 = arith.addi %0, %c1_i32_31 : i32
    %c16_i32_32 = arith.constant 16 : i32
    %66 = arith.muli %65, %c16_i32_32 : i32
    %c1_i32_33 = arith.constant 1 : i32
    %67 = arith.addi %66, %c1_i32_33 : i32
    %c0_34 = arith.constant 0 : index
    %68 = arith.index_cast %67 : i32 to index
    %c0_35 = arith.constant 0 : index
    %69 = vector.load %arg2[%c0_34, %68, %c0_35] : memref<1x290x4xf32, #tpu.memory_space<vmem>>, vector<1x256x4xf32>
    %70 = vector.shape_cast %69 : vector<1x256x4xf32> to vector<256x4xf32>
    %c0_36 = arith.constant 0 : index
    %c16 = arith.constant 16 : index
    %71 = vector.load %arg6[%c0_36, %c16] : memref<256x36xf32, #tpu.memory_space<vmem>>, vector<256x4xf32>
    tpu.vector_store %arg6[%c0_36, %c16], %70 {strides = array<i32>} : memref<256x36xf32, #tpu.memory_space<vmem>>, vector<256x4xf32>,
    %c1_i32_37 = arith.constant 1 : i32
    %72 = arith.addi %0, %c1_i32_37 : i32
    %c16_i32_38 = arith.constant 16 : i32
    %73 = arith.muli %72, %c16_i32_38 : i32
    %c2_i32_39 = arith.constant 2 : i32
    %74 = arith.addi %73, %c2_i32_39 : i32
    %c0_40 = arith.constant 0 : index
    %75 = arith.index_cast %74 : i32 to index
    %c0_41 = arith.constant 0 : index
    %76 = vector.load %arg2[%c0_40, %75, %c0_41] : memref<1x290x4xf32, #tpu.memory_space<vmem>>, vector<1x256x4xf32>
    %77 = vector.shape_cast %76 : vector<1x256x4xf32> to vector<256x4xf32>
    %c0_i32_42 = arith.constant 0 : i32
    %78 = arith.sitofp %c0_i32_42 : i32 to f32
    %79 = vector.shape_cast %21 : vector<256x1xi1> to vector<256x1xi1>
    %80 = vector.broadcast %79 : vector<256x1xi1> to vector<256x4xi1>
    %81 = vector.broadcast %78 : f32 to vector<256x4xf32>
    %82 = arith.select %80, %77, %81 : vector<256x4xi1>, vector<256x4xf32>
    %c0_43 = arith.constant 0 : index
    %c20 = arith.constant 20 : index
    %83 = vector.load %arg6[%c0_43, %c20] : memref<256x36xf32, #tpu.memory_space<vmem>>, vector<256x4xf32>
    tpu.vector_store %arg6[%c0_43, %c20], %82 {strides = array<i32>} : memref<256x36xf32, #tpu.memory_space<vmem>>, vector<256x4xf32>,
    %c2_i32_44 = arith.constant 2 : i32
    %84 = arith.addi %0, %c2_i32_44 : i32
    %c16_i32_45 = arith.constant 16 : i32
    %85 = arith.muli %84, %c16_i32_45 : i32
    %c0_i32_46 = arith.constant 0 : i32
    %86 = arith.addi %85, %c0_i32_46 : i32
    %c0_47 = arith.constant 0 : index
    %87 = arith.index_cast %86 : i32 to index
    %c0_48 = arith.constant 0 : index
    %88 = vector.load %arg2[%c0_47, %87, %c0_48] : memref<1x290x4xf32, #tpu.memory_space<vmem>>, vector<1x256x4xf32>
    %89 = vector.shape_cast %88 : vector<1x256x4xf32> to vector<256x4xf32>
    %c0_i32_49 = arith.constant 0 : i32
    %90 = arith.sitofp %c0_i32_49 : i32 to f32
    %91 = vector.shape_cast %19 : vector<256x1xi1> to vector<256x1xi1>
    %92 = vector.broadcast %91 : vector<256x1xi1> to vector<256x4xi1>
    %93 = vector.broadcast %90 : f32 to vector<256x4xf32>
    %94 = arith.select %92, %89, %93 : vector<256x4xi1>, vector<256x4xf32>
    %c0_50 = arith.constant 0 : index
    %c24 = arith.constant 24 : index
    %95 = vector.load %arg6[%c0_50, %c24] : memref<256x36xf32, #tpu.memory_space<vmem>>, vector<256x4xf32>
    tpu.vector_store %arg6[%c0_50, %c24], %94 {strides = array<i32>} : memref<256x36xf32, #tpu.memory_space<vmem>>, vector<256x4xf32>,
    %c2_i32_51 = arith.constant 2 : i32
    %96 = arith.addi %0, %c2_i32_51 : i32
    %c16_i32_52 = arith.constant 16 : i32
    %97 = arith.muli %96, %c16_i32_52 : i32
    %c1_i32_53 = arith.constant 1 : i32
    %98 = arith.addi %97, %c1_i32_53 : i32
    %c0_54 = arith.constant 0 : index
    %99 = arith.index_cast %98 : i32 to index
    %c0_55 = arith.constant 0 : index
    %100 = vector.load %arg2[%c0_54, %99, %c0_55] : memref<1x290x4xf32, #tpu.memory_space<vmem>>, vector<1x256x4xf32>
    %101 = vector.shape_cast %100 : vector<1x256x4xf32> to vector<256x4xf32>
    %c0_56 = arith.constant 0 : index
    %c28 = arith.constant 28 : index
    %102 = vector.load %arg6[%c0_56, %c28] : memref<256x36xf32, #tpu.memory_space<vmem>>, vector<256x4xf32>
    tpu.vector_store %arg6[%c0_56, %c28], %101 {strides = array<i32>} : memref<256x36xf32, #tpu.memory_space<vmem>>, vector<256x4xf32>,
    %c2_i32_57 = arith.constant 2 : i32
    %103 = arith.addi %0, %c2_i32_57 : i32
    %c16_i32_58 = arith.constant 16 : i32
    %104 = arith.muli %103, %c16_i32_58 : i32
    %c2_i32_59 = arith.constant 2 : i32
    %105 = arith.addi %104, %c2_i32_59 : i32
    %c0_60 = arith.constant 0 : index
    %106 = arith.index_cast %105 : i32 to index
    %c0_61 = arith.constant 0 : index
    %107 = vector.load %arg2[%c0_60, %106, %c0_61] : memref<1x290x4xf32, #tpu.memory_space<vmem>>, vector<1x256x4xf32>
    %108 = vector.shape_cast %107 : vector<1x256x4xf32> to vector<256x4xf32>
    %c0_i32_62 = arith.constant 0 : i32
    %109 = arith.sitofp %c0_i32_62 : i32 to f32
    %110 = vector.shape_cast %21 : vector<256x1xi1> to vector<256x1xi1>
    %111 = vector.broadcast %110 : vector<256x1xi1> to vector<256x4xi1>
    %112 = vector.broadcast %109 : f32 to vector<256x4xf32>
    %113 = arith.select %111, %108, %112 : vector<256x4xi1>, vector<256x4xf32>
    %c0_63 = arith.constant 0 : index
    %c32 = arith.constant 32 : index
    %114 = vector.load %arg6[%c0_63, %c32] : memref<256x36xf32, #tpu.memory_space<vmem>>, vector<256x4xf32>
    tpu.vector_store %arg6[%c0_63, %c32], %113 {strides = array<i32>} : memref<256x36xf32, #tpu.memory_space<vmem>>, vector<256x4xf32>,
    %c0_64 = arith.constant 0 : index
    %c0_65 = arith.constant 0 : index
    %115 = vector.load %arg3[%c0_64, %c0_65] : memref<8x36xf32, #tpu.memory_space<vmem>>, vector<8x36xf32>
    %c0_66 = arith.constant 0 : index
    %c0_67 = arith.constant 0 : index
    %116 = vector.load %arg6[%c0_66, %c0_67] : memref<256x36xf32, #tpu.memory_space<vmem>>, vector<256x36xf32>
    %cst = arith.constant dense<0.000000e+00> : vector<8x256xf32>
    %117 = tpu.matmul %115, %116, %cst {dimension_numbers = #tpu.dot_dimension_numbers<[1], [1], [0], [0], [0, 0, 1, 0], [], []>} : vector<8x36xf32>, vector<256x36xf32>, vector<8x256xf32> -> vector<8x256xf32>
    %c0_68 = arith.constant 0 : index
    %c0_69 = arith.constant 0 : index
    %118 = vector.load %arg4[%c0_68, %c0_69] : memref<8x1xf32, #tpu.memory_space<vmem>>, vector<8x1xf32>
    %119 = vector.broadcast %118 : vector<8x1xf32> to vector<8x256xf32>
    %120 = arith.addf %117, %119 : vector<8x256xf32>
    %cst_70 = arith.constant 0.000000e+00 : f32
    %121 = vector.broadcast %cst_70 : f32 to vector<8x256xf32>
    %122 = arith.cmpf oge, %120, %121 : vector<8x256xf32>
    %cst_71 = arith.constant 0.00999999977 : f32
    %123 = vector.broadcast %cst_71 : f32 to vector<8x256xf32>
    %124 = arith.mulf %123, %120 : vector<8x256xf32>
    %125 = arith.select %122, %120, %124 : vector<8x256xi1>, vector<8x256xf32>
    %c0_72 = arith.constant 0 : index
    %c0_73 = arith.constant 0 : index
    %c0_74 = arith.constant 0 : index
    %126 = vector.load %arg5[%c0_72, %c0_73, %c0_74] : memref<1x8x256xf32, #tpu.memory_space<vmem>>, vector<1x8x256xf32>
    %127 = vector.shape_cast %126 : vector<1x8x256xf32> to vector<8x256xf32>
    %128 = vector.shape_cast %125 : vector<8x256xf32> to vector<1x8x256xf32>
    tpu.vector_store %arg5[%c0_72, %c0_73, %c0_74], %128 {strides = array<i32>} : memref<1x8x256xf32, #tpu.memory_space<vmem>>, vector<1x8x256xf32>,
    return
  }
  func.func @transform_0(%arg0: i32, %arg1: i32) -> (i32, i32, i32) {
    %c0_i32 = arith.constant 0 : i32
    %c0_i32_0 = arith.constant 0 : i32
    %c0_i32_1 = arith.constant 0 : i32
    return %arg0, %c0_i32, %c0_i32_0 : i32, i32, i32
  }
  func.func @transform_1(%arg0: i32, %arg1: i32) -> (i32, i32) {
    %c0_i32 = arith.constant 0 : i32
    %c0_i32_0 = arith.constant 0 : i32
    %c0_i32_1 = arith.constant 0 : i32
    return %c0_i32, %c0_i32_0 : i32, i32
  }
  func.func @transform_2(%arg0: i32, %arg1: i32) -> (i32, i32) {
    %c0_i32 = arith.constant 0 : i32
    %c0_i32_0 = arith.constant 0 : i32
    %c0_i32_1 = arith.constant 0 : i32
    return %c0_i32, %c0_i32_0 : i32, i32
  }
  func.func @transform_3(%arg0: i32, %arg1: i32) -> (i32, i32, i32) {
    %c0_i32 = arith.constant 0 : i32
    %c0_i32_0 = arith.constant 0 : i32
    return %arg0, %c0_i32, %arg1 : i32, i32, i32
  }
}

</mosaic_0001>

<llo_original>
// kernel: single_conv_relu_batch_fwd.3
$region0: #{single_conv_relu_batch_fwd.3}
  #allocation0 [shape = 'u32[]', space=smem, size = 0x4, offset = 0x4, fixed_abs, tag = 'smem constant byte address 0x4 - core index']
  #allocation1 [shape = 'u32[72,128]{1,0:T(1,128)}', space=vmem, size = 0x9000, scoped, tag = 'internal scratch']
  #allocation2 [shape = 'f32[256,36]{1,0:T(8,128)}', space=vmem, size = 0x20000, scoped, tag = 'scratch operand']
  %s0 = inlined_call_operand.vmem [shape: f32[2,290,4], index: 0, kind: input, shape index: {}]
  %s1 = inlined_call_operand.vmem [shape: f32[8,36], index: 1, kind: input, shape index: {}]
  %s2 = inlined_call_operand.vmem [shape: f32[8,1], index: 2, kind: input, shape index: {}]
  %s3 = inlined_call_operand.vmem [shape: f32[2,8,256], index: 3, kind: output, shape index: {}]
  %s4 = sld [smem:[#allocation0]]
  $region45: #{single_conv_relu_batch_fwd.3} parent=0
    _
  %s6 = ssub.s32 1, %s4
  %s7 = scalar_select 0, %s6, %s4
  loop: start=0, step=1, limit=4
  $region2: #{single_conv_relu_batch_fwd.3} parent=0 // loop_pre_header
    _
  $region3: #{single_conv_relu_batch_fwd.3} parent=0 // loop_header
    %s9 = sphi 0, %s13
    %p10 = scmp.ge.s32.totalorder %s9, 4
    %s16 = sphi 0, %s28
    %s17 = sphi 0, %s24
    %s18 = sphi 0, %s16
    %s19 = sphi 0, %s17
    %s20 = sphi 0, %s18
    %s21 = sphi 0, %s19
    %s31 = sphi 0, %s33
    %s34 = sphi 0, %s31
    %s35 = sphi 0, %s34
    %s51 = sphi 0, %s35
    %s55 = sphi 0, %s55
    %s57 = sphi 0, %s55
    %s58 = sphi 0, %s57
    %s72 = sphi 0, %s58
    %s76 = sphi 0, %s76
    %s78 = sphi 0, %s76
    %s79 = sphi 0, %s78
    %s93 = sphi 0, %s79
    %s101 = sphi 0, %s103
    %s104 = sphi 0, %s101
    %s105 = sphi 0, %s104
    %s121 = sphi 0, %s105
  $region4: #{single_conv_relu_batch_fwd.3} parent=0 // loop_header_branch
    %12 = sbr.rel (%p10) target = $region8
  $region5: #{single_conv_relu_batch_fwd.3} parent=0 // loop_body
    %s14 = ssub.s32 %s9, 1
    %s15 = ssub.s32 %s9, 2
    %s22 = sadd.s32 1, %s17
    %p23 = scmp.ge.s32.totalorder %s22, 1
    %s24 = scalar_select %p23, 0, %s22
    %s25 = sadd.s32 1, %s16
    %s26 = scalar_select %p23, %s25, %s16
    %p27 = scmp.ge.s32.totalorder %s26, 2
    %s28 = scalar_select %p27, 0, %s26
    %s29 = ssub.s32 %s16, %s28
    %p30 = scmp.eq.s32.totalorder %s29, 0
    %s32 = sadd.s32 %s31, 1
    %s33 = scalar_select %p30, %s31, %s32
    %p36 = pneg %p30
    %p37 = scmp.eq.s32.totalorder %s9, 1
    %p38 = por %p36, %p37
    %p39 = scmp.ne.s32.totalorder %s31, %s34
    %p40 = scmp.eq.s32.totalorder %s9, 0
    %p41 = por %p39, %p40
    %p42 = scmp.ne.s32.totalorder %s31, %s34
    %p43 = scmp.eq.s32.totalorder %s14, 1
    %p44 = por %p42, %p43
    %p45 = scmp.ne.s32.totalorder %s34, %s35
    %p46 = scmp.eq.s32.totalorder %s14, 0
    %p47 = por %p45, %p46
    %p48 = scmp.ne.s32.totalorder %s34, %s35
    %p49 = scmp.eq.s32.totalorder %s15, 1
    %p50 = por %p48, %p49
    %p52 = scmp.ne.s32.totalorder %s35, %s51
    %p53 = scmp.eq.s32.totalorder %s15, 0
    %p54 = por %p52, %p53
    %s56 = sadd.s32 %s55, 1
    %p59 = scmp.eq.s32.totalorder %s9, 1
    %p60 = scmp.ne.s32.totalorder %s55, %s57
    %p61 = scmp.eq.s32.totalorder %s9, 0
    %p62 = por %p60, %p61
    %p63 = scmp.ne.s32.totalorder %s55, %s57
    %p64 = scmp.eq.s32.totalorder %s14, 1
    %p65 = por %p63, %p64
    %p66 = scmp.ne.s32.totalorder %s57, %s58
    %p67 = scmp.eq.s32.totalorder %s14, 0
    %p68 = por %p66, %p67
    %p69 = scmp.ne.s32.totalorder %s57, %s58
    %p70 = scmp.eq.s32.totalorder %s15, 1
    %p71 = por %p69, %p70
    %p73 = scmp.ne.s32.totalorder %s58, %s72
    %p74 = scmp.eq.s32.totalorder %s15, 0
    %p75 = por %p73, %p74
    %s77 = sadd.s32 %s76, 1
    %p80 = scmp.eq.s32.totalorder %s9, 1
    %p81 = scmp.ne.s32.totalorder %s76, %s78
    %p82 = scmp.eq.s32.totalorder %s9, 0
    %p83 = por %p81, %p82
    %p84 = scmp.ne.s32.totalorder %s76, %s78
    %p85 = scmp.eq.s32.totalorder %s14, 1
    %p86 = por %p84, %p85
    %p87 = scmp.ne.s32.totalorder %s78, %s79
    %p88 = scmp.eq.s32.totalorder %s14, 0
    %p89 = por %p87, %p88
    %p90 = scmp.ne.s32.totalorder %s78, %s79
    %p91 = scmp.eq.s32.totalorder %s15, 1
    %p92 = por %p90, %p91
    %p94 = scmp.ne.s32.totalorder %s79, %s93
    %p95 = scmp.eq.s32.totalorder %s15, 0
    %p96 = por %p94, %p95
    %s97 = ssub.s32 %s16, %s28
    %s98 = ssub.s32 %s17, %s24
    %s99 = sor.u32 %s97, %s98
    %p100 = scmp.eq.s32.totalorder %s99, 0
    %s102 = sadd.s32 %s101, 1
    %s103 = scalar_select %p100, %s101, %s102
    %p106 = pneg %p100
    %p107 = scmp.eq.s32.totalorder %s9, 1
    %p108 = por %p106, %p107
    %p109 = scmp.ne.s32.totalorder %s101, %s104
    %p110 = scmp.eq.s32.totalorder %s9, 0
    %p111 = por %p109, %p110
    %p112 = scmp.ne.s32.totalorder %s101, %s104
    %p113 = scmp.eq.s32.totalorder %s14, 1
    %p114 = por %p112, %p113
    %p115 = scmp.ne.s32.totalorder %s104, %s105
    %p116 = scmp.eq.s32.totalorder %s14, 0
    %p117 = por %p115, %p116
    %p118 = scmp.ne.s32.totalorder %s104, %s105
    %p119 = scmp.eq.s32.totalorder %s15, 1
    %p120 = por %p118, %p119
    %p122 = scmp.ne.s32.totalorder %s105, %s121
    %p123 = scmp.eq.s32.totalorder %s15, 0
    %p124 = por %p122, %p123
    %p125 = scmp.le.s32.totalorder 1, %s9
    %p126 = scmp.lt.s32.totalorder %s9, 3
    %p127 = pnand %p125, %p126
    %p128 = pneg %p127
    // Predicated region
    $region9: #{single_conv_relu_batch_fwd.3} parent=5 // pred_check
      _
    $region10: #{single_conv_relu_batch_fwd.3} parent=5 // pred_check_branch
      %130 = sbr.rel (%p127) target = $region12
    $region11: #{single_conv_relu_batch_fwd.3} parent=5 // pred_region
      %s131 = ssub.s32 %s9, 1
      // Predicated region
      $region13: #{single_conv_relu_batch_fwd.3} parent=11 // pred_check
        %p132 = pneg %p68
      $region14: #{single_conv_relu_batch_fwd.3} parent=11 // pred_check_branch
        %134 = sbr.rel (%p132) target = $region16
      $region15: #{single_conv_relu_batch_fwd.3} parent=11 // pred_region
        _
      $region16: #{single_conv_relu_batch_fwd.3} parent=11 // pred_fallthru
        _
      // Predicated region
      $region17: #{single_conv_relu_batch_fwd.3} parent=11 // pred_check
        %p135 = pneg %p89
      $region18: #{single_conv_relu_batch_fwd.3} parent=11 // pred_check_branch
        %137 = sbr.rel (%p135) target = $region20
      $region19: #{single_conv_relu_batch_fwd.3} parent=11 // pred_region
        _
      $region20: #{single_conv_relu_batch_fwd.3} parent=11 // pred_fallthru
        _
    $region12: #{single_conv_relu_batch_fwd.3} parent=5 // pred_fallthru
      _
    %p138 = scmp.lt.s32.totalorder %s9, 2
    // Predicated region
    $region21: #{single_conv_relu_batch_fwd.3} parent=5 // pred_check
      %p139 = pneg %p138
    $region22: #{single_conv_relu_batch_fwd.3} parent=5 // pred_check_branch
      %141 = sbr.rel (%p139) target = $region24
    $region23: #{single_conv_relu_batch_fwd.3} parent=5 // pred_region
      // Predicated region
      $region25: #{single_conv_relu_batch_fwd.3} parent=23 // pred_check
        %p142 = pneg %p41
      $region26: #{single_conv_relu_batch_fwd.3} parent=23 // pred_check_branch
        %144 = sbr.rel (%p142) target = $region28
      $region27: #{single_conv_relu_batch_fwd.3} parent=23 // pred_region
        %p145 = scmp.lt.s32.totalorder %s16, 1
        %s146 = scalar_select %p145, %s16, 1
        %s147 = smul.addr %s146, 37
        %s148 = smul.addr %s147, 8
        %s149 = scalar_lea.vmem %s0, %s148
      $region28: #{single_conv_relu_batch_fwd.3} parent=23 // pred_fallthru
        _
    $region24: #{single_conv_relu_batch_fwd.3} parent=5 // pred_fallthru
      _
    %p150 = scmp.le.s32.totalorder 1, %s9
    %p151 = scmp.lt.s32.totalorder %s9, 3
    %p152 = pnand %p150, %p151
    %p153 = pneg %p152
    // Predicated region
    $region29: #{single_conv_relu_batch_fwd.3} parent=5 // pred_check
      _
    $region30: #{single_conv_relu_batch_fwd.3} parent=5 // pred_check_branch
      %155 = sbr.rel (%p152) target = $region32
    $region31: #{single_conv_relu_batch_fwd.3} parent=5 // pred_region
      %s156 = ssub.s32 %s9, 1
      %p157 = scmp.lt.s32.totalorder %s18, 1
      %s158 = scalar_select %p157, %s18, 1
      %s159 = smul.addr %s158, 37
      %s160 = smul.addr %s159, 8
      %s161 = scalar_lea.vmem %s0, %s160
      %p162 = pneg %p47
      %p163 = pneg %p44
      %p164 = pneg %p68
      %p165 = pneg %p65
      %p166 = pneg %p89
      %p167 = pneg %p86
      %p168 = pneg %p117
      %p169 = pneg %p114
      %s170 = smul.u32 2, %s19
      %p171 = scmp.lt.s32.totalorder %s18, 1
      %s172 = scalar_select %p171, %s18, 1
      %p173 = scmp.lt.s32.totalorder %s170, 1
      %s174 = scalar_select %p173, %s170, 1
      %s175 = smul.addr %s172, 2
      %s176 = sadd.s32 %s174, %s175
      %s177 = smul.addr %s176, 8
      %s178 = scalar_lea.vmem %s3, %s177
      %p179 = scmp.lt.s32.totalorder %s18, 1
      %s180 = scalar_select %p179, %s18, 1
      %s181 = smul.addr %s180, 37
      %s182 = smul.addr %s181, 8
      %s183 = scalar_lea.vmem %s0, %s182
      %s184 = smul.u32 2, %s19
      %p185 = scmp.lt.s32.totalorder %s18, 1
      %s186 = scalar_select %p185, %s18, 1
      %p187 = scmp.lt.s32.totalorder %s184, 1
      %s188 = scalar_select %p187, %s184, 1
      %s189 = smul.addr %s186, 2
      %s190 = sadd.s32 %s188, %s189
      %s191 = smul.addr %s190, 8
      %s192 = scalar_lea.vmem %s3, %s191
      %s193 = smul.u32 2, %s19
      %s194 = smul.u32 %s19, 16
      %v195 = vlaneseq
      %v196 = vshrl.u32 %v195, 7
      %v197 = vadd.s32 %v196, 8
      %v198 = vadd.s32 %v196, 16
      %v199 = vadd.s32 %v196, 24
      %v200 = vadd.s32 %v196, 32
      %v201 = vadd.s32 %v196, 40
      %v202 = vadd.s32 %v196, 48
      %v203 = vadd.s32 %v196, 56
      %v204 = vadd.s32 %v196, 64
      %v205 = vadd.s32 %v196, 72
      %v206 = vadd.s32 %v196, 80
      %v207 = vadd.s32 %v196, 88
      %v208 = vadd.s32 %v196, 96
      %v209 = vadd.s32 %v196, 104
      %v210 = vadd.s32 %v196, 112
      %v211 = vadd.s32 %v196, 120
      %v212 = vadd.s32 %v196, 128
      %v213 = vadd.s32 %v196, 136
      %v214 = vadd.s32 %v196, 144
      %v215 = vadd.s32 %v196, 152
      %v216 = vadd.s32 %v196, 160
      %v217 = vadd.s32 %v196, 168
      %v218 = vadd.s32 %v196, 176
      %v219 = vadd.s32 %v196, 184
      %v220 = vadd.s32 %v196, 192
      %v221 = vadd.s32 %v196, 200
      %v222 = vadd.s32 %v196, 208
      %v223 = vadd.s32 %v196, 216
      %v224 = vadd.s32 %v196, 224
      %v225 = vadd.s32 %v196, 232
      %v226 = vadd.s32 %v196, 240
      %v227 = vadd.s32 %v196, 248
      %vm228 = vcmp.lt.s32.totalorder %v196, 0
      %v229 = vsub.s32 0, %v196
      %v230 = vsel %vm228, %v229, %v196
      %v231 = vshrl.u32 %v230, 4
      %v232 = vand.u32 %v230, 15
      %v233 = vsub.s32 0, %v232
      %v234 = vsel %vm228, %v233, %v232
      %vm235 = vcmp.lt.s32.totalorder %v197, 0
      %v236 = vsub.s32 0, %v197
      %v237 = vsel %vm235, %v236, %v197
      %v238 = vshrl.u32 %v237, 4
      %v239 = vand.u32 %v237, 15
      %v240 = vsub.s32 0, %v239
      %v241 = vsel %vm235, %v240, %v239
      %vm242 = vcmp.lt.s32.totalorder %v198, 0
      %v243 = vsub.s32 0, %v198
      %v244 = vsel %vm242, %v243, %v198
      %v245 = vshrl.u32 %v244, 4
      %v246 = vand.u32 %v244, 15
      %v247 = vsub.s32 0, %v246
      %v248 = vsel %vm242, %v247, %v246
      %vm249 = vcmp.lt.s32.totalorder %v199, 0
      %v250 = vsub.s32 0, %v199
      %v251 = vsel %vm249, %v250, %v199
      %v252 = vshrl.u32 %v251, 4
      %v253 = vand.u32 %v251, 15
      %v254 = vsub.s32 0, %v253
      %v255 = vsel %vm249, %v254, %v253
      %vm256 = vcmp.lt.s32.totalorder %v200, 0
      %v257 = vsub.s32 0, %v200
      %v258 = vsel %vm256, %v257, %v200
      %v259 = vshrl.u32 %v258, 4
      %v260 = vand.u32 %v258, 15
      %v261 = vsub.s32 0, %v260
      %v262 = vsel %vm256, %v261, %v260
      %vm263 = vcmp.lt.s32.totalorder %v201, 0
      %v264 = vsub.s32 0, %v201
      %v265 = vsel %vm263, %v264, %v201
      %v266 = vshrl.u32 %v265, 4
      %v267 = vand.u32 %v265, 15
      %v268 = vsub.s32 0, %v267
      %v269 = vsel %vm263, %v268, %v267
      %vm270 = vcmp.lt.s32.totalorder %v202, 0
      %v271 = vsub.s32 0, %v202
      %v272 = vsel %vm270, %v271, %v202
      %v273 = vshrl.u32 %v272, 4
      %v274 = vand.u32 %v272, 15
      %v275 = vsub.s32 0, %v274
      %v276 = vsel %vm270, %v275, %v274
      %vm277 = vcmp.lt.s32.totalorder %v203, 0
      %v278 = vsub.s32 0, %v203
      %v279 = vsel %vm277, %v278, %v203
      %v280 = vshrl.u32 %v279, 4
      %v281 = vand.u32 %v279, 15
      %v282 = vsub.s32 0, %v281
      %v283 = vsel %vm277, %v282, %v281
      %vm284 = vcmp.lt.s32.totalorder %v204, 0
      %v285 = vsub.s32 0, %v204
      %v286 = vsel %vm284, %v285, %v204
      %v287 = vshrl.u32 %v286, 4
      %v288 = vand.u32 %v286, 15
      %v289 = vsub.s32 0, %v288
      %v290 = vsel %vm284, %v289, %v288
      %vm291 = vcmp.lt.s32.totalorder %v205, 0
      %v292 = vsub.s32 0, %v205
      %v293 = vsel %vm291, %v292, %v205
      %v294 = vshrl.u32 %v293, 4
      %v295 = vand.u32 %v293, 15
      %v296 = vsub.s32 0, %v295
      %v297 = vsel %vm291, %v296, %v295
      %vm298 = vcmp.lt.s32.totalorder %v206, 0
      %v299 = vsub.s32 0, %v206
      %v300 = vsel %vm298, %v299, %v206
      %v301 = vshrl.u32 %v300, 4
      %v302 = vand.u32 %v300, 15
      %v303 = vsub.s32 0, %v302
      %v304 = vsel %vm298, %v303, %v302
      %vm305 = vcmp.lt.s32.totalorder %v207, 0
      %v306 = vsub.s32 0, %v207
      %v307 = vsel %vm305, %v306, %v207
      %v308 = vshrl.u32 %v307, 4
      %v309 = vand.u32 %v307, 15
      %v310 = vsub.s32 0, %v309
      %v311 = vsel %vm305, %v310, %v309
      %vm312 = vcmp.lt.s32.totalorder %v208, 0
      %v313 = vsub.s32 0, %v208
      %v314 = vsel %vm312, %v313, %v208
      %v315 = vshrl.u32 %v314, 4
      %v316 = vand.u32 %v314, 15
      %v317 = vsub.s32 0, %v316
      %v318 = vsel %vm312, %v317, %v316
      %vm319 = vcmp.lt.s32.totalorder %v209, 0
      %v320 = vsub.s32 0, %v209
      %v321 = vsel %vm319, %v320, %v209
      %v322 = vshrl.u32 %v321, 4
      %v323 = vand.u32 %v321, 15
      %v324 = vsub.s32 0, %v323
      %v325 = vsel %vm319, %v324, %v323
      %vm326 = vcmp.lt.s32.totalorder %v210, 0
      %v327 = vsub.s32 0, %v210
      %v328 = vsel %vm326, %v327, %v210
      %v329 = vshrl.u32 %v328, 4
      %v330 = vand.u32 %v328, 15
      %v331 = vsub.s32 0, %v330
      %v332 = vsel %vm326, %v331, %v330
      %vm333 = vcmp.lt.s32.totalorder %v211, 0
      %v334 = vsub.s32 0, %v211
      %v335 = vsel %vm333, %v334, %v211
      %v336 = vshrl.u32 %v335, 4
      %v337 = vand.u32 %v335, 15
      %v338 = vsub.s32 0, %v337
      %v339 = vsel %vm333, %v338, %v337
      %vm340 = vcmp.lt.s32.totalorder %v212, 0
      %v341 = vsub.s32 0, %v212
      %v342 = vsel %vm340, %v341, %v212
      %v343 = vshrl.u32 %v342, 4
      %v344 = vand.u32 %v342, 15
      %v345 = vsub.s32 0, %v344
      %v346 = vsel %vm340, %v345, %v344
      %vm347 = vcmp.lt.s32.totalorder %v213, 0
      %v348 = vsub.s32 0, %v213
      %v349 = vsel %vm347, %v348, %v213
      %v350 = vshrl.u32 %v349, 4
      %v351 = vand.u32 %v349, 15
      %v352 = vsub.s32 0, %v351
      %v353 = vsel %vm347, %v352, %v351
      %vm354 = vcmp.lt.s32.totalorder %v214, 0
      %v355 = vsub.s32 0, %v214
      %v356 = vsel %vm354, %v355, %v214
      %v357 = vshrl.u32 %v356, 4
      %v358 = vand.u32 %v356, 15
      %v359 = vsub.s32 0, %v358
      %v360 = vsel %vm354, %v359, %v358
      %vm361 = vcmp.lt.s32.totalorder %v215, 0
      %v362 = vsub.s32 0, %v215
      %v363 = vsel %vm361, %v362, %v215
      %v364 = vshrl.u32 %v363, 4
      %v365 = vand.u32 %v363, 15
      %v366 = vsub.s32 0, %v365
      %v367 = vsel %vm361, %v366, %v365
      %vm368 = vcmp.lt.s32.totalorder %v216, 0
      %v369 = vsub.s32 0, %v216
      %v370 = vsel %vm368, %v369, %v216
      %v371 = vshrl.u32 %v370, 4
      %v372 = vand.u32 %v370, 15
      %v373 = vsub.s32 0, %v372
      %v374 = vsel %vm368, %v373, %v372
      %vm375 = vcmp.lt.s32.totalorder %v217, 0
      %v376 = vsub.s32 0, %v217
      %v377 = vsel %vm375, %v376, %v217
      %v378 = vshrl.u32 %v377, 4
      %v379 = vand.u32 %v377, 15
      %v380 = vsub.s32 0, %v379
      %v381 = vsel %vm375, %v380, %v379
      %vm382 = vcmp.lt.s32.totalorder %v218, 0
      %v383 = vsub.s32 0, %v218
      %v384 = vsel %vm382, %v383, %v218
      %v385 = vshrl.u32 %v384, 4
      %v386 = vand.u32 %v384, 15
      %v387 = vsub.s32 0, %v386
      %v388 = vsel %vm382, %v387, %v386
      %vm389 = vcmp.lt.s32.totalorder %v219, 0
      %v390 = vsub.s32 0, %v219
      %v391 = vsel %vm389, %v390, %v219
      %v392 = vshrl.u32 %v391, 4
      %v393 = vand.u32 %v391, 15
      %v394 = vsub.s32 0, %v393
      %v395 = vsel %vm389, %v394, %v393
      %vm396 = vcmp.lt.s32.totalorder %v220, 0
      %v397 = vsub.s32 0, %v220
      %v398 = vsel %vm396, %v397, %v220
      %v399 = vshrl.u32 %v398, 4
      %v400 = vand.u32 %v398, 15
      %v401 = vsub.s32 0, %v400
      %v402 = vsel %vm396, %v401, %v400
      %vm403 = vcmp.lt.s32.totalorder %v221, 0
      %v404 = vsub.s32 0, %v221
      %v405 = vsel %vm403, %v404, %v221
      %v406 = vshrl.u32 %v405, 4
      %v407 = vand.u32 %v405, 15
      %v408 = vsub.s32 0, %v407
      %v409 = vsel %vm403, %v408, %v407
      %vm410 = vcmp.lt.s32.totalorder %v222, 0
      %v411 = vsub.s32 0, %v222
      %v412 = vsel %vm410, %v411, %v222
      %v413 = vshrl.u32 %v412, 4
      %v414 = vand.u32 %v412, 15
      %v415 = vsub.s32 0, %v414
      %v416 = vsel %vm410, %v415, %v414
      %vm417 = vcmp.lt.s32.totalorder %v223, 0
      %v418 = vsub.s32 0, %v223
      %v419 = vsel %vm417, %v418, %v223
      %v420 = vshrl.u32 %v419, 4
      %v421 = vand.u32 %v419, 15
      %v422 = vsub.s32 0, %v421
      %v423 = vsel %vm417, %v422, %v421
      %vm424 = vcmp.lt.s32.totalorder %v224, 0
      %v425 = vsub.s32 0, %v224
      %v426 = vsel %vm424, %v425, %v224
      %v427 = vshrl.u32 %v426, 4
      %v428 = vand.u32 %v426, 15
      %v429 = vsub.s32 0, %v428
      %v430 = vsel %vm424, %v429, %v428
      %vm431 = vcmp.lt.s32.totalorder %v225, 0
      %v432 = vsub.s32 0, %v225
      %v433 = vsel %vm431, %v432, %v225
      %v434 = vshrl.u32 %v433, 4
      %v435 = vand.u32 %v433, 15
      %v436 = vsub.s32 0, %v435
      %v437 = vsel %vm431, %v436, %v435
      %vm438 = vcmp.lt.s32.totalorder %v226, 0
      %v439 = vsub.s32 0, %v226
      %v440 = vsel %vm438, %v439, %v226
      %v441 = vshrl.u32 %v440, 4
      %v442 = vand.u32 %v440, 15
      %v443 = vsub.s32 0, %v442
      %v444 = vsel %vm438, %v443, %v442
      %vm445 = vcmp.lt.s32.totalorder %v227, 0
      %v446 = vsub.s32 0, %v227
      %v447 = vsel %vm445, %v446, %v227
      %v448 = vshrl.u32 %v447, 4
      %v449 = vand.u32 %v447, 15
      %v450 = vsub.s32 0, %v449
      %v451 = vsel %vm445, %v450, %v449
      %vm452 = vcmp.ne.s32.totalorder %v234, 0
      %vm453 = vcmp.ne.s32.totalorder %v241, 0
      %vm454 = vcmp.ne.s32.totalorder %v248, 0
      %vm455 = vcmp.ne.s32.totalorder %v255, 0
      %vm456 = vcmp.ne.s32.totalorder %v262, 0
      %vm457 = vcmp.ne.s32.totalorder %v269, 0
      %vm458 = vcmp.ne.s32.totalorder %v276, 0
      %vm459 = vcmp.ne.s32.totalorder %v283, 0
      %vm460 = vcmp.ne.s32.totalorder %v290, 0
      %vm461 = vcmp.ne.s32.totalorder %v297, 0
      %vm462 = vcmp.ne.s32.totalorder %v304, 0
      %vm463 = vcmp.ne.s32.totalorder %v311, 0
      %vm464 = vcmp.ne.s32.totalorder %v318, 0
      %vm465 = vcmp.ne.s32.totalorder %v325, 0
      %vm466 = vcmp.ne.s32.totalorder %v332, 0
      %vm467 = vcmp.ne.s32.totalorder %v339, 0
      %vm468 = vcmp.ne.s32.totalorder %v346, 0
      %vm469 = vcmp.ne.s32.totalorder %v353, 0
      %vm470 = vcmp.ne.s32.totalorder %v360, 0
      %vm471 = vcmp.ne.s32.totalorder %v367, 0
      %vm472 = vcmp.ne.s32.totalorder %v374, 0
      %vm473 = vcmp.ne.s32.totalorder %v381, 0
      %vm474 = vcmp.ne.s32.totalorder %v388, 0
      %vm475 = vcmp.ne.s32.totalorder %v395, 0
      %vm476 = vcmp.ne.s32.totalorder %v402, 0
      %vm477 = vcmp.ne.s32.totalorder %v409, 0
      %vm478 = vcmp.ne.s32.totalorder %v416, 0
      %vm479 = vcmp.ne.s32.totalorder %v423, 0
      %vm480 = vcmp.ne.s32.totalorder %v430, 0
      %vm481 = vcmp.ne.s32.totalorder %v437, 0
      %vm482 = vcmp.ne.s32.totalorder %v444, 0
      %vm483 = vcmp.ne.s32.totalorder %v451, 0
      %vm484 = vcmp.lt.s32.totalorder %v234, 0
      %vm485 = vcmp.lt.s32.totalorder %v241, 0
      %vm486 = vcmp.lt.s32.totalorder %v248, 0
      %vm487 = vcmp.lt.s32.totalorder %v255, 0
      %vm488 = vcmp.lt.s32.totalorder %v262, 0
      %vm489 = vcmp.lt.s32.totalorder %v269, 0
      %vm490 = vcmp.lt.s32.totalorder %v276, 0
      %vm491 = vcmp.lt.s32.totalorder %v283, 0
      %vm492 = vcmp.lt.s32.totalorder %v290, 0
      %vm493 = vcmp.lt.s32.totalorder %v297, 0
      %vm494 = vcmp.lt.s32.totalorder %v304, 0
      %vm495 = vcmp.lt.s32.totalorder %v311, 0
      %vm496 = vcmp.lt.s32.totalorder %v318, 0
      %vm497 = vcmp.lt.s32.totalorder %v325, 0
      %vm498 = vcmp.lt.s32.totalorder %v332, 0
      %vm499 = vcmp.lt.s32.totalorder %v339, 0
      %vm500 = vcmp.lt.s32.totalorder %v346, 0
      %vm501 = vcmp.lt.s32.totalorder %v353, 0
      %vm502 = vcmp.lt.s32.totalorder %v360, 0
      %vm503 = vcmp.lt.s32.totalorder %v367, 0
      %vm504 = vcmp.lt.s32.totalorder %v374, 0
      %vm505 = vcmp.lt.s32.totalorder %v381, 0
      %vm506 = vcmp.lt.s32.totalorder %v388, 0
      %vm507 = vcmp.lt.s32.totalorder %v395, 0
      %vm508 = vcmp.lt.s32.totalorder %v402, 0
      %vm509 = vcmp.lt.s32.totalorder %v409, 0
      %vm510 = vcmp.lt.s32.totalorder %v416, 0
      %vm511 = vcmp.lt.s32.totalorder %v423, 0
      %vm512 = vcmp.lt.s32.totalorder %v430, 0
      %vm513 = vcmp.lt.s32.totalorder %v437, 0
      %vm514 = vcmp.lt.s32.totalorder %v444, 0
      %vm515 = vcmp.lt.s32.totalorder %v451, 0
      %vm516 = vmand %vm484, %vm452
      %vm517 = vmand %vm485, %vm453
      %vm518 = vmand %vm486, %vm454
      %vm519 = vmand %vm487, %vm455
      %vm520 = vmand %vm488, %vm456
      %vm521 = vmand %vm489, %vm457
      %vm522 = vmand %vm490, %vm458
      %vm523 = vmand %vm491, %vm459
      %vm524 = vmand %vm492, %vm460
      %vm525 = vmand %vm493, %vm461
      %vm526 = vmand %vm494, %vm462
      %vm527 = vmand %vm495, %vm463
      %vm528 = vmand %vm496, %vm464
      %vm529 = vmand %vm497, %vm465
      %vm530 = vmand %vm498, %vm466
      %vm531 = vmand %vm499, %vm467
      %vm532 = vmand %vm500, %vm468
      %vm533 = vmand %vm501, %vm469
      %vm534 = vmand %vm502, %vm470
      %vm535 = vmand %vm503, %vm471
      %vm536 = vmand %vm504, %vm472
      %vm537 = vmand %vm505, %vm473
      %vm538 = vmand %vm506, %vm474
      %vm539 = vmand %vm507, %vm475
      %vm540 = vmand %vm508, %vm476
      %vm541 = vmand %vm509, %vm477
      %vm542 = vmand %vm510, %vm478
      %vm543 = vmand %vm511, %vm479
      %vm544 = vmand %vm512, %vm480
      %vm545 = vmand %vm513, %vm481
      %vm546 = vmand %vm514, %vm482
      %vm547 = vmand %vm515, %vm483
      %v548 = vadd.s32 %v234, 16
      %v549 = vadd.s32 %v241, 16
      %v550 = vadd.s32 %v248, 16
      %v551 = vadd.s32 %v255, 16
      %v552 = vadd.s32 %v262, 16
      %v553 = vadd.s32 %v269, 16
      %v554 = vadd.s32 %v276, 16
      %v555 = vadd.s32 %v283, 16
      %v556 = vadd.s32 %v290, 16
      %v557 = vadd.s32 %v297, 16
      %v558 = vadd.s32 %v304, 16
      %v559 = vadd.s32 %v311, 16
      %v560 = vadd.s32 %v318, 16
      %v561 = vadd.s32 %v325, 16
      %v562 = vadd.s32 %v332, 16
      %v563 = vadd.s32 %v339, 16
      %v564 = vadd.s32 %v346, 16
      %v565 = vadd.s32 %v353, 16
      %v566 = vadd.s32 %v360, 16
      %v567 = vadd.s32 %v367, 16
      %v568 = vadd.s32 %v374, 16
      %v569 = vadd.s32 %v381, 16
      %v570 = vadd.s32 %v388, 16
      %v571 = vadd.s32 %v395, 16
      %v572 = vadd.s32 %v402, 16
      %v573 = vadd.s32 %v409, 16
      %v574 = vadd.s32 %v416, 16
      %v575 = vadd.s32 %v423, 16
      %v576 = vadd.s32 %v430, 16
      %v577 = vadd.s32 %v437, 16
      %v578 = vadd.s32 %v444, 16
      %v579 = vadd.s32 %v451, 16
      %v580 = vsel %vm516, %v548, %v234
      %v581 = vsel %vm517, %v549, %v241
      %v582 = vsel %vm518, %v550, %v248
      %v583 = vsel %vm519, %v551, %v255
      %v584 = vsel %vm520, %v552, %v262
      %v585 = vsel %vm521, %v553, %v269
      %v586 = vsel %vm522, %v554, %v276
      %v587 = vsel %vm523, %v555, %v283
      %v588 = vsel %vm524, %v556, %v290
      %v589 = vsel %vm525, %v557, %v297
      %v590 = vsel %vm526, %v558, %v304
      %v591 = vsel %vm527, %v559, %v311
      %v592 = vsel %vm528, %v560, %v318
      %v593 = vsel %vm529, %v561, %v325
      %v594 = vsel %vm530, %v562, %v332
      %v595 = vsel %vm531, %v563, %v339
      %v596 = vsel %vm532, %v564, %v346
      %v597 = vsel %vm533, %v565, %v353
      %v598 = vsel %vm534, %v566, %v360
      %v599 = vsel %vm535, %v567, %v367
      %v600 = vsel %vm536, %v568, %v374
      %v601 = vsel %vm537, %v569, %v381
      %v602 = vsel %vm538, %v570, %v388
      %v603 = vsel %vm539, %v571, %v395
      %v604 = vsel %vm540, %v572, %v402
      %v605 = vsel %vm541, %v573, %v409
      %v606 = vsel %vm542, %v574, %v416
      %v607 = vsel %vm543, %v575, %v423
      %v608 = vsel %vm544, %v576, %v430
      %v609 = vsel %vm545, %v577, %v437
      %v610 = vsel %vm546, %v578, %v444
      %v611 = vsel %vm547, %v579, %v451
      %vm612 = vcmp.ne.s32.totalorder %v580, 0
      %vm613 = vcmp.ne.s32.totalorder %v581, 0
      %vm614 = vcmp.ne.s32.totalorder %v582, 0
      %vm615 = vcmp.ne.s32.totalorder %v583, 0
      %vm616 = vcmp.ne.s32.totalorder %v584, 0
      %vm617 = vcmp.ne.s32.totalorder %v585, 0
      %vm618 = vcmp.ne.s32.totalorder %v586, 0
      %vm619 = vcmp.ne.s32.totalorder %v587, 0
      %vm620 = vcmp.ne.s32.totalorder %v588, 0
      %vm621 = vcmp.ne.s32.totalorder %v589, 0
      %vm622 = vcmp.ne.s32.totalorder %v590, 0
      %vm623 = vcmp.ne.s32.totalorder %v591, 0
      %vm624 = vcmp.ne.s32.totalorder %v592, 0
      %vm625 = vcmp.ne.s32.totalorder %v593, 0
      %vm626 = vcmp.ne.s32.totalorder %v594, 0
      %vm627 = vcmp.ne.s32.totalorder %v595, 0
      %vm628 = vcmp.ne.s32.totalorder %v596, 0
      %vm629 = vcmp.ne.s32.totalorder %v597, 0
      %vm630 = vcmp.ne.s32.totalorder %v598, 0
      %vm631 = vcmp.ne.s32.totalorder %v599, 0
      %vm632 = vcmp.ne.s32.totalorder %v600, 0
      %vm633 = vcmp.ne.s32.totalorder %v601, 0
      %vm634 = vcmp.ne.s32.totalorder %v602, 0
      %vm635 = vcmp.ne.s32.totalorder %v603, 0
      %vm636 = vcmp.ne.s32.totalorder %v604, 0
      %vm637 = vcmp.ne.s32.totalorder %v605, 0
      %vm638 = vcmp.ne.s32.totalorder %v606, 0
      %vm639 = vcmp.ne.s32.totalorder %v607, 0
      %vm640 = vcmp.ne.s32.totalorder %v608, 0
      %vm641 = vcmp.ne.s32.totalorder %v609, 0
      %vm642 = vcmp.ne.s32.totalorder %v610, 0
      %vm643 = vcmp.ne.s32.totalorder %v611, 0
      %vm644 = vcmp.ne.s32.totalorder %v580, 15
      %vm645 = vcmp.ne.s32.totalorder %v581, 15
      %vm646 = vcmp.ne.s32.totalorder %v582, 15
      %vm647 = vcmp.ne.s32.totalorder %v583, 15
      %vm648 = vcmp.ne.s32.totalorder %v584, 15
      %vm649 = vcmp.ne.s32.totalorder %v585, 15
      %vm650 = vcmp.ne.s32.totalorder %v586, 15
      %vm651 = vcmp.ne.s32.totalorder %v587, 15
      %vm652 = vcmp.ne.s32.totalorder %v588, 15
      %vm653 = vcmp.ne.s32.totalorder %v589, 15
      %vm654 = vcmp.ne.s32.totalorder %v590, 15
      %vm655 = vcmp.ne.s32.totalorder %v591, 15
      %vm656 = vcmp.ne.s32.totalorder %v592, 15
      %vm657 = vcmp.ne.s32.totalorder %v593, 15
      %vm658 = vcmp.ne.s32.totalorder %v594, 15
      %vm659 = vcmp.ne.s32.totalorder %v595, 15
      %vm660 = vcmp.ne.s32.totalorder %v596, 15
      %vm661 = vcmp.ne.s32.totalorder %v597, 15
      %vm662 = vcmp.ne.s32.totalorder %v598, 15
      %vm663 = vcmp.ne.s32.totalorder %v599, 15
      %vm664 = vcmp.ne.s32.totalorder %v600, 15
      %vm665 = vcmp.ne.s32.totalorder %v601, 15
      %vm666 = vcmp.ne.s32.totalorder %v602, 15
      %vm667 = vcmp.ne.s32.totalorder %v603, 15
      %vm668 = vcmp.ne.s32.totalorder %v604, 15
      %vm669 = vcmp.ne.s32.totalorder %v605, 15
      %vm670 = vcmp.ne.s32.totalorder %v606, 15
      %vm671 = vcmp.ne.s32.totalorder %v607, 15
      %vm672 = vcmp.ne.s32.totalorder %v608, 15
      %vm673 = vcmp.ne.s32.totalorder %v609, 15
      %vm674 = vcmp.ne.s32.totalorder %v610, 15
      %vm675 = vcmp.ne.s32.totalorder %v611, 15
      %s676 = smul.u32 %s19, 256
      %s677 = scalar_lea.vmem %s183, %s676
      %v678 = vld [vmem:[%s677] sm:$0xff]
      %v679 = vld [vmem:[%s677 + $0x8] sm:$0xff]
      %v680 = vld [vmem:[%s677 + $0x10] sm:$0xff]
      %v681 = vld [vmem:[%s677 + $0x18] sm:$0xff]
      %v682 = vld [vmem:[%s677 + $0x20] sm:$0xff]
      %v683 = vld [vmem:[%s677 + $0x28] sm:$0xff]
      %v684 = vld [vmem:[%s677 + $0x30] sm:$0xff]
      %v685 = vld [vmem:[%s677 + $0x38] sm:$0xff]
      %v686 = vld [vmem:[%s677 + $0x40] sm:$0xff]
      %v687 = vld [vmem:[%s677 + $0x48] sm:$0xff]
      %v688 = vld [vmem:[%s677 + $0x50] sm:$0xff]
      %v689 = vld [vmem:[%s677 + $0x58] sm:$0xff]
      %v690 = vld [vmem:[%s677 + $0x60] sm:$0xff]
      %v691 = vld [vmem:[%s677 + $0x68] sm:$0xff]
      %v692 = vld [vmem:[%s677 + $0x70] sm:$0xff]
      %v693 = vld [vmem:[%s677 + $0x78] sm:$0xff]
      %v694 = vld [vmem:[%s677 + $0x80] sm:$0xff]
      %v695 = vld [vmem:[%s677 + $0x88] sm:$0xff]
      %v696 = vld [vmem:[%s677 + $0x90] sm:$0xff]
      %v697 = vld [vmem:[%s677 + $0x98] sm:$0xff]
      %v698 = vld [vmem:[%s677 + $0xa0] sm:$0xff]
      %v699 = vld [vmem:[%s677 + $0xa8] sm:$0xff]
      %v700 = vld [vmem:[%s677 + $0xb0] sm:$0xff]
      %v701 = vld [vmem:[%s677 + $0xb8] sm:$0xff]
      %v702 = vld [vmem:[%s677 + $0xc0] sm:$0xff]
      %v703 = vld [vmem:[%s677 + $0xc8] sm:$0xff]
      %v704 = vld [vmem:[%s677 + $0xd0] sm:$0xff]
      %v705 = vld [vmem:[%s677 + $0xd8] sm:$0xff]
      %v706 = vld [vmem:[%s677 + $0xe0] sm:$0xff]
      %v707 = vld [vmem:[%s677 + $0xe8] sm:$0xff]
      %v708 = vld [vmem:[%s677 + $0xf0] sm:$0xff]
      %v709 = vld [vmem:[%s677 + $0xf8] sm:$0xff]
      %v710 = vsel %vm612, 1, 0
      %v711 = vsel %vm613, 1, 0
      %v712 = vsel %vm614, 1, 0
      %v713 = vsel %vm615, 1, 0
      %v714 = vsel %vm616, 1, 0
      %v715 = vsel %vm617, 1, 0
      %v716 = vsel %vm618, 1, 0
      %v717 = vsel %vm619, 1, 0
      %v718 = vsel %vm620, 1, 0
      %v719 = vsel %vm621, 1, 0
      %v720 = vsel %vm622, 1, 0
      %v721 = vsel %vm623, 1, 0
      %v722 = vsel %vm624, 1, 0
      %v723 = vsel %vm625, 1, 0
      %v724 = vsel %vm626, 1, 0
      %v725 = vsel %vm627, 1, 0
      %v726 = vsel %vm628, 1, 0
      %v727 = vsel %vm629, 1, 0
      %v728 = vsel %vm630, 1, 0
      %v729 = vsel %vm631, 1, 0
      %v730 = vsel %vm632, 1, 0
      %v731 = vsel %vm633, 1, 0
      %v732 = vsel %vm634, 1, 0
      %v733 = vsel %vm635, 1, 0
      %v734 = vsel %vm636, 1, 0
      %v735 = vsel %vm637, 1, 0
      %v736 = vsel %vm638, 1, 0
      %v737 = vsel %vm639, 1, 0
      %v738 = vsel %vm640, 1, 0
      %v739 = vsel %vm641, 1, 0
      %v740 = vsel %vm642, 1, 0
      %v741 = vsel %vm643, 1, 0
      %vm742 = vcmp.eq.s32.totalorder %v710, 1
      %vm743 = vcmp.eq.s32.totalorder %v711, 1
      %vm744 = vcmp.eq.s32.totalorder %v712, 1
      %vm745 = vcmp.eq.s32.totalorder %v713, 1
      %vm746 = vcmp.eq.s32.totalorder %v714, 1
      %vm747 = vcmp.eq.s32.totalorder %v715, 1
      %vm748 = vcmp.eq.s32.totalorder %v716, 1
      %vm749 = vcmp.eq.s32.totalorder %v717, 1
      %vm750 = vcmp.eq.s32.totalorder %v718, 1
      %vm751 = vcmp.eq.s32.totalorder %v719, 1
      %vm752 = vcmp.eq.s32.totalorder %v720, 1
      %vm753 = vcmp.eq.s32.totalorder %v721, 1
      %vm754 = vcmp.eq.s32.totalorder %v722, 1
      %vm755 = vcmp.eq.s32.totalorder %v723, 1
      %vm756 = vcmp.eq.s32.totalorder %v724, 1
      %vm757 = vcmp.eq.s32.totalorder %v725, 1
      %vm758 = vcmp.eq.s32.totalorder %v726, 1
      %vm759 = vcmp.eq.s32.totalorder %v727, 1
      %vm760 = vcmp.eq.s32.totalorder %v728, 1
      %vm761 = vcmp.eq.s32.totalorder %v729, 1
      %vm762 = vcmp.eq.s32.totalorder %v730, 1
      %vm763 = vcmp.eq.s32.totalorder %v731, 1
      %vm764 = vcmp.eq.s32.totalorder %v732, 1
      %vm765 = vcmp.eq.s32.totalorder %v733, 1
      %vm766 = vcmp.eq.s32.totalorder %v734, 1
      %vm767 = vcmp.eq.s32.totalorder %v735, 1
      %vm768 = vcmp.eq.s32.totalorder %v736, 1
      %vm769 = vcmp.eq.s32.totalorder %v737, 1
      %vm770 = vcmp.eq.s32.totalorder %v738, 1
      %vm771 = vcmp.eq.s32.totalorder %v739, 1
      %vm772 = vcmp.eq.s32.totalorder %v740, 1
      %vm773 = vcmp.eq.s32.totalorder %v741, 1
      %v774 = vsel %vm742, %v678, 0.0
      %v775 = vsel %vm743, %v679, 0.0
      %v776 = vsel %vm744, %v680, 0.0
      %v777 = vsel %vm745, %v681, 0.0
      %v778 = vsel %vm746, %v682, 0.0
      %v779 = vsel %vm747, %v683, 0.0
      %v780 = vsel %vm748, %v684, 0.0
      %v781 = vsel %vm749, %v685, 0.0
      %v782 = vsel %vm750, %v686, 0.0
      %v783 = vsel %vm751, %v687, 0.0
      %v784 = vsel %vm752, %v688, 0.0
      %v785 = vsel %vm753, %v689, 0.0
      %v786 = vsel %vm754, %v690, 0.0
      %v787 = vsel %vm755, %v691, 0.0
      %v788 = vsel %vm756, %v692, 0.0
      %v789 = vsel %vm757, %v693, 0.0
      %v790 = vsel %vm758, %v694, 0.0
      %v791 = vsel %vm759, %v695, 0.0
      %v792 = vsel %vm760, %v696, 0.0
      %v793 = vsel %vm761, %v697, 0.0
      %v794 = vsel %vm762, %v698, 0.0
      %v795 = vsel %vm763, %v699, 0.0
      %v796 = vsel %vm764, %v700, 0.0
      %v797 = vsel %vm765, %v701, 0.0
      %v798 = vsel %vm766, %v702, 0.0
      %v799 = vsel %vm767, %v703, 0.0
      %v800 = vsel %vm768, %v704, 0.0
      %v801 = vsel %vm769, %v705, 0.0
      %v802 = vsel %vm770, %v706, 0.0
      %v803 = vsel %vm771, %v707, 0.0
      %v804 = vsel %vm772, %v708, 0.0
      %v805 = vsel %vm773, %v709, 0.0
      %vm806 = vcmask 31744
      %807 = vst.msk [vmem:[#allocation2] sm:$0xff] %vm806, %v774
      %808 = vst.msk [vmem:[#allocation2 + $0x8] sm:$0xff] %vm806, %v775
      %809 = vst.msk [vmem:[#allocation2 + $0x10] sm:$0xff] %vm806, %v776
      %810 = vst.msk [vmem:[#allocation2 + $0x18] sm:$0xff] %vm806, %v777
      %811 = vst.msk [vmem:[#allocation2 + $0x20] sm:$0xff] %vm806, %v778
      %812 = vst.msk [vmem:[#allocation2 + $0x28] sm:$0xff] %vm806, %v779
      %813 = vst.msk [vmem:[#allocation2 + $0x30] sm:$0xff] %vm806, %v780
      %814 = vst.msk [vmem:[#allocation2 + $0x38] sm:$0xff] %vm806, %v781
      %815 = vst.msk [vmem:[#allocation2 + $0x40] sm:$0xff] %vm806, %v782
      %816 = vst.msk [vmem:[#allocation2 + $0x48] sm:$0xff] %vm806, %v783
      %817 = vst.msk [vmem:[#allocation2 + $0x50] sm:$0xff] %vm806, %v784
      %818 = vst.msk [vmem:[#allocation2 + $0x58] sm:$0xff] %vm806, %v785
      %819 = vst.msk [vmem:[#allocation2 + $0x60] sm:$0xff] %vm806, %v786
      %820 = vst.msk [vmem:[#allocation2 + $0x68] sm:$0xff] %vm806, %v787
      %821 = vst.msk [vmem:[#allocation2 + $0x70] sm:$0xff] %vm806, %v788
      %822 = vst.msk [vmem:[#allocation2 + $0x78] sm:$0xff] %vm806, %v789
      %823 = vst.msk [vmem:[#allocation2 + $0x80] sm:$0xff] %vm806, %v790
      %824 = vst.msk [vmem:[#allocation2 + $0x88] sm:$0xff] %vm806, %v791
      %825 = vst.msk [vmem:[#allocation2 + $0x90] sm:$0xff] %vm806, %v792
      %826 = vst.msk [vmem:[#allocation2 + $0x98] sm:$0xff] %vm806, %v793
      %827 = vst.msk [vmem:[#allocation2 + $0xa0] sm:$0xff] %vm806, %v794
      %828 = vst.msk [vmem:[#allocation2 + $0xa8] sm:$0xff] %vm806, %v795
      %829 = vst.msk [vmem:[#allocation2 + $0xb0] sm:$0xff] %vm806, %v796
      %830 = vst.msk [vmem:[#allocation2 + $0xb8] sm:$0xff] %vm806, %v797
      %831 = vst.msk [vmem:[#allocation2 + $0xc0] sm:$0xff] %vm806, %v798
      %832 = vst.msk [vmem:[#allocation2 + $0xc8] sm:$0xff] %vm806, %v799
      %833 = vst.msk [vmem:[#allocation2 + $0xd0] sm:$0xff] %vm806, %v800
      %834 = vst.msk [vmem:[#allocation2 + $0xd8] sm:$0xff] %vm806, %v801
      %835 = vst.msk [vmem:[#allocation2 + $0xe0] sm:$0xff] %vm806, %v802
      %836 = vst.msk [vmem:[#allocation2 + $0xe8] sm:$0xff] %vm806, %v803
      %837 = vst.msk [vmem:[#allocation2 + $0xf0] sm:$0xff] %vm806, %v804
      %838 = vst.msk [vmem:[#allocation2 + $0xf8] sm:$0xff] %vm806, %v805
      %s839 = sadd.s32 %s676, 1
      %s840 = scalar_lea.vmem %s183, %s839
      %v841 = vld [vmem:[%s840] sm:$0xff]
      %v842 = vld [vmem:[%s840 + $0x8] sm:$0xff]
      %v843 = vld [vmem:[%s840 + $0x10] sm:$0xff]
      %v844 = vld [vmem:[%s840 + $0x18] sm:$0xff]
      %v845 = vld [vmem:[%s840 + $0x20] sm:$0xff]
      %v846 = vld [vmem:[%s840 + $0x28] sm:$0xff]
      %v847 = vld [vmem:[%s840 + $0x30] sm:$0xff]
      %v848 = vld [vmem:[%s840 + $0x38] sm:$0xff]
      %v849 = vld [vmem:[%s840 + $0x40] sm:$0xff]
      %v850 = vld [vmem:[%s840 + $0x48] sm:$0xff]
      %v851 = vld [vmem:[%s840 + $0x50] sm:$0xff]
      %v852 = vld [vmem:[%s840 + $0x58] sm:$0xff]
      %v853 = vld [vmem:[%s840 + $0x60] sm:$0xff]
      %v854 = vld [vmem:[%s840 + $0x68] sm:$0xff]
      %v855 = vld [vmem:[%s840 + $0x70] sm:$0xff]
      %v856 = vld [vmem:[%s840 + $0x78] sm:$0xff]
      %v857 = vld [vmem:[%s840 + $0x80] sm:$0xff]
      %v858 = vld [vmem:[%s840 + $0x88] sm:$0xff]
      %v859 = vld [vmem:[%s840 + $0x90] sm:$0xff]
      %v860 = vld [vmem:[%s840 + $0x98] sm:$0xff]
      %v861 = vld [vmem:[%s840 + $0xa0] sm:$0xff]
      %v862 = vld [vmem:[%s840 + $0xa8] sm:$0xff]
      %v863 = vld [vmem:[%s840 + $0xb0] sm:$0xff]
      %v864 = vld [vmem:[%s840 + $0xb8] sm:$0xff]
      %v865 = vld [vmem:[%s840 + $0xc0] sm:$0xff]
      %v866 = vld [vmem:[%s840 + $0xc8] sm:$0xff]
      %v867 = vld [vmem:[%s840 + $0xd0] sm:$0xff]
      %v868 = vld [vmem:[%s840 + $0xd8] sm:$0xff]
      %v869 = vld [vmem:[%s840 + $0xe0] sm:$0xff]
      %v870 = vld [vmem:[%s840 + $0xe8] sm:$0xff]
      %v871 = vld [vmem:[%s840 + $0xf0] sm:$0xff]
      %v872 = vld [vmem:[%s840 + $0xf8] sm:$0xff]
      %905 = vrot.lane.b32.xlu0 %v841, 4
      %v906 = vpop.permute.xlu0 %905
      %907 = vrot.lane.b32.xlu0 %v842, 4
      %v908 = vpop.permute.xlu0 %907
      %909 = vrot.lane.b32.xlu0 %v843, 4
      %v910 = vpop.permute.xlu0 %909
      %911 = vrot.lane.b32.xlu0 %v844, 4
      %v912 = vpop.permute.xlu0 %911
      %913 = vrot.lane.b32.xlu0 %v845, 4
      %v914 = vpop.permute.xlu0 %913
      %915 = vrot.lane.b32.xlu0 %v846, 4
      %v916 = vpop.permute.xlu0 %915
      %917 = vrot.lane.b32.xlu0 %v847, 4
      %v918 = vpop.permute.xlu0 %917
      %919 = vrot.lane.b32.xlu0 %v848, 4
      %v920 = vpop.permute.xlu0 %919
      %921 = vrot.lane.b32.xlu0 %v849, 4
      %v922 = vpop.permute.xlu0 %921
      %923 = vrot.lane.b32.xlu0 %v850, 4
      %v924 = vpop.permute.xlu0 %923
      %925 = vrot.lane.b32.xlu0 %v851, 4
      %v926 = vpop.permute.xlu0 %925
      %927 = vrot.lane.b32.xlu0 %v852, 4
      %v928 = vpop.permute.xlu0 %927
      %929 = vrot.lane.b32.xlu0 %v853, 4
      %v930 = vpop.permute.xlu0 %929
      %931 = vrot.lane.b32.xlu0 %v854, 4
      %v932 = vpop.permute.xlu0 %931
      %933 = vrot.lane.b32.xlu0 %v855, 4
      %v934 = vpop.permute.xlu0 %933
      %935 = vrot.lane.b32.xlu0 %v856, 4
      %v936 = vpop.permute.xlu0 %935
      %937 = vrot.lane.b32.xlu0 %v857, 4
      %v938 = vpop.permute.xlu0 %937
      %939 = vrot.lane.b32.xlu0 %v858, 4
      %v940 = vpop.permute.xlu0 %939
      %941 = vrot.lane.b32.xlu0 %v859, 4
      %v942 = vpop.permute.xlu0 %941
      %943 = vrot.lane.b32.xlu0 %v860, 4
      %v944 = vpop.permute.xlu0 %943
      %945 = vrot.lane.b32.xlu0 %v861, 4
      %v946 = vpop.permute.xlu0 %945
      %947 = vrot.lane.b32.xlu0 %v862, 4
      %v948 = vpop.permute.xlu0 %947
      %949 = vrot.lane.b32.xlu0 %v863, 4
      %v950 = vpop.permute.xlu0 %949
      %951 = vrot.lane.b32.xlu0 %v864, 4
      %v952 = vpop.permute.xlu0 %951
      %953 = vrot.lane.b32.xlu0 %v865, 4
      %v954 = vpop.permute.xlu0 %953
      %955 = vrot.lane.b32.xlu0 %v866, 4
      %v956 = vpop.permute.xlu0 %955
      %957 = vrot.lane.b32.xlu0 %v867, 4
      %v958 = vpop.permute.xlu0 %957
      %959 = vrot.lane.b32.xlu0 %v868, 4
      %v960 = vpop.permute.xlu0 %959
      %961 = vrot.lane.b32.xlu0 %v869, 4
      %v962 = vpop.permute.xlu0 %961
      %963 = vrot.lane.b32.xlu0 %v870, 4
      %v964 = vpop.permute.xlu0 %963
      %965 = vrot.lane.b32.xlu0 %v871, 4
      %v966 = vpop.permute.xlu0 %965
      %967 = vrot.lane.b32.xlu0 %v872, 4
      %v968 = vpop.permute.xlu0 %967
      %vm1001 = vcmask 64544
      %1002 = vst.msk [vmem:[#allocation2] sm:$0xff] %vm1001, %v906
      %1003 = vst.msk [vmem:[#allocation2 + $0x8] sm:$0xff] %vm1001, %v908
      %1004 = vst.msk [vmem:[#allocation2 + $0x10] sm:$0xff] %vm1001, %v910
      %1005 = vst.msk [vmem:[#allocation2 + $0x18] sm:$0xff] %vm1001, %v912
      %1006 = vst.msk [vmem:[#allocation2 + $0x20] sm:$0xff] %vm1001, %v914
      %1007 = vst.msk [vmem:[#allocation2 + $0x28] sm:$0xff] %vm1001, %v916
      %1008 = vst.msk [vmem:[#allocation2 + $0x30] sm:$0xff] %vm1001, %v918
      %1009 = vst.msk [vmem:[#allocation2 + $0x38] sm:$0xff] %vm1001, %v920
      %1010 = vst.msk [vmem:[#allocation2 + $0x40] sm:$0xff] %vm1001, %v922
      %1011 = vst.msk [vmem:[#allocation2 + $0x48] sm:$0xff] %vm1001, %v924
      %1012 = vst.msk [vmem:[#allocation2 + $0x50] sm:$0xff] %vm1001, %v926
      %1013 = vst.msk [vmem:[#allocation2 + $0x58] sm:$0xff] %vm1001, %v928
      %1014 = vst.msk [vmem:[#allocation2 + $0x60] sm:$0xff] %vm1001, %v930
      %1015 = vst.msk [vmem:[#allocation2 + $0x68] sm:$0xff] %vm1001, %v932
      %1016 = vst.msk [vmem:[#allocation2 + $0x70] sm:$0xff] %vm1001, %v934
      %1017 = vst.msk [vmem:[#allocation2 + $0x78] sm:$0xff] %vm1001, %v936
      %1018 = vst.msk [vmem:[#allocation2 + $0x80] sm:$0xff] %vm1001, %v938
      %1019 = vst.msk [vmem:[#allocation2 + $0x88] sm:$0xff] %vm1001, %v940
      %1020 = vst.msk [vmem:[#allocation2 + $0x90] sm:$0xff] %vm1001, %v942
      %1021 = vst.msk [vmem:[#allocation2 + $0x98] sm:$0xff] %vm1001, %v944
      %1022 = vst.msk [vmem:[#allocation2 + $0xa0] sm:$0xff] %vm1001, %v946
      %1023 = vst.msk [vmem:[#allocation2 + $0xa8] sm:$0xff] %vm1001, %v948
      %1024 = vst.msk [vmem:[#allocation2 + $0xb0] sm:$0xff] %vm1001, %v950
      %1025 = vst.msk [vmem:[#allocation2 + $0xb8] sm:$0xff] %vm1001, %v952
      %1026 = vst.msk [vmem:[#allocation2 + $0xc0] sm:$0xff] %vm1001, %v954
      %1027 = vst.msk [vmem:[#allocation2 + $0xc8] sm:$0xff] %vm1001, %v956
      %1028 = vst.msk [vmem:[#allocation2 + $0xd0] sm:$0xff] %vm1001, %v958
      %1029 = vst.msk [vmem:[#allocation2 + $0xd8] sm:$0xff] %vm1001, %v960
      %1030 = vst.msk [vmem:[#allocation2 + $0xe0] sm:$0xff] %vm1001, %v962
      %1031 = vst.msk [vmem:[#allocation2 + $0xe8] sm:$0xff] %vm1001, %v964
      %1032 = vst.msk [vmem:[#allocation2 + $0xf0] sm:$0xff] %vm1001, %v966
      %1033 = vst.msk [vmem:[#allocation2 + $0xf8] sm:$0xff] %vm1001, %v968
      %s1034 = sadd.s32 %s676, 2
      %s1035 = scalar_lea.vmem %s183, %s1034
      %v1036 = vld [vmem:[%s1035] sm:$0xff]
      %v1037 = vld [vmem:[%s1035 + $0x8] sm:$0xff]
      %v1038 = vld [vmem:[%s1035 + $0x10] sm:$0xff]
      %v1039 = vld [vmem:[%s1035 + $0x18] sm:$0xff]
      %v1040 = vld [vmem:[%s1035 + $0x20] sm:$0xff]
      %v1041 = vld [vmem:[%s1035 + $0x28] sm:$0xff]
      %v1042 = vld [vmem:[%s1035 + $0x30] sm:$0xff]
      %v1043 = vld [vmem:[%s1035 + $0x38] sm:$0xff]
      %v1044 = vld [vmem:[%s1035 + $0x40] sm:$0xff]
      %v1045 = vld [vmem:[%s1035 + $0x48] sm:$0xff]
      %v1046 = vld [vmem:[%s1035 + $0x50] sm:$0xff]
      %v1047 = vld [vmem:[%s1035 + $0x58] sm:$0xff]
      %v1048 = vld [vmem:[%s1035 + $0x60] sm:$0xff]
      %v1049 = vld [vmem:[%s1035 + $0x68] sm:$0xff]
      %v1050 = vld [vmem:[%s1035 + $0x70] sm:$0xff]
      %v1051 = vld [vmem:[%s1035 + $0x78] sm:$0xff]
      %v1052 = vld [vmem:[%s1035 + $0x80] sm:$0xff]
      %v1053 = vld [vmem:[%s1035 + $0x88] sm:$0xff]
      %v1054 = vld [vmem:[%s1035 + $0x90] sm:$0xff]
      %v1055 = vld [vmem:[%s1035 + $0x98] sm:$0xff]
      %v1056 = vld [vmem:[%s1035 + $0xa0] sm:$0xff]
      %v1057 = vld [vmem:[%s1035 + $0xa8] sm:$0xff]
      %v1058 = vld [vmem:[%s1035 + $0xb0] sm:$0xff]
      %v1059 = vld [vmem:[%s1035 + $0xb8] sm:$0xff]
      %v1060 = vld [vmem:[%s1035 + $0xc0] sm:$0xff]
      %v1061 = vld [vmem:[%s1035 + $0xc8] sm:$0xff]
      %v1062 = vld [vmem:[%s1035 + $0xd0] sm:$0xff]
      %v1063 = vld [vmem:[%s1035 + $0xd8] sm:$0xff]
      %v1064 = vld [vmem:[%s1035 + $0xe0] sm:$0xff]
      %v1065 = vld [vmem:[%s1035 + $0xe8] sm:$0xff]
      %v1066 = vld [vmem:[%s1035 + $0xf0] sm:$0xff]
      %v1067 = vld [vmem:[%s1035 + $0xf8] sm:$0xff]
      %v1068 = vsel %vm644, 1, 0
      %v1069 = vsel %vm645, 1, 0
      %v1070 = vsel %vm646, 1, 0
      %v1071 = vsel %vm647, 1, 0
      %v1072 = vsel %vm648, 1, 0
      %v1073 = vsel %vm649, 1, 0
      %v1074 = vsel %vm650, 1, 0
      %v1075 = vsel %vm651, 1, 0
      %v1076 = vsel %vm652, 1, 0
      %v1077 = vsel %vm653, 1, 0
      %v1078 = vsel %vm654, 1, 0
      %v1079 = vsel %vm655, 1, 0
      %v1080 = vsel %vm656, 1, 0
      %v1081 = vsel %vm657, 1, 0
      %v1082 = vsel %vm658, 1, 0
      %v1083 = vsel %vm659, 1, 0
      %v1084 = vsel %vm660, 1, 0
      %v1085 = vsel %vm661, 1, 0
      %v1086 = vsel %vm662, 1, 0
      %v1087 = vsel %vm663, 1, 0
      %v1088 = vsel %vm664, 1, 0
      %v1089 = vsel %vm665, 1, 0
      %v1090 = vsel %vm666, 1, 0
      %v1091 = vsel %vm667, 1, 0
      %v1092 = vsel %vm668, 1, 0
      %v1093 = vsel %vm669, 1, 0
      %v1094 = vsel %vm670, 1, 0
      %v1095 = vsel %vm671, 1, 0
      %v1096 = vsel %vm672, 1, 0
      %v1097 = vsel %vm673, 1, 0
      %v1098 = vsel %vm674, 1, 0
      %v1099 = vsel %vm675, 1, 0
      %vm1100 = vcmp.eq.s32.totalorder %v1068, 1
      %vm1101 = vcmp.eq.s32.totalorder %v1069, 1
      %vm1102 = vcmp.eq.s32.totalorder %v1070, 1
      %vm1103 = vcmp.eq.s32.totalorder %v1071, 1
      %vm1104 = vcmp.eq.s32.totalorder %v1072, 1
      %vm1105 = vcmp.eq.s32.totalorder %v1073, 1
      %vm1106 = vcmp.eq.s32.totalorder %v1074, 1
      %vm1107 = vcmp.eq.s32.totalorder %v1075, 1
      %vm1108 = vcmp.eq.s32.totalorder %v1076, 1
      %vm1109 = vcmp.eq.s32.totalorder %v1077, 1
      %vm1110 = vcmp.eq.s32.totalorder %v1078, 1
      %vm1111 = vcmp.eq.s32.totalorder %v1079, 1
      %vm1112 = vcmp.eq.s32.totalorder %v1080, 1
      %vm1113 = vcmp.eq.s32.totalorder %v1081, 1
      %vm1114 = vcmp.eq.s32.totalorder %v1082, 1
      %vm1115 = vcmp.eq.s32.totalorder %v1083, 1
      %vm1116 = vcmp.eq.s32.totalorder %v1084, 1
      %vm1117 = vcmp.eq.s32.totalorder %v1085, 1
      %vm1118 = vcmp.eq.s32.totalorder %v1086, 1
      %vm1119 = vcmp.eq.s32.totalorder %v1087, 1
      %vm1120 = vcmp.eq.s32.totalorder %v1088, 1
      %vm1121 = vcmp.eq.s32.totalorder %v1089, 1
      %vm1122 = vcmp.eq.s32.totalorder %v1090, 1
      %vm1123 = vcmp.eq.s32.totalorder %v1091, 1
      %vm1124 = vcmp.eq.s32.totalorder %v1092, 1
      %vm1125 = vcmp.eq.s32.totalorder %v1093, 1
      %vm1126 = vcmp.eq.s32.totalorder %v1094, 1
      %vm1127 = vcmp.eq.s32.totalorder %v1095, 1
      %vm1128 = vcmp.eq.s32.totalorder %v1096, 1
      %vm1129 = vcmp.eq.s32.totalorder %v1097, 1
      %vm1130 = vcmp.eq.s32.totalorder %v1098, 1
      %vm1131 = vcmp.eq.s32.totalorder %v1099, 1
      %v1132 = vsel %vm1100, %v1036, 0.0
      %v1133 = vsel %vm1101, %v1037, 0.0
      %v1134 = vsel %vm1102, %v1038, 0.0
      %v1135 = vsel %vm1103, %v1039, 0.0
      %v1136 = vsel %vm1104, %v1040, 0.0
      %v1137 = vsel %vm1105, %v1041, 0.0
      %v1138 = vsel %vm1106, %v1042, 0.0
      %v1139 = vsel %vm1107, %v1043, 0.0
      %v1140 = vsel %vm1108, %v1044, 0.0
      %v1141 = vsel %vm1109, %v1045, 0.0
      %v1142 = vsel %vm1110, %v1046, 0.0
      %v1143 = vsel %vm1111, %v1047, 0.0
      %v1144 = vsel %vm1112, %v1048, 0.0
      %v1145 = vsel %vm1113, %v1049, 0.0
      %v1146 = vsel %vm1114, %v1050, 0.0
      %v1147 = vsel %vm1115, %v1051, 0.0
      %v1148 = vsel %vm1116, %v1052, 0.0
      %v1149 = vsel %vm1117, %v1053, 0.0
      %v1150 = vsel %vm1118, %v1054, 0.0
      %v1151 = vsel %vm1119, %v1055, 0.0
      %v1152 = vsel %vm1120, %v1056, 0.0
      %v1153 = vsel %vm1121, %v1057, 0.0
      %v1154 = vsel %vm1122, %v1058, 0.0
      %v1155 = vsel %vm1123, %v1059, 0.0
      %v1156 = vsel %vm1124, %v1060, 0.0
      %v1157 = vsel %vm1125, %v1061, 0.0
      %v1158 = vsel %vm1126, %v1062, 0.0
      %v1159 = vsel %vm1127, %v1063, 0.0
      %v1160 = vsel %vm1128, %v1064, 0.0
      %v1161 = vsel %vm1129, %v1065, 0.0
      %v1162 = vsel %vm1130, %v1066, 0.0
      %v1163 = vsel %vm1131, %v1067, 0.0
      %1196 = vrot.lane.b32.xlu0 %v1132, 8
      %v1197 = vpop.permute.xlu0 %1196
      %1198 = vrot.lane.b32.xlu0 %v1133, 8
      %v1199 = vpop.permute.xlu0 %1198
      %1200 = vrot.lane.b32.xlu0 %v1134, 8
      %v1201 = vpop.permute.xlu0 %1200
      %1202 = vrot.lane.b32.xlu0 %v1135, 8
      %v1203 = vpop.permute.xlu0 %1202
      %1204 = vrot.lane.b32.xlu0 %v1136, 8
      %v1205 = vpop.permute.xlu0 %1204
      %1206 = vrot.lane.b32.xlu0 %v1137, 8
      %v1207 = vpop.permute.xlu0 %1206
      %1208 = vrot.lane.b32.xlu0 %v1138, 8
      %v1209 = vpop.permute.xlu0 %1208
      %1210 = vrot.lane.b32.xlu0 %v1139, 8
      %v1211 = vpop.permute.xlu0 %1210
      %1212 = vrot.lane.b32.xlu0 %v1140, 8
      %v1213 = vpop.permute.xlu0 %1212
      %1214 = vrot.lane.b32.xlu0 %v1141, 8
      %v1215 = vpop.permute.xlu0 %1214
      %1216 = vrot.lane.b32.xlu0 %v1142, 8
      %v1217 = vpop.permute.xlu0 %1216
      %1218 = vrot.lane.b32.xlu0 %v1143, 8
      %v1219 = vpop.permute.xlu0 %1218
      %1220 = vrot.lane.b32.xlu0 %v1144, 8
      %v1221 = vpop.permute.xlu0 %1220
      %1222 = vrot.lane.b32.xlu0 %v1145, 8
      %v1223 = vpop.permute.xlu0 %1222
      %1224 = vrot.lane.b32.xlu0 %v1146, 8
      %v1225 = vpop.permute.xlu0 %1224
      %1226 = vrot.lane.b32.xlu0 %v1147, 8
      %v1227 = vpop.permute.xlu0 %1226
      %1228 = vrot.lane.b32.xlu0 %v1148, 8
      %v1229 = vpop.permute.xlu0 %1228
      %1230 = vrot.lane.b32.xlu0 %v1149, 8
      %v1231 = vpop.permute.xlu0 %1230
      %1232 = vrot.lane.b32.xlu0 %v1150, 8
      %v1233 = vpop.permute.xlu0 %1232
      %1234 = vrot.lane.b32.xlu0 %v1151, 8
      %v1235 = vpop.permute.xlu0 %1234
      %1236 = vrot.lane.b32.xlu0 %v1152, 8
      %v1237 = vpop.permute.xlu0 %1236
      %1238 = vrot.lane.b32.xlu0 %v1153, 8
      %v1239 = vpop.permute.xlu0 %1238
      %1240 = vrot.lane.b32.xlu0 %v1154, 8
      %v1241 = vpop.permute.xlu0 %1240
      %1242 = vrot.lane.b32.xlu0 %v1155, 8
      %v1243 = vpop.permute.xlu0 %1242
      %1244 = vrot.lane.b32.xlu0 %v1156, 8
      %v1245 = vpop.permute.xlu0 %1244
      %1246 = vrot.lane.b32.xlu0 %v1157, 8
      %v1247 = vpop.permute.xlu0 %1246
      %1248 = vrot.lane.b32.xlu0 %v1158, 8
      %v1249 = vpop.permute.xlu0 %1248
      %1250 = vrot.lane.b32.xlu0 %v1159, 8
      %v1251 = vpop.permute.xlu0 %1250
      %1252 = vrot.lane.b32.xlu0 %v1160, 8
      %v1253 = vpop.permute.xlu0 %1252
      %1254 = vrot.lane.b32.xlu0 %v1161, 8
      %v1255 = vpop.permute.xlu0 %1254
      %1256 = vrot.lane.b32.xlu0 %v1162, 8
      %v1257 = vpop.permute.xlu0 %1256
      %1258 = vrot.lane.b32.xlu0 %v1163, 8
      %v1259 = vpop.permute.xlu0 %1258
      %vm1292 = vcmask 97344
      %1293 = vst.msk [vmem:[#allocation2] sm:$0xff] %vm1292, %v1197
      %1294 = vst.msk [vmem:[#allocation2 + $0x8] sm:$0xff] %vm1292, %v1199
      %1295 = vst.msk [vmem:[#allocation2 + $0x10] sm:$0xff] %vm1292, %v1201
      %1296 = vst.msk [vmem:[#allocation2 + $0x18] sm:$0xff] %vm1292, %v1203
      %1297 = vst.msk [vmem:[#allocation2 + $0x20] sm:$0xff] %vm1292, %v1205
      %1298 = vst.msk [vmem:[#allocation2 + $0x28] sm:$0xff] %vm1292, %v1207
      %1299 = vst.msk [vmem:[#allocation2 + $0x30] sm:$0xff] %vm1292, %v1209
      %1300 = vst.msk [vmem:[#allocation2 + $0x38] sm:$0xff] %vm1292, %v1211
      %1301 = vst.msk [vmem:[#allocation2 + $0x40] sm:$0xff] %vm1292, %v1213
      %1302 = vst.msk [vmem:[#allocation2 + $0x48] sm:$0xff] %vm1292, %v1215
      %1303 = vst.msk [vmem:[#allocation2 + $0x50] sm:$0xff] %vm1292, %v1217
      %1304 = vst.msk [vmem:[#allocation2 + $0x58] sm:$0xff] %vm1292, %v1219
      %1305 = vst.msk [vmem:[#allocation2 + $0x60] sm:$0xff] %vm1292, %v1221
      %1306 = vst.msk [vmem:[#allocation2 + $0x68] sm:$0xff] %vm1292, %v1223
      %1307 = vst.msk [vmem:[#allocation2 + $0x70] sm:$0xff] %vm1292, %v1225
      %1308 = vst.msk [vmem:[#allocation2 + $0x78] sm:$0xff] %vm1292, %v1227
      %1309 = vst.msk [vmem:[#allocation2 + $0x80] sm:$0xff] %vm1292, %v1229
      %1310 = vst.msk [vmem:[#allocation2 + $0x88] sm:$0xff] %vm1292, %v1231
      %1311 = vst.msk [vmem:[#allocation2 + $0x90] sm:$0xff] %vm1292, %v1233
      %1312 = vst.msk [vmem:[#allocation2 + $0x98] sm:$0xff] %vm1292, %v1235
      %1313 = vst.msk [vmem:[#allocation2 + $0xa0] sm:$0xff] %vm1292, %v1237
      %1314 = vst.msk [vmem:[#allocation2 + $0xa8] sm:$0xff] %vm1292, %v1239
      %1315 = vst.msk [vmem:[#allocation2 + $0xb0] sm:$0xff] %vm1292, %v1241
      %1316 = vst.msk [vmem:[#allocation2 + $0xb8] sm:$0xff] %vm1292, %v1243
      %1317 = vst.msk [vmem:[#allocation2 + $0xc0] sm:$0xff] %vm1292, %v1245
      %1318 = vst.msk [vmem:[#allocation2 + $0xc8] sm:$0xff] %vm1292, %v1247
      %1319 = vst.msk [vmem:[#allocation2 + $0xd0] sm:$0xff] %vm1292, %v1249
      %1320 = vst.msk [vmem:[#allocation2 + $0xd8] sm:$0xff] %vm1292, %v1251
      %1321 = vst.msk [vmem:[#allocation2 + $0xe0] sm:$0xff] %vm1292, %v1253
      %1322 = vst.msk [vmem:[#allocation2 + $0xe8] sm:$0xff] %vm1292, %v1255
      %1323 = vst.msk [vmem:[#allocation2 + $0xf0] sm:$0xff] %vm1292, %v1257
      %1324 = vst.msk [vmem:[#allocation2 + $0xf8] sm:$0xff] %vm1292, %v1259
      %s1325 = sadd.s32 %s194, 1
      %s1326 = smul.u32 %s1325, 16
      %s1327 = scalar_lea.vmem %s183, %s1326
      %v1328 = vld [vmem:[%s1327] sm:$0xff]
      %v1329 = vld [vmem:[%s1327 + $0x8] sm:$0xff]
      %v1330 = vld [vmem:[%s1327 + $0x10] sm:$0xff]
      %v1331 = vld [vmem:[%s1327 + $0x18] sm:$0xff]
      %v1332 = vld [vmem:[%s1327 + $0x20] sm:$0xff]
      %v1333 = vld [vmem:[%s1327 + $0x28] sm:$0xff]
      %v1334 = vld [vmem:[%s1327 + $0x30] sm:$0xff]
      %v1335 = vld [vmem:[%s1327 + $0x38] sm:$0xff]
      %v1336 = vld [vmem:[%s1327 + $0x40] sm:$0xff]
      %v1337 = vld [vmem:[%s1327 + $0x48] sm:$0xff]
      %v1338 = vld [vmem:[%s1327 + $0x50] sm:$0xff]
      %v1339 = vld [vmem:[%s1327 + $0x58] sm:$0xff]
      %v1340 = vld [vmem:[%s1327 + $0x60] sm:$0xff]
      %v1341 = vld [vmem:[%s1327 + $0x68] sm:$0xff]
      %v1342 = vld [vmem:[%s1327 + $0x70] sm:$0xff]
      %v1343 = vld [vmem:[%s1327 + $0x78] sm:$0xff]
      %v1344 = vld [vmem:[%s1327 + $0x80] sm:$0xff]
      %v1345 = vld [vmem:[%s1327 + $0x88] sm:$0xff]
      %v1346 = vld [vmem:[%s1327 + $0x90] sm:$0xff]
      %v1347 = vld [vmem:[%s1327 + $0x98] sm:$0xff]
      %v1348 = vld [vmem:[%s1327 + $0xa0] sm:$0xff]
      %v1349 = vld [vmem:[%s1327 + $0xa8] sm:$0xff]
      %v1350 = vld [vmem:[%s1327 + $0xb0] sm:$0xff]
      %v1351 = vld [vmem:[%s1327 + $0xb8] sm:$0xff]
      %v1352 = vld [vmem:[%s1327 + $0xc0] sm:$0xff]
      %v1353 = vld [vmem:[%s1327 + $0xc8] sm:$0xff]
      %v1354 = vld [vmem:[%s1327 + $0xd0] sm:$0xff]
      %v1355 = vld [vmem:[%s1327 + $0xd8] sm:$0xff]
      %v1356 = vld [vmem:[%s1327 + $0xe0] sm:$0xff]
      %v1357 = vld [vmem:[%s1327 + $0xe8] sm:$0xff]
      %v1358 = vld [vmem:[%s1327 + $0xf0] sm:$0xff]
      %v1359 = vld [vmem:[%s1327 + $0xf8] sm:$0xff]
      %v1360 = vsel %vm742, %v1328, 0.0
      %v1361 = vsel %vm743, %v1329, 0.0
      %v1362 = vsel %vm744, %v1330, 0.0
      %v1363 = vsel %vm745, %v1331, 0.0
      %v1364 = vsel %vm746, %v1332, 0.0
      %v1365 = vsel %vm747, %v1333, 0.0
      %v1366 = vsel %vm748, %v1334, 0.0
      %v1367 = vsel %vm749, %v1335, 0.0
      %v1368 = vsel %vm750, %v1336, 0.0
      %v1369 = vsel %vm751, %v1337, 0.0
      %v1370 = vsel %vm752, %v1338, 0.0
      %v1371 = vsel %vm753, %v1339, 0.0
      %v1372 = vsel %vm754, %v1340, 0.0
      %v1373 = vsel %vm755, %v1341, 0.0
      %v1374 = vsel %vm756, %v1342, 0.0
      %v1375 = vsel %vm757, %v1343, 0.0
      %v1376 = vsel %vm758, %v1344, 0.0
      %v1377 = vsel %vm759, %v1345, 0.0
      %v1378 = vsel %vm760, %v1346, 0.0
      %v1379 = vsel %vm761, %v1347, 0.0
      %v1380 = vsel %vm762, %v1348, 0.0
      %v1381 = vsel %vm763, %v1349, 0.0
      %v1382 = vsel %vm764, %v1350, 0.0
      %v1383 = vsel %vm765, %v1351, 0.0
      %v1384 = vsel %vm766, %v1352, 0.0
      %v1385 = vsel %vm767, %v1353, 0.0
      %v1386 = vsel %vm768, %v1354, 0.0
      %v1387 = vsel %vm769, %v1355, 0.0
      %v1388 = vsel %vm770, %v1356, 0.0
      %v1389 = vsel %vm771, %v1357, 0.0
      %v1390 = vsel %vm772, %v1358, 0.0
      %v1391 = vsel %vm773, %v1359, 0.0
      %1424 = vrot.lane.b32.xlu0 %v1360, 12
      %v1425 = vpop.permute.xlu0 %1424
      %1426 = vrot.lane.b32.xlu0 %v1361, 12
      %v1427 = vpop.permute.xlu0 %1426
      %1428 = vrot.lane.b32.xlu0 %v1362, 12
      %v1429 = vpop.permute.xlu0 %1428
      %1430 = vrot.lane.b32.xlu0 %v1363, 12
      %v1431 = vpop.permute.xlu0 %1430
      %1432 = vrot.lane.b32.xlu0 %v1364, 12
      %v1433 = vpop.permute.xlu0 %1432
      %1434 = vrot.lane.b32.xlu0 %v1365, 12
      %v1435 = vpop.permute.xlu0 %1434
      %1436 = vrot.lane.b32.xlu0 %v1366, 12
      %v1437 = vpop.permute.xlu0 %1436
      %1438 = vrot.lane.b32.xlu0 %v1367, 12
      %v1439 = vpop.permute.xlu0 %1438
      %1440 = vrot.lane.b32.xlu0 %v1368, 12
      %v1441 = vpop.permute.xlu0 %1440
      %1442 = vrot.lane.b32.xlu0 %v1369, 12
      %v1443 = vpop.permute.xlu0 %1442
      %1444 = vrot.lane.b32.xlu0 %v1370, 12
      %v1445 = vpop.permute.xlu0 %1444
      %1446 = vrot.lane.b32.xlu0 %v1371, 12
      %v1447 = vpop.permute.xlu0 %1446
      %1448 = vrot.lane.b32.xlu0 %v1372, 12
      %v1449 = vpop.permute.xlu0 %1448
      %1450 = vrot.lane.b32.xlu0 %v1373, 12
      %v1451 = vpop.permute.xlu0 %1450
      %1452 = vrot.lane.b32.xlu0 %v1374, 12
      %v1453 = vpop.permute.xlu0 %1452
      %1454 = vrot.lane.b32.xlu0 %v1375, 12
      %v1455 = vpop.permute.xlu0 %1454
      %1456 = vrot.lane.b32.xlu0 %v1376, 12
      %v1457 = vpop.permute.xlu0 %1456
      %1458 = vrot.lane.b32.xlu0 %v1377, 12
      %v1459 = vpop.permute.xlu0 %1458
      %1460 = vrot.lane.b32.xlu0 %v1378, 12
      %v1461 = vpop.permute.xlu0 %1460
      %1462 = vrot.lane.b32.xlu0 %v1379, 12
      %v1463 = vpop.permute.xlu0 %1462
      %1464 = vrot.lane.b32.xlu0 %v1380, 12
      %v1465 = vpop.permute.xlu0 %1464
      %1466 = vrot.lane.b32.xlu0 %v1381, 12
      %v1467 = vpop.permute.xlu0 %1466
      %1468 = vrot.lane.b32.xlu0 %v1382, 12
      %v1469 = vpop.permute.xlu0 %1468
      %1470 = vrot.lane.b32.xlu0 %v1383, 12
      %v1471 = vpop.permute.xlu0 %1470
      %1472 = vrot.lane.b32.xlu0 %v1384, 12
      %v1473 = vpop.permute.xlu0 %1472
      %1474 = vrot.lane.b32.xlu0 %v1385, 12
      %v1475 = vpop.permute.xlu0 %1474
      %1476 = vrot.lane.b32.xlu0 %v1386, 12
      %v1477 = vpop.permute.xlu0 %1476
      %1478 = vrot.lane.b32.xlu0 %v1387, 12
      %v1479 = vpop.permute.xlu0 %1478
      %1480 = vrot.lane.b32.xlu0 %v1388, 12
      %v1481 = vpop.permute.xlu0 %1480
      %1482 = vrot.lane.b32.xlu0 %v1389, 12
      %v1483 = vpop.permute.xlu0 %1482
      %1484 = vrot.lane.b32.xlu0 %v1390, 12
      %v1485 = vpop.permute.xlu0 %1484
      %1486 = vrot.lane.b32.xlu0 %v1391, 12
      %v1487 = vpop.permute.xlu0 %1486
      %vm1520 = vcmask 130144
      %1521 = vst.msk [vmem:[#allocation2] sm:$0xff] %vm1520, %v1425
      %1522 = vst.msk [vmem:[#allocation2 + $0x8] sm:$0xff] %vm1520, %v1427
      %1523 = vst.msk [vmem:[#allocation2 + $0x10] sm:$0xff] %vm1520, %v1429
      %1524 = vst.msk [vmem:[#allocation2 + $0x18] sm:$0xff] %vm1520, %v1431
      %1525 = vst.msk [vmem:[#allocation2 + $0x20] sm:$0xff] %vm1520, %v1433
      %1526 = vst.msk [vmem:[#allocation2 + $0x28] sm:$0xff] %vm1520, %v1435
      %1527 = vst.msk [vmem:[#allocation2 + $0x30] sm:$0xff] %vm1520, %v1437
      %1528 = vst.msk [vmem:[#allocation2 + $0x38] sm:$0xff] %vm1520, %v1439
      %1529 = vst.msk [vmem:[#allocation2 + $0x40] sm:$0xff] %vm1520, %v1441
      %1530 = vst.msk [vmem:[#allocation2 + $0x48] sm:$0xff] %vm1520, %v1443
      %1531 = vst.msk [vmem:[#allocation2 + $0x50] sm:$0xff] %vm1520, %v1445
      %1532 = vst.msk [vmem:[#allocation2 + $0x58] sm:$0xff] %vm1520, %v1447
      %1533 = vst.msk [vmem:[#allocation2 + $0x60] sm:$0xff] %vm1520, %v1449
      %1534 = vst.msk [vmem:[#allocation2 + $0x68] sm:$0xff] %vm1520, %v1451
      %1535 = vst.msk [vmem:[#allocation2 + $0x70] sm:$0xff] %vm1520, %v1453
      %1536 = vst.msk [vmem:[#allocation2 + $0x78] sm:$0xff] %vm1520, %v1455
      %1537 = vst.msk [vmem:[#allocation2 + $0x80] sm:$0xff] %vm1520, %v1457
      %1538 = vst.msk [vmem:[#allocation2 + $0x88] sm:$0xff] %vm1520, %v1459
      %1539 = vst.msk [vmem:[#allocation2 + $0x90] sm:$0xff] %vm1520, %v1461
      %1540 = vst.msk [vmem:[#allocation2 + $0x98] sm:$0xff] %vm1520, %v1463
      %1541 = vst.msk [vmem:[#allocation2 + $0xa0] sm:$0xff] %vm1520, %v1465
      %1542 = vst.msk [vmem:[#allocation2 + $0xa8] sm:$0xff] %vm1520, %v1467
      %1543 = vst.msk [vmem:[#allocation2 + $0xb0] sm:$0xff] %vm1520, %v1469
      %1544 = vst.msk [vmem:[#allocation2 + $0xb8] sm:$0xff] %vm1520, %v1471
      %1545 = vst.msk [vmem:[#allocation2 + $0xc0] sm:$0xff] %vm1520, %v1473
      %1546 = vst.msk [vmem:[#allocation2 + $0xc8] sm:$0xff] %vm1520, %v1475
      %1547 = vst.msk [vmem:[#allocation2 + $0xd0] sm:$0xff] %vm1520, %v1477
      %1548 = vst.msk [vmem:[#allocation2 + $0xd8] sm:$0xff] %vm1520, %v1479
      %1549 = vst.msk [vmem:[#allocation2 + $0xe0] sm:$0xff] %vm1520, %v1481
      %1550 = vst.msk [vmem:[#allocation2 + $0xe8] sm:$0xff] %vm1520, %v1483
      %1551 = vst.msk [vmem:[#allocation2 + $0xf0] sm:$0xff] %vm1520, %v1485
      %1552 = vst.msk [vmem:[#allocation2 + $0xf8] sm:$0xff] %vm1520, %v1487
      %s1553 = sadd.s32 %s1326, 1
      %s1554 = scalar_lea.vmem %s183, %s1553
      %v1555 = vld [vmem:[%s1554] sm:$0xff]
      %v1556 = vld [vmem:[%s1554 + $0x8] sm:$0xff]
      %v1557 = vld [vmem:[%s1554 + $0x10] sm:$0xff]
      %v1558 = vld [vmem:[%s1554 + $0x18] sm:$0xff]
      %v1559 = vld [vmem:[%s1554 + $0x20] sm:$0xff]
      %v1560 = vld [vmem:[%s1554 + $0x28] sm:$0xff]
      %v1561 = vld [vmem:[%s1554 + $0x30] sm:$0xff]
      %v1562 = vld [vmem:[%s1554 + $0x38] sm:$0xff]
      %v1563 = vld [vmem:[%s1554 + $0x40] sm:$0xff]
      %v1564 = vld [vmem:[%s1554 + $0x48] sm:$0xff]
      %v1565 = vld [vmem:[%s1554 + $0x50] sm:$0xff]
      %v1566 = vld [vmem:[%s1554 + $0x58] sm:$0xff]
      %v1567 = vld [vmem:[%s1554 + $0x60] sm:$0xff]
      %v1568 = vld [vmem:[%s1554 + $0x68] sm:$0xff]
      %v1569 = vld [vmem:[%s1554 + $0x70] sm:$0xff]
      %v1570 = vld [vmem:[%s1554 + $0x78] sm:$0xff]
      %v1571 = vld [vmem:[%s1554 + $0x80] sm:$0xff]
      %v1572 = vld [vmem:[%s1554 + $0x88] sm:$0xff]
      %v1573 = vld [vmem:[%s1554 + $0x90] sm:$0xff]
      %v1574 = vld [vmem:[%s1554 + $0x98] sm:$0xff]
      %v1575 = vld [vmem:[%s1554 + $0xa0] sm:$0xff]
      %v1576 = vld [vmem:[%s1554 + $0xa8] sm:$0xff]
      %v1577 = vld [vmem:[%s1554 + $0xb0] sm:$0xff]
      %v1578 = vld [vmem:[%s1554 + $0xb8] sm:$0xff]
      %v1579 = vld [vmem:[%s1554 + $0xc0] sm:$0xff]
      %v1580 = vld [vmem:[%s1554 + $0xc8] sm:$0xff]
      %v1581 = vld [vmem:[%s1554 + $0xd0] sm:$0xff]
      %v1582 = vld [vmem:[%s1554 + $0xd8] sm:$0xff]
      %v1583 = vld [vmem:[%s1554 + $0xe0] sm:$0xff]
      %v1584 = vld [vmem:[%s1554 + $0xe8] sm:$0xff]
      %v1585 = vld [vmem:[%s1554 + $0xf0] sm:$0xff]
      %v1586 = vld [vmem:[%s1554 + $0xf8] sm:$0xff]
      %1619 = vrot.lane.b32.xlu0 %v1555, 16
      %v1620 = vpop.permute.xlu0 %1619
      %1621 = vrot.lane.b32.xlu0 %v1556, 16
      %v1622 = vpop.permute.xlu0 %1621
      %1623 = vrot.lane.b32.xlu0 %v1557, 16
      %v1624 = vpop.permute.xlu0 %1623
      %1625 = vrot.lane.b32.xlu0 %v1558, 16
      %v1626 = vpop.permute.xlu0 %1625
      %1627 = vrot.lane.b32.xlu0 %v1559, 16
      %v1628 = vpop.permute.xlu0 %1627
      %1629 = vrot.lane.b32.xlu0 %v1560, 16
      %v1630 = vpop.permute.xlu0 %1629
      %1631 = vrot.lane.b32.xlu0 %v1561, 16
      %v1632 = vpop.permute.xlu0 %1631
      %1633 = vrot.lane.b32.xlu0 %v1562, 16
      %v1634 = vpop.permute.xlu0 %1633
      %1635 = vrot.lane.b32.xlu0 %v1563, 16
      %v1636 = vpop.permute.xlu0 %1635
      %1637 = vrot.lane.b32.xlu0 %v1564, 16
      %v1638 = vpop.permute.xlu0 %1637
      %1639 = vrot.lane.b32.xlu0 %v1565, 16
      %v1640 = vpop.permute.xlu0 %1639
      %1641 = vrot.lane.b32.xlu0 %v1566, 16
      %v1642 = vpop.permute.xlu0 %1641
      %1643 = vrot.lane.b32.xlu0 %v1567, 16
      %v1644 = vpop.permute.xlu0 %1643
      %1645 = vrot.lane.b32.xlu0 %v1568, 16
      %v1646 = vpop.permute.xlu0 %1645
      %1647 = vrot.lane.b32.xlu0 %v1569, 16
      %v1648 = vpop.permute.xlu0 %1647
      %1649 = vrot.lane.b32.xlu0 %v1570, 16
      %v1650 = vpop.permute.xlu0 %1649
      %1651 = vrot.lane.b32.xlu0 %v1571, 16
      %v1652 = vpop.permute.xlu0 %1651
      %1653 = vrot.lane.b32.xlu0 %v1572, 16
      %v1654 = vpop.permute.xlu0 %1653
      %1655 = vrot.lane.b32.xlu0 %v1573, 16
      %v1656 = vpop.permute.xlu0 %1655
      %1657 = vrot.lane.b32.xlu0 %v1574, 16
      %v1658 = vpop.permute.xlu0 %1657
      %1659 = vrot.lane.b32.xlu0 %v1575, 16
      %v1660 = vpop.permute.xlu0 %1659
      %1661 = vrot.lane.b32.xlu0 %v1576, 16
      %v1662 = vpop.permute.xlu0 %1661
      %1663 = vrot.lane.b32.xlu0 %v1577, 16
      %v1664 = vpop.permute.xlu0 %1663
      %1665 = vrot.lane.b32.xlu0 %v1578, 16
      %v1666 = vpop.permute.xlu0 %1665
      %1667 = vrot.lane.b32.xlu0 %v1579, 16
      %v1668 = vpop.permute.xlu0 %1667
      %1669 = vrot.lane.b32.xlu0 %v1580, 16
      %v1670 = vpop.permute.xlu0 %1669
      %1671 = vrot.lane.b32.xlu0 %v1581, 16
      %v1672 = vpop.permute.xlu0 %1671
      %1673 = vrot.lane.b32.xlu0 %v1582, 16
      %v1674 = vpop.permute.xlu0 %1673
      %1675 = vrot.lane.b32.xlu0 %v1583, 16
      %v1676 = vpop.permute.xlu0 %1675
      %1677 = vrot.lane.b32.xlu0 %v1584, 16
      %v1678 = vpop.permute.xlu0 %1677
      %1679 = vrot.lane.b32.xlu0 %v1585, 16
      %v1680 = vpop.permute.xlu0 %1679
      %1681 = vrot.lane.b32.xlu0 %v1586, 16
      %v1682 = vpop.permute.xlu0 %1681
      %vm1715 = vcmask 162944
      %1716 = vst.msk [vmem:[#allocation2] sm:$0xff] %vm1715, %v1620
      %1717 = vst.msk [vmem:[#allocation2 + $0x8] sm:$0xff] %vm1715, %v1622
      %1718 = vst.msk [vmem:[#allocation2 + $0x10] sm:$0xff] %vm1715, %v1624
      %1719 = vst.msk [vmem:[#allocation2 + $0x18] sm:$0xff] %vm1715, %v1626
      %1720 = vst.msk [vmem:[#allocation2 + $0x20] sm:$0xff] %vm1715, %v1628
      %1721 = vst.msk [vmem:[#allocation2 + $0x28] sm:$0xff] %vm1715, %v1630
      %1722 = vst.msk [vmem:[#allocation2 + $0x30] sm:$0xff] %vm1715, %v1632
      %1723 = vst.msk [vmem:[#allocation2 + $0x38] sm:$0xff] %vm1715, %v1634
      %1724 = vst.msk [vmem:[#allocation2 + $0x40] sm:$0xff] %vm1715, %v1636
      %1725 = vst.msk [vmem:[#allocation2 + $0x48] sm:$0xff] %vm1715, %v1638
      %1726 = vst.msk [vmem:[#allocation2 + $0x50] sm:$0xff] %vm1715, %v1640
      %1727 = vst.msk [vmem:[#allocation2 + $0x58] sm:$0xff] %vm1715, %v1642
      %1728 = vst.msk [vmem:[#allocation2 + $0x60] sm:$0xff] %vm1715, %v1644
      %1729 = vst.msk [vmem:[#allocation2 + $0x68] sm:$0xff] %vm1715, %v1646
      %1730 = vst.msk [vmem:[#allocation2 + $0x70] sm:$0xff] %vm1715, %v1648
      %1731 = vst.msk [vmem:[#allocation2 + $0x78] sm:$0xff] %vm1715, %v1650
      %1732 = vst.msk [vmem:[#allocation2 + $0x80] sm:$0xff] %vm1715, %v1652
      %1733 = vst.msk [vmem:[#allocation2 + $0x88] sm:$0xff] %vm1715, %v1654
      %1734 = vst.msk [vmem:[#allocation2 + $0x90] sm:$0xff] %vm1715, %v1656
      %1735 = vst.msk [vmem:[#allocation2 + $0x98] sm:$0xff] %vm1715, %v1658
      %1736 = vst.msk [vmem:[#allocation2 + $0xa0] sm:$0xff] %vm1715, %v1660
      %1737 = vst.msk [vmem:[#allocation2 + $0xa8] sm:$0xff] %vm1715, %v1662
      %1738 = vst.msk [vmem:[#allocation2 + $0xb0] sm:$0xff] %vm1715, %v1664
      %1739 = vst.msk [vmem:[#allocation2 + $0xb8] sm:$0xff] %vm1715, %v1666
      %1740 = vst.msk [vmem:[#allocation2 + $0xc0] sm:$0xff] %vm1715, %v1668
      %1741 = vst.msk [vmem:[#allocation2 + $0xc8] sm:$0xff] %vm1715, %v1670
      %1742 = vst.msk [vmem:[#allocation2 + $0xd0] sm:$0xff] %vm1715, %v1672
      %1743 = vst.msk [vmem:[#allocation2 + $0xd8] sm:$0xff] %vm1715, %v1674
      %1744 = vst.msk [vmem:[#allocation2 + $0xe0] sm:$0xff] %vm1715, %v1676
      %1745 = vst.msk [vmem:[#allocation2 + $0xe8] sm:$0xff] %vm1715, %v1678
      %1746 = vst.msk [vmem:[#allocation2 + $0xf0] sm:$0xff] %vm1715, %v1680
      %1747 = vst.msk [vmem:[#allocation2 + $0xf8] sm:$0xff] %vm1715, %v1682
      %s1748 = sadd.s32 %s1326, 2
      %s1749 = scalar_lea.vmem %s183, %s1748
      %v1750 = vld [vmem:[%s1749] sm:$0xff]
      %v1751 = vld [vmem:[%s1749 + $0x8] sm:$0xff]
      %v1752 = vld [vmem:[%s1749 + $0x10] sm:$0xff]
      %v1753 = vld [vmem:[%s1749 + $0x18] sm:$0xff]
      %v1754 = vld [vmem:[%s1749 + $0x20] sm:$0xff]
      %v1755 = vld [vmem:[%s1749 + $0x28] sm:$0xff]
      %v1756 = vld [vmem:[%s1749 + $0x30] sm:$0xff]
      %v1757 = vld [vmem:[%s1749 + $0x38] sm:$0xff]
      %v1758 = vld [vmem:[%s1749 + $0x40] sm:$0xff]
      %v1759 = vld [vmem:[%s1749 + $0x48] sm:$0xff]
      %v1760 = vld [vmem:[%s1749 + $0x50] sm:$0xff]
      %v1761 = vld [vmem:[%s1749 + $0x58] sm:$0xff]
      %v1762 = vld [vmem:[%s1749 + $0x60] sm:$0xff]
      %v1763 = vld [vmem:[%s1749 + $0x68] sm:$0xff]
      %v1764 = vld [vmem:[%s1749 + $0x70] sm:$0xff]
      %v1765 = vld [vmem:[%s1749 + $0x78] sm:$0xff]
      %v1766 = vld [vmem:[%s1749 + $0x80] sm:$0xff]
      %v1767 = vld [vmem:[%s1749 + $0x88] sm:$0xff]
      %v1768 = vld [vmem:[%s1749 + $0x90] sm:$0xff]
      %v1769 = vld [vmem:[%s1749 + $0x98] sm:$0xff]
      %v1770 = vld [vmem:[%s1749 + $0xa0] sm:$0xff]
      %v1771 = vld [vmem:[%s1749 + $0xa8] sm:$0xff]
      %v1772 = vld [vmem:[%s1749 + $0xb0] sm:$0xff]
      %v1773 = vld [vmem:[%s1749 + $0xb8] sm:$0xff]
      %v1774 = vld [vmem:[%s1749 + $0xc0] sm:$0xff]
      %v1775 = vld [vmem:[%s1749 + $0xc8] sm:$0xff]
      %v1776 = vld [vmem:[%s1749 + $0xd0] sm:$0xff]
      %v1777 = vld [vmem:[%s1749 + $0xd8] sm:$0xff]
      %v1778 = vld [vmem:[%s1749 + $0xe0] sm:$0xff]
      %v1779 = vld [vmem:[%s1749 + $0xe8] sm:$0xff]
      %v1780 = vld [vmem:[%s1749 + $0xf0] sm:$0xff]
      %v1781 = vld [vmem:[%s1749 + $0xf8] sm:$0xff]
      %v1782 = vsel %vm1100, %v1750, 0.0
      %v1783 = vsel %vm1101, %v1751, 0.0
      %v1784 = vsel %vm1102, %v1752, 0.0
      %v1785 = vsel %vm1103, %v1753, 0.0
      %v1786 = vsel %vm1104, %v1754, 0.0
      %v1787 = vsel %vm1105, %v1755, 0.0
      %v1788 = vsel %vm1106, %v1756, 0.0
      %v1789 = vsel %vm1107, %v1757, 0.0
      %v1790 = vsel %vm1108, %v1758, 0.0
      %v1791 = vsel %vm1109, %v1759, 0.0
      %v1792 = vsel %vm1110, %v1760, 0.0
      %v1793 = vsel %vm1111, %v1761, 0.0
      %v1794 = vsel %vm1112, %v1762, 0.0
      %v1795 = vsel %vm1113, %v1763, 0.0
      %v1796 = vsel %vm1114, %v1764, 0.0
      %v1797 = vsel %vm1115, %v1765, 0.0
      %v1798 = vsel %vm1116, %v1766, 0.0
      %v1799 = vsel %vm1117, %v1767, 0.0
      %v1800 = vsel %vm1118, %v1768, 0.0
      %v1801 = vsel %vm1119, %v1769, 0.0
      %v1802 = vsel %vm1120, %v1770, 0.0
      %v1803 = vsel %vm1121, %v1771, 0.0
      %v1804 = vsel %vm1122, %v1772, 0.0
      %v1805 = vsel %vm1123, %v1773, 0.0
      %v1806 = vsel %vm1124, %v1774, 0.0
      %v1807 = vsel %vm1125, %v1775, 0.0
      %v1808 = vsel %vm1126, %v1776, 0.0
      %v1809 = vsel %vm1127, %v1777, 0.0
      %v1810 = vsel %vm1128, %v1778, 0.0
      %v1811 = vsel %vm1129, %v1779, 0.0
      %v1812 = vsel %vm1130, %v1780, 0.0
      %v1813 = vsel %vm1131, %v1781, 0.0
      %1846 = vrot.lane.b32.xlu0 %v1782, 20
      %v1847 = vpop.permute.xlu0 %1846
      %1848 = vrot.lane.b32.xlu0 %v1783, 20
      %v1849 = vpop.permute.xlu0 %1848
      %1850 = vrot.lane.b32.xlu0 %v1784, 20
      %v1851 = vpop.permute.xlu0 %1850
      %1852 = vrot.lane.b32.xlu0 %v1785, 20
      %v1853 = vpop.permute.xlu0 %1852
      %1854 = vrot.lane.b32.xlu0 %v1786, 20
      %v1855 = vpop.permute.xlu0 %1854
      %1856 = vrot.lane.b32.xlu0 %v1787, 20
      %v1857 = vpop.permute.xlu0 %1856
      %1858 = vrot.lane.b32.xlu0 %v1788, 20
      %v1859 = vpop.permute.xlu0 %1858
      %1860 = vrot.lane.b32.xlu0 %v1789, 20
      %v1861 = vpop.permute.xlu0 %1860
      %1862 = vrot.lane.b32.xlu0 %v1790, 20
      %v1863 = vpop.permute.xlu0 %1862
      %1864 = vrot.lane.b32.xlu0 %v1791, 20
      %v1865 = vpop.permute.xlu0 %1864
      %1866 = vrot.lane.b32.xlu0 %v1792, 20
      %v1867 = vpop.permute.xlu0 %1866
      %1868 = vrot.lane.b32.xlu0 %v1793, 20
      %v1869 = vpop.permute.xlu0 %1868
      %1870 = vrot.lane.b32.xlu0 %v1794, 20
      %v1871 = vpop.permute.xlu0 %1870
      %1872 = vrot.lane.b32.xlu0 %v1795, 20
      %v1873 = vpop.permute.xlu0 %1872
      %1874 = vrot.lane.b32.xlu0 %v1796, 20
      %v1875 = vpop.permute.xlu0 %1874
      %1876 = vrot.lane.b32.xlu0 %v1797, 20
      %v1877 = vpop.permute.xlu0 %1876
      %1878 = vrot.lane.b32.xlu0 %v1798, 20
      %v1879 = vpop.permute.xlu0 %1878
      %1880 = vrot.lane.b32.xlu0 %v1799, 20
      %v1881 = vpop.permute.xlu0 %1880
      %1882 = vrot.lane.b32.xlu0 %v1800, 20
      %v1883 = vpop.permute.xlu0 %1882
      %1884 = vrot.lane.b32.xlu0 %v1801, 20
      %v1885 = vpop.permute.xlu0 %1884
      %1886 = vrot.lane.b32.xlu0 %v1802, 20
      %v1887 = vpop.permute.xlu0 %1886
      %1888 = vrot.lane.b32.xlu0 %v1803, 20
      %v1889 = vpop.permute.xlu0 %1888
      %1890 = vrot.lane.b32.xlu0 %v1804, 20
      %v1891 = vpop.permute.xlu0 %1890
      %1892 = vrot.lane.b32.xlu0 %v1805, 20
      %v1893 = vpop.permute.xlu0 %1892
      %1894 = vrot.lane.b32.xlu0 %v1806, 20
      %v1895 = vpop.permute.xlu0 %1894
      %1896 = vrot.lane.b32.xlu0 %v1807, 20
      %v1897 = vpop.permute.xlu0 %1896
      %1898 = vrot.lane.b32.xlu0 %v1808, 20
      %v1899 = vpop.permute.xlu0 %1898
      %1900 = vrot.lane.b32.xlu0 %v1809, 20
      %v1901 = vpop.permute.xlu0 %1900
      %1902 = vrot.lane.b32.xlu0 %v1810, 20
      %v1903 = vpop.permute.xlu0 %1902
      %1904 = vrot.lane.b32.xlu0 %v1811, 20
      %v1905 = vpop.permute.xlu0 %1904
      %1906 = vrot.lane.b32.xlu0 %v1812, 20
      %v1907 = vpop.permute.xlu0 %1906
      %1908 = vrot.lane.b32.xlu0 %v1813, 20
      %v1909 = vpop.permute.xlu0 %1908
      %vm1942 = vcmask 195744
      %1943 = vst.msk [vmem:[#allocation2] sm:$0xff] %vm1942, %v1847
      %1944 = vst.msk [vmem:[#allocation2 + $0x8] sm:$0xff] %vm1942, %v1849
      %1945 = vst.msk [vmem:[#allocation2 + $0x10] sm:$0xff] %vm1942, %v1851
      %1946 = vst.msk [vmem:[#allocation2 + $0x18] sm:$0xff] %vm1942, %v1853
      %1947 = vst.msk [vmem:[#allocation2 + $0x20] sm:$0xff] %vm1942, %v1855
      %1948 = vst.msk [vmem:[#allocation2 + $0x28] sm:$0xff] %vm1942, %v1857
      %1949 = vst.msk [vmem:[#allocation2 + $0x30] sm:$0xff] %vm1942, %v1859
      %1950 = vst.msk [vmem:[#allocation2 + $0x38] sm:$0xff] %vm1942, %v1861
      %1951 = vst.msk [vmem:[#allocation2 + $0x40] sm:$0xff] %vm1942, %v1863
      %1952 = vst.msk [vmem:[#allocation2 + $0x48] sm:$0xff] %vm1942, %v1865
      %1953 = vst.msk [vmem:[#allocation2 + $0x50] sm:$0xff] %vm1942, %v1867
      %1954 = vst.msk [vmem:[#allocation2 + $0x58] sm:$0xff] %vm1942, %v1869
      %1955 = vst.msk [vmem:[#allocation2 + $0x60] sm:$0xff] %vm1942, %v1871
      %1956 = vst.msk [vmem:[#allocation2 + $0x68] sm:$0xff] %vm1942, %v1873
      %1957 = vst.msk [vmem:[#allocation2 + $0x70] sm:$0xff] %vm1942, %v1875
      %1958 = vst.msk [vmem:[#allocation2 + $0x78] sm:$0xff] %vm1942, %v1877
      %1959 = vst.msk [vmem:[#allocation2 + $0x80] sm:$0xff] %vm1942, %v1879
      %1960 = vst.msk [vmem:[#allocation2 + $0x88] sm:$0xff] %vm1942, %v1881
      %1961 = vst.msk [vmem:[#allocation2 + $0x90] sm:$0xff] %vm1942, %v1883
      %1962 = vst.msk [vmem:[#allocation2 + $0x98] sm:$0xff] %vm1942, %v1885
      %1963 = vst.msk [vmem:[#allocation2 + $0xa0] sm:$0xff] %vm1942, %v1887
      %1964 = vst.msk [vmem:[#allocation2 + $0xa8] sm:$0xff] %vm1942, %v1889
      %1965 = vst.msk [vmem:[#allocation2 + $0xb0] sm:$0xff] %vm1942, %v1891
      %1966 = vst.msk [vmem:[#allocation2 + $0xb8] sm:$0xff] %vm1942, %v1893
      %1967 = vst.msk [vmem:[#allocation2 + $0xc0] sm:$0xff] %vm1942, %v1895
      %1968 = vst.msk [vmem:[#allocation2 + $0xc8] sm:$0xff] %vm1942, %v1897
      %1969 = vst.msk [vmem:[#allocation2 + $0xd0] sm:$0xff] %vm1942, %v1899
      %1970 = vst.msk [vmem:[#allocation2 + $0xd8] sm:$0xff] %vm1942, %v1901
      %1971 = vst.msk [vmem:[#allocation2 + $0xe0] sm:$0xff] %vm1942, %v1903
      %1972 = vst.msk [vmem:[#allocation2 + $0xe8] sm:$0xff] %vm1942, %v1905
      %1973 = vst.msk [vmem:[#allocation2 + $0xf0] sm:$0xff] %vm1942, %v1907
      %1974 = vst.msk [vmem:[#allocation2 + $0xf8] sm:$0xff] %vm1942, %v1909
      %s1975 = sadd.s32 %s194, 2
      %s1976 = smul.u32 %s1975, 16
      %s1977 = scalar_lea.vmem %s183, %s1976
      %v1978 = vld [vmem:[%s1977] sm:$0xff]
      %v1979 = vld [vmem:[%s1977 + $0x8] sm:$0xff]
      %v1980 = vld [vmem:[%s1977 + $0x10] sm:$0xff]
      %v1981 = vld [vmem:[%s1977 + $0x18] sm:$0xff]
      %v1982 = vld [vmem:[%s1977 + $0x20] sm:$0xff]
      %v1983 = vld [vmem:[%s1977 + $0x28] sm:$0xff]
      %v1984 = vld [vmem:[%s1977 + $0x30] sm:$0xff]
      %v1985 = vld [vmem:[%s1977 + $0x38] sm:$0xff]
      %v1986 = vld [vmem:[%s1977 + $0x40] sm:$0xff]
      %v1987 = vld [vmem:[%s1977 + $0x48] sm:$0xff]
      %v1988 = vld [vmem:[%s1977 + $0x50] sm:$0xff]
      %v1989 = vld [vmem:[%s1977 + $0x58] sm:$0xff]
      %v1990 = vld [vmem:[%s1977 + $0x60] sm:$0xff]
      %v1991 = vld [vmem:[%s1977 + $0x68] sm:$0xff]
      %v1992 = vld [vmem:[%s1977 + $0x70] sm:$0xff]
      %v1993 = vld [vmem:[%s1977 + $0x78] sm:$0xff]
      %v1994 = vld [vmem:[%s1977 + $0x80] sm:$0xff]
      %v1995 = vld [vmem:[%s1977 + $0x88] sm:$0xff]
      %v1996 = vld [vmem:[%s1977 + $0x90] sm:$0xff]
      %v1997 = vld [vmem:[%s1977 + $0x98] sm:$0xff]
      %v1998 = vld [vmem:[%s1977 + $0xa0] sm:$0xff]
      %v1999 = vld [vmem:[%s1977 + $0xa8] sm:$0xff]
      %v2000 = vld [vmem:[%s1977 + $0xb0] sm:$0xff]
      %v2001 = vld [vmem:[%s1977 + $0xb8] sm:$0xff]
      %v2002 = vld [vmem:[%s1977 + $0xc0] sm:$0xff]
      %v2003 = vld [vmem:[%s1977 + $0xc8] sm:$0xff]
      %v2004 = vld [vmem:[%s1977 + $0xd0] sm:$0xff]
      %v2005 = vld [vmem:[%s1977 + $0xd8] sm:$0xff]
      %v2006 = vld [vmem:[%s1977 + $0xe0] sm:$0xff]
      %v2007 = vld [vmem:[%s1977 + $0xe8] sm:$0xff]
      %v2008 = vld [vmem:[%s1977 + $0xf0] sm:$0xff]
      %v2009 = vld [vmem:[%s1977 + $0xf8] sm:$0xff]
      %v2010 = vsel %vm742, %v1978, 0.0
      %v2011 = vsel %vm743, %v1979, 0.0
      %v2012 = vsel %vm744, %v1980, 0.0
      %v2013 = vsel %vm745, %v1981, 0.0
      %v2014 = vsel %vm746, %v1982, 0.0
      %v2015 = vsel %vm747, %v1983, 0.0
      %v2016 = vsel %vm748, %v1984, 0.0
      %v2017 = vsel %vm749, %v1985, 0.0
      %v2018 = vsel %vm750, %v1986, 0.0
      %v2019 = vsel %vm751, %v1987, 0.0
      %v2020 = vsel %vm752, %v1988, 0.0
      %v2021 = vsel %vm753, %v1989, 0.0
      %v2022 = vsel %vm754, %v1990, 0.0
      %v2023 = vsel %vm755, %v1991, 0.0
      %v2024 = vsel %vm756, %v1992, 0.0
      %v2025 = vsel %vm757, %v1993, 0.0
      %v2026 = vsel %vm758, %v1994, 0.0
      %v2027 = vsel %vm759, %v1995, 0.0
      %v2028 = vsel %vm760, %v1996, 0.0
      %v2029 = vsel %vm761, %v1997, 0.0
      %v2030 = vsel %vm762, %v1998, 0.0
      %v2031 = vsel %vm763, %v1999, 0.0
      %v2032 = vsel %vm764, %v2000, 0.0
      %v2033 = vsel %vm765, %v2001, 0.0
      %v2034 = vsel %vm766, %v2002, 0.0
      %v2035 = vsel %vm767, %v2003, 0.0
      %v2036 = vsel %vm768, %v2004, 0.0
      %v2037 = vsel %vm769, %v2005, 0.0
      %v2038 = vsel %vm770, %v2006, 0.0
      %v2039 = vsel %vm771, %v2007, 0.0
      %v2040 = vsel %vm772, %v2008, 0.0
      %v2041 = vsel %vm773, %v2009, 0.0
      %2074 = vrot.lane.b32.xlu0 %v2010, 24
      %v2075 = vpop.permute.xlu0 %2074
      %2076 = vrot.lane.b32.xlu0 %v2011, 24
      %v2077 = vpop.permute.xlu0 %2076
      %2078 = vrot.lane.b32.xlu0 %v2012, 24
      %v2079 = vpop.permute.xlu0 %2078
      %2080 = vrot.lane.b32.xlu0 %v2013, 24
      %v2081 = vpop.permute.xlu0 %2080
      %2082 = vrot.lane.b32.xlu0 %v2014, 24
      %v2083 = vpop.permute.xlu0 %2082
      %2084 = vrot.lane.b32.xlu0 %v2015, 24
      %v2085 = vpop.permute.xlu0 %2084
      %2086 = vrot.lane.b32.xlu0 %v2016, 24
      %v2087 = vpop.permute.xlu0 %2086
      %2088 = vrot.lane.b32.xlu0 %v2017, 24
      %v2089 = vpop.permute.xlu0 %2088
      %2090 = vrot.lane.b32.xlu0 %v2018, 24
      %v2091 = vpop.permute.xlu0 %2090
      %2092 = vrot.lane.b32.xlu0 %v2019, 24
      %v2093 = vpop.permute.xlu0 %2092
      %2094 = vrot.lane.b32.xlu0 %v2020, 24
      %v2095 = vpop.permute.xlu0 %2094
      %2096 = vrot.lane.b32.xlu0 %v2021, 24
      %v2097 = vpop.permute.xlu0 %2096
      %2098 = vrot.lane.b32.xlu0 %v2022, 24
      %v2099 = vpop.permute.xlu0 %2098
      %2100 = vrot.lane.b32.xlu0 %v2023, 24
      %v2101 = vpop.permute.xlu0 %2100
      %2102 = vrot.lane.b32.xlu0 %v2024, 24
      %v2103 = vpop.permute.xlu0 %2102
      %2104 = vrot.lane.b32.xlu0 %v2025, 24
      %v2105 = vpop.permute.xlu0 %2104
      %2106 = vrot.lane.b32.xlu0 %v2026, 24
      %v2107 = vpop.permute.xlu0 %2106
      %2108 = vrot.lane.b32.xlu0 %v2027, 24
      %v2109 = vpop.permute.xlu0 %2108
      %2110 = vrot.lane.b32.xlu0 %v2028, 24
      %v2111 = vpop.permute.xlu0 %2110
      %2112 = vrot.lane.b32.xlu0 %v2029, 24
      %v2113 = vpop.permute.xlu0 %2112
      %2114 = vrot.lane.b32.xlu0 %v2030, 24
      %v2115 = vpop.permute.xlu0 %2114
      %2116 = vrot.lane.b32.xlu0 %v2031, 24
      %v2117 = vpop.permute.xlu0 %2116
      %2118 = vrot.lane.b32.xlu0 %v2032, 24
      %v2119 = vpop.permute.xlu0 %2118
      %2120 = vrot.lane.b32.xlu0 %v2033, 24
      %v2121 = vpop.permute.xlu0 %2120
      %2122 = vrot.lane.b32.xlu0 %v2034, 24
      %v2123 = vpop.permute.xlu0 %2122
      %2124 = vrot.lane.b32.xlu0 %v2035, 24
      %v2125 = vpop.permute.xlu0 %2124
      %2126 = vrot.lane.b32.xlu0 %v2036, 24
      %v2127 = vpop.permute.xlu0 %2126
      %2128 = vrot.lane.b32.xlu0 %v2037, 24
      %v2129 = vpop.permute.xlu0 %2128
      %2130 = vrot.lane.b32.xlu0 %v2038, 24
      %v2131 = vpop.permute.xlu0 %2130
      %2132 = vrot.lane.b32.xlu0 %v2039, 24
      %v2133 = vpop.permute.xlu0 %2132
      %2134 = vrot.lane.b32.xlu0 %v2040, 24
      %v2135 = vpop.permute.xlu0 %2134
      %2136 = vrot.lane.b32.xlu0 %v2041, 24
      %v2137 = vpop.permute.xlu0 %2136
      %vm2170 = vcmask 228544
      %2171 = vst.msk [vmem:[#allocation2] sm:$0xff] %vm2170, %v2075
      %2172 = vst.msk [vmem:[#allocation2 + $0x8] sm:$0xff] %vm2170, %v2077
      %2173 = vst.msk [vmem:[#allocation2 + $0x10] sm:$0xff] %vm2170, %v2079
      %2174 = vst.msk [vmem:[#allocation2 + $0x18] sm:$0xff] %vm2170, %v2081
      %2175 = vst.msk [vmem:[#allocation2 + $0x20] sm:$0xff] %vm2170, %v2083
      %2176 = vst.msk [vmem:[#allocation2 + $0x28] sm:$0xff] %vm2170, %v2085
      %2177 = vst.msk [vmem:[#allocation2 + $0x30] sm:$0xff] %vm2170, %v2087
      %2178 = vst.msk [vmem:[#allocation2 + $0x38] sm:$0xff] %vm2170, %v2089
      %2179 = vst.msk [vmem:[#allocation2 + $0x40] sm:$0xff] %vm2170, %v2091
      %2180 = vst.msk [vmem:[#allocation2 + $0x48] sm:$0xff] %vm2170, %v2093
      %2181 = vst.msk [vmem:[#allocation2 + $0x50] sm:$0xff] %vm2170, %v2095
      %2182 = vst.msk [vmem:[#allocation2 + $0x58] sm:$0xff] %vm2170, %v2097
      %2183 = vst.msk [vmem:[#allocation2 + $0x60] sm:$0xff] %vm2170, %v2099
      %2184 = vst.msk [vmem:[#allocation2 + $0x68] sm:$0xff] %vm2170, %v2101
      %2185 = vst.msk [vmem:[#allocation2 + $0x70] sm:$0xff] %vm2170, %v2103
      %2186 = vst.msk [vmem:[#allocation2 + $0x78] sm:$0xff] %vm2170, %v2105
      %2187 = vst.msk [vmem:[#allocation2 + $0x80] sm:$0xff] %vm2170, %v2107
      %2188 = vst.msk [vmem:[#allocation2 + $0x88] sm:$0xff] %vm2170, %v2109
      %2189 = vst.msk [vmem:[#allocation2 + $0x90] sm:$0xff] %vm2170, %v2111
      %2190 = vst.msk [vmem:[#allocation2 + $0x98] sm:$0xff] %vm2170, %v2113
      %2191 = vst.msk [vmem:[#allocation2 + $0xa0] sm:$0xff] %vm2170, %v2115
      %2192 = vst.msk [vmem:[#allocation2 + $0xa8] sm:$0xff] %vm2170, %v2117
      %2193 = vst.msk [vmem:[#allocation2 + $0xb0] sm:$0xff] %vm2170, %v2119
      %2194 = vst.msk [vmem:[#allocation2 + $0xb8] sm:$0xff] %vm2170, %v2121
      %2195 = vst.msk [vmem:[#allocation2 + $0xc0] sm:$0xff] %vm2170, %v2123
      %2196 = vst.msk [vmem:[#allocation2 + $0xc8] sm:$0xff] %vm2170, %v2125
      %2197 = vst.msk [vmem:[#allocation2 + $0xd0] sm:$0xff] %vm2170, %v2127
      %2198 = vst.msk [vmem:[#allocation2 + $0xd8] sm:$0xff] %vm2170, %v2129
      %2199 = vst.msk [vmem:[#allocation2 + $0xe0] sm:$0xff] %vm2170, %v2131
      %2200 = vst.msk [vmem:[#allocation2 + $0xe8] sm:$0xff] %vm2170, %v2133
      %2201 = vst.msk [vmem:[#allocation2 + $0xf0] sm:$0xff] %vm2170, %v2135
      %2202 = vst.msk [vmem:[#allocation2 + $0xf8] sm:$0xff] %vm2170, %v2137
      %s2203 = sadd.s32 %s1976, 1
      %s2204 = scalar_lea.vmem %s183, %s2203
      %v2205 = vld [vmem:[%s2204] sm:$0xff]
      %v2206 = vld [vmem:[%s2204 + $0x8] sm:$0xff]
      %v2207 = vld [vmem:[%s2204 + $0x10] sm:$0xff]
      %v2208 = vld [vmem:[%s2204 + $0x18] sm:$0xff]
      %v2209 = vld [vmem:[%s2204 + $0x20] sm:$0xff]
      %v2210 = vld [vmem:[%s2204 + $0x28] sm:$0xff]
      %v2211 = vld [vmem:[%s2204 + $0x30] sm:$0xff]
      %v2212 = vld [vmem:[%s2204 + $0x38] sm:$0xff]
      %v2213 = vld [vmem:[%s2204 + $0x40] sm:$0xff]
      %v2214 = vld [vmem:[%s2204 + $0x48] sm:$0xff]
      %v2215 = vld [vmem:[%s2204 + $0x50] sm:$0xff]
      %v2216 = vld [vmem:[%s2204 + $0x58] sm:$0xff]
      %v2217 = vld [vmem:[%s2204 + $0x60] sm:$0xff]
      %v2218 = vld [vmem:[%s2204 + $0x68] sm:$0xff]
      %v2219 = vld [vmem:[%s2204 + $0x70] sm:$0xff]
      %v2220 = vld [vmem:[%s2204 + $0x78] sm:$0xff]
      %v2221 = vld [vmem:[%s2204 + $0x80] sm:$0xff]
      %v2222 = vld [vmem:[%s2204 + $0x88] sm:$0xff]
      %v2223 = vld [vmem:[%s2204 + $0x90] sm:$0xff]
      %v2224 = vld [vmem:[%s2204 + $0x98] sm:$0xff]
      %v2225 = vld [vmem:[%s2204 + $0xa0] sm:$0xff]
      %v2226 = vld [vmem:[%s2204 + $0xa8] sm:$0xff]
      %v2227 = vld [vmem:[%s2204 + $0xb0] sm:$0xff]
      %v2228 = vld [vmem:[%s2204 + $0xb8] sm:$0xff]
      %v2229 = vld [vmem:[%s2204 + $0xc0] sm:$0xff]
      %v2230 = vld [vmem:[%s2204 + $0xc8] sm:$0xff]
      %v2231 = vld [vmem:[%s2204 + $0xd0] sm:$0xff]
      %v2232 = vld [vmem:[%s2204 + $0xd8] sm:$0xff]
      %v2233 = vld [vmem:[%s2204 + $0xe0] sm:$0xff]
      %v2234 = vld [vmem:[%s2204 + $0xe8] sm:$0xff]
      %v2235 = vld [vmem:[%s2204 + $0xf0] sm:$0xff]
      %v2236 = vld [vmem:[%s2204 + $0xf8] sm:$0xff]
      %2269 = vrot.lane.b32.xlu0 %v2205, 28
      %v2270 = vpop.permute.xlu0 %2269
      %2271 = vrot.lane.b32.xlu0 %v2206, 28
      %v2272 = vpop.permute.xlu0 %2271
      %2273 = vrot.lane.b32.xlu0 %v2207, 28
      %v2274 = vpop.permute.xlu0 %2273
      %2275 = vrot.lane.b32.xlu0 %v2208, 28
      %v2276 = vpop.permute.xlu0 %2275
      %2277 = vrot.lane.b32.xlu0 %v2209, 28
      %v2278 = vpop.permute.xlu0 %2277
      %2279 = vrot.lane.b32.xlu0 %v2210, 28
      %v2280 = vpop.permute.xlu0 %2279
      %2281 = vrot.lane.b32.xlu0 %v2211, 28
      %v2282 = vpop.permute.xlu0 %2281
      %2283 = vrot.lane.b32.xlu0 %v2212, 28
      %v2284 = vpop.permute.xlu0 %2283
      %2285 = vrot.lane.b32.xlu0 %v2213, 28
      %v2286 = vpop.permute.xlu0 %2285
      %2287 = vrot.lane.b32.xlu0 %v2214, 28
      %v2288 = vpop.permute.xlu0 %2287
      %2289 = vrot.lane.b32.xlu0 %v2215, 28
      %v2290 = vpop.permute.xlu0 %2289
      %2291 = vrot.lane.b32.xlu0 %v2216, 28
      %v2292 = vpop.permute.xlu0 %2291
      %2293 = vrot.lane.b32.xlu0 %v2217, 28
      %v2294 = vpop.permute.xlu0 %2293
      %2295 = vrot.lane.b32.xlu0 %v2218, 28
      %v2296 = vpop.permute.xlu0 %2295
      %2297 = vrot.lane.b32.xlu0 %v2219, 28
      %v2298 = vpop.permute.xlu0 %2297
      %2299 = vrot.lane.b32.xlu0 %v2220, 28
      %v2300 = vpop.permute.xlu0 %2299
      %2301 = vrot.lane.b32.xlu0 %v2221, 28
      %v2302 = vpop.permute.xlu0 %2301
      %2303 = vrot.lane.b32.xlu0 %v2222, 28
      %v2304 = vpop.permute.xlu0 %2303
      %2305 = vrot.lane.b32.xlu0 %v2223, 28
      %v2306 = vpop.permute.xlu0 %2305
      %2307 = vrot.lane.b32.xlu0 %v2224, 28
      %v2308 = vpop.permute.xlu0 %2307
      %2309 = vrot.lane.b32.xlu0 %v2225, 28
      %v2310 = vpop.permute.xlu0 %2309
      %2311 = vrot.lane.b32.xlu0 %v2226, 28
      %v2312 = vpop.permute.xlu0 %2311
      %2313 = vrot.lane.b32.xlu0 %v2227, 28
      %v2314 = vpop.permute.xlu0 %2313
      %2315 = vrot.lane.b32.xlu0 %v2228, 28
      %v2316 = vpop.permute.xlu0 %2315
      %2317 = vrot.lane.b32.xlu0 %v2229, 28
      %v2318 = vpop.permute.xlu0 %2317
      %2319 = vrot.lane.b32.xlu0 %v2230, 28
      %v2320 = vpop.permute.xlu0 %2319
      %2321 = vrot.lane.b32.xlu0 %v2231, 28
      %v2322 = vpop.permute.xlu0 %2321
      %2323 = vrot.lane.b32.xlu0 %v2232, 28
      %v2324 = vpop.permute.xlu0 %2323
      %2325 = vrot.lane.b32.xlu0 %v2233, 28
      %v2326 = vpop.permute.xlu0 %2325
      %2327 = vrot.lane.b32.xlu0 %v2234, 28
      %v2328 = vpop.permute.xlu0 %2327
      %2329 = vrot.lane.b32.xlu0 %v2235, 28
      %v2330 = vpop.permute.xlu0 %2329
      %2331 = vrot.lane.b32.xlu0 %v2236, 28
      %v2332 = vpop.permute.xlu0 %2331
      %vm2365 = vcmask 261344
      %2366 = vst.msk [vmem:[#allocation2] sm:$0xff] %vm2365, %v2270
      %2367 = vst.msk [vmem:[#allocation2 + $0x8] sm:$0xff] %vm2365, %v2272
      %2368 = vst.msk [vmem:[#allocation2 + $0x10] sm:$0xff] %vm2365, %v2274
      %2369 = vst.msk [vmem:[#allocation2 + $0x18] sm:$0xff] %vm2365, %v2276
      %2370 = vst.msk [vmem:[#allocation2 + $0x20] sm:$0xff] %vm2365, %v2278
      %2371 = vst.msk [vmem:[#allocation2 + $0x28] sm:$0xff] %vm2365, %v2280
      %2372 = vst.msk [vmem:[#allocation2 + $0x30] sm:$0xff] %vm2365, %v2282
      %2373 = vst.msk [vmem:[#allocation2 + $0x38] sm:$0xff] %vm2365, %v2284
      %2374 = vst.msk [vmem:[#allocation2 + $0x40] sm:$0xff] %vm2365, %v2286
      %2375 = vst.msk [vmem:[#allocation2 + $0x48] sm:$0xff] %vm2365, %v2288
      %2376 = vst.msk [vmem:[#allocation2 + $0x50] sm:$0xff] %vm2365, %v2290
      %2377 = vst.msk [vmem:[#allocation2 + $0x58] sm:$0xff] %vm2365, %v2292
      %2378 = vst.msk [vmem:[#allocation2 + $0x60] sm:$0xff] %vm2365, %v2294
      %2379 = vst.msk [vmem:[#allocation2 + $0x68] sm:$0xff] %vm2365, %v2296
      %2380 = vst.msk [vmem:[#allocation2 + $0x70] sm:$0xff] %vm2365, %v2298
      %2381 = vst.msk [vmem:[#allocation2 + $0x78] sm:$0xff] %vm2365, %v2300
      %2382 = vst.msk [vmem:[#allocation2 + $0x80] sm:$0xff] %vm2365, %v2302
      %2383 = vst.msk [vmem:[#allocation2 + $0x88] sm:$0xff] %vm2365, %v2304
      %2384 = vst.msk [vmem:[#allocation2 + $0x90] sm:$0xff] %vm2365, %v2306
      %2385 = vst.msk [vmem:[#allocation2 + $0x98] sm:$0xff] %vm2365, %v2308
      %2386 = vst.msk [vmem:[#allocation2 + $0xa0] sm:$0xff] %vm2365, %v2310
      %2387 = vst.msk [vmem:[#allocation2 + $0xa8] sm:$0xff] %vm2365, %v2312
      %2388 = vst.msk [vmem:[#allocation2 + $0xb0] sm:$0xff] %vm2365, %v2314
      %2389 = vst.msk [vmem:[#allocation2 + $0xb8] sm:$0xff] %vm2365, %v2316
      %2390 = vst.msk [vmem:[#allocation2 + $0xc0] sm:$0xff] %vm2365, %v2318
      %2391 = vst.msk [vmem:[#allocation2 + $0xc8] sm:$0xff] %vm2365, %v2320
      %2392 = vst.msk [vmem:[#allocation2 + $0xd0] sm:$0xff] %vm2365, %v2322
      %2393 = vst.msk [vmem:[#allocation2 + $0xd8] sm:$0xff] %vm2365, %v2324
      %2394 = vst.msk [vmem:[#allocation2 + $0xe0] sm:$0xff] %vm2365, %v2326
      %2395 = vst.msk [vmem:[#allocation2 + $0xe8] sm:$0xff] %vm2365, %v2328
      %2396 = vst.msk [vmem:[#allocation2 + $0xf0] sm:$0xff] %vm2365, %v2330
      %2397 = vst.msk [vmem:[#allocation2 + $0xf8] sm:$0xff] %vm2365, %v2332
      %s2398 = sadd.s32 %s1976, 2
      %s2399 = scalar_lea.vmem %s183, %s2398
      %v2400 = vld [vmem:[%s2399] sm:$0xff]
      %v2401 = vld [vmem:[%s2399 + $0x8] sm:$0xff]
      %v2402 = vld [vmem:[%s2399 + $0x10] sm:$0xff]
      %v2403 = vld [vmem:[%s2399 + $0x18] sm:$0xff]
      %v2404 = vld [vmem:[%s2399 + $0x20] sm:$0xff]
      %v2405 = vld [vmem:[%s2399 + $0x28] sm:$0xff]
      %v2406 = vld [vmem:[%s2399 + $0x30] sm:$0xff]
      %v2407 = vld [vmem:[%s2399 + $0x38] sm:$0xff]
      %v2408 = vld [vmem:[%s2399 + $0x40] sm:$0xff]
      %v2409 = vld [vmem:[%s2399 + $0x48] sm:$0xff]
      %v2410 = vld [vmem:[%s2399 + $0x50] sm:$0xff]
      %v2411 = vld [vmem:[%s2399 + $0x58] sm:$0xff]
      %v2412 = vld [vmem:[%s2399 + $0x60] sm:$0xff]
      %v2413 = vld [vmem:[%s2399 + $0x68] sm:$0xff]
      %v2414 = vld [vmem:[%s2399 + $0x70] sm:$0xff]
      %v2415 = vld [vmem:[%s2399 + $0x78] sm:$0xff]
      %v2416 = vld [vmem:[%s2399 + $0x80] sm:$0xff]
      %v2417 = vld [vmem:[%s2399 + $0x88] sm:$0xff]
      %v2418 = vld [vmem:[%s2399 + $0x90] sm:$0xff]
      %v2419 = vld [vmem:[%s2399 + $0x98] sm:$0xff]
      %v2420 = vld [vmem:[%s2399 + $0xa0] sm:$0xff]
      %v2421 = vld [vmem:[%s2399 + $0xa8] sm:$0xff]
      %v2422 = vld [vmem:[%s2399 + $0xb0] sm:$0xff]
      %v2423 = vld [vmem:[%s2399 + $0xb8] sm:$0xff]
      %v2424 = vld [vmem:[%s2399 + $0xc0] sm:$0xff]
      %v2425 = vld [vmem:[%s2399 + $0xc8] sm:$0xff]
      %v2426 = vld [vmem:[%s2399 + $0xd0] sm:$0xff]
      %v2427 = vld [vmem:[%s2399 + $0xd8] sm:$0xff]
      %v2428 = vld [vmem:[%s2399 + $0xe0] sm:$0xff]
      %v2429 = vld [vmem:[%s2399 + $0xe8] sm:$0xff]
      %v2430 = vld [vmem:[%s2399 + $0xf0] sm:$0xff]
      %v2431 = vld [vmem:[%s2399 + $0xf8] sm:$0xff]
      %v2432 = vsel %vm1100, %v2400, 0.0
      %v2433 = vsel %vm1101, %v2401, 0.0
      %v2434 = vsel %vm1102, %v2402, 0.0
      %v2435 = vsel %vm1103, %v2403, 0.0
      %v2436 = vsel %vm1104, %v2404, 0.0
      %v2437 = vsel %vm1105, %v2405, 0.0
      %v2438 = vsel %vm1106, %v2406, 0.0
      %v2439 = vsel %vm1107, %v2407, 0.0
      %v2440 = vsel %vm1108, %v2408, 0.0
      %v2441 = vsel %vm1109, %v2409, 0.0
      %v2442 = vsel %vm1110, %v2410, 0.0
      %v2443 = vsel %vm1111, %v2411, 0.0
      %v2444 = vsel %vm1112, %v2412, 0.0
      %v2445 = vsel %vm1113, %v2413, 0.0
      %v2446 = vsel %vm1114, %v2414, 0.0
      %v2447 = vsel %vm1115, %v2415, 0.0
      %v2448 = vsel %vm1116, %v2416, 0.0
      %v2449 = vsel %vm1117, %v2417, 0.0
      %v2450 = vsel %vm1118, %v2418, 0.0
      %v2451 = vsel %vm1119, %v2419, 0.0
      %v2452 = vsel %vm1120, %v2420, 0.0
      %v2453 = vsel %vm1121, %v2421, 0.0
      %v2454 = vsel %vm1122, %v2422, 0.0
      %v2455 = vsel %vm1123, %v2423, 0.0
      %v2456 = vsel %vm1124, %v2424, 0.0
      %v2457 = vsel %vm1125, %v2425, 0.0
      %v2458 = vsel %vm1126, %v2426, 0.0
      %v2459 = vsel %vm1127, %v2427, 0.0
      %v2460 = vsel %vm1128, %v2428, 0.0
      %v2461 = vsel %vm1129, %v2429, 0.0
      %v2462 = vsel %vm1130, %v2430, 0.0
      %v2463 = vsel %vm1131, %v2431, 0.0
      %2496 = vrot.lane.b32.xlu0 %v2432, 32
      %v2497 = vpop.permute.xlu0 %2496
      %2498 = vrot.lane.b32.xlu0 %v2433, 32
      %v2499 = vpop.permute.xlu0 %2498
      %2500 = vrot.lane.b32.xlu0 %v2434, 32
      %v2501 = vpop.permute.xlu0 %2500
      %2502 = vrot.lane.b32.xlu0 %v2435, 32
      %v2503 = vpop.permute.xlu0 %2502
      %2504 = vrot.lane.b32.xlu0 %v2436, 32
      %v2505 = vpop.permute.xlu0 %2504
      %2506 = vrot.lane.b32.xlu0 %v2437, 32
      %v2507 = vpop.permute.xlu0 %2506
      %2508 = vrot.lane.b32.xlu0 %v2438, 32
      %v2509 = vpop.permute.xlu0 %2508
      %2510 = vrot.lane.b32.xlu0 %v2439, 32
      %v2511 = vpop.permute.xlu0 %2510
      %2512 = vrot.lane.b32.xlu0 %v2440, 32
      %v2513 = vpop.permute.xlu0 %2512
      %2514 = vrot.lane.b32.xlu0 %v2441, 32
      %v2515 = vpop.permute.xlu0 %2514
      %2516 = vrot.lane.b32.xlu0 %v2442, 32
      %v2517 = vpop.permute.xlu0 %2516
      %2518 = vrot.lane.b32.xlu0 %v2443, 32
      %v2519 = vpop.permute.xlu0 %2518
      %2520 = vrot.lane.b32.xlu0 %v2444, 32
      %v2521 = vpop.permute.xlu0 %2520
      %2522 = vrot.lane.b32.xlu0 %v2445, 32
      %v2523 = vpop.permute.xlu0 %2522
      %2524 = vrot.lane.b32.xlu0 %v2446, 32
      %v2525 = vpop.permute.xlu0 %2524
      %2526 = vrot.lane.b32.xlu0 %v2447, 32
      %v2527 = vpop.permute.xlu0 %2526
      %2528 = vrot.lane.b32.xlu0 %v2448, 32
      %v2529 = vpop.permute.xlu0 %2528
      %2530 = vrot.lane.b32.xlu0 %v2449, 32
      %v2531 = vpop.permute.xlu0 %2530
      %2532 = vrot.lane.b32.xlu0 %v2450, 32
      %v2533 = vpop.permute.xlu0 %2532
      %2534 = vrot.lane.b32.xlu0 %v2451, 32
      %v2535 = vpop.permute.xlu0 %2534
      %2536 = vrot.lane.b32.xlu0 %v2452, 32
      %v2537 = vpop.permute.xlu0 %2536
      %2538 = vrot.lane.b32.xlu0 %v2453, 32
      %v2539 = vpop.permute.xlu0 %2538
      %2540 = vrot.lane.b32.xlu0 %v2454, 32
      %v2541 = vpop.permute.xlu0 %2540
      %2542 = vrot.lane.b32.xlu0 %v2455, 32
      %v2543 = vpop.permute.xlu0 %2542
      %2544 = vrot.lane.b32.xlu0 %v2456, 32
      %v2545 = vpop.permute.xlu0 %2544
      %2546 = vrot.lane.b32.xlu0 %v2457, 32
      %v2547 = vpop.permute.xlu0 %2546
      %2548 = vrot.lane.b32.xlu0 %v2458, 32
      %v2549 = vpop.permute.xlu0 %2548
      %2550 = vrot.lane.b32.xlu0 %v2459, 32
      %v2551 = vpop.permute.xlu0 %2550
      %2552 = vrot.lane.b32.xlu0 %v2460, 32
      %v2553 = vpop.permute.xlu0 %2552
      %2554 = vrot.lane.b32.xlu0 %v2461, 32
      %v2555 = vpop.permute.xlu0 %2554
      %2556 = vrot.lane.b32.xlu0 %v2462, 32
      %v2557 = vpop.permute.xlu0 %2556
      %2558 = vrot.lane.b32.xlu0 %v2463, 32
      %v2559 = vpop.permute.xlu0 %2558
      %vm2592 = vcmask 294144
      %2593 = vst.msk [vmem:[#allocation2] sm:$0xff] %vm2592, %v2497
      %2594 = vst.msk [vmem:[#allocation2 + $0x8] sm:$0xff] %vm2592, %v2499
      %2595 = vst.msk [vmem:[#allocation2 + $0x10] sm:$0xff] %vm2592, %v2501
      %2596 = vst.msk [vmem:[#allocation2 + $0x18] sm:$0xff] %vm2592, %v2503
      %2597 = vst.msk [vmem:[#allocation2 + $0x20] sm:$0xff] %vm2592, %v2505
      %2598 = vst.msk [vmem:[#allocation2 + $0x28] sm:$0xff] %vm2592, %v2507
      %2599 = vst.msk [vmem:[#allocation2 + $0x30] sm:$0xff] %vm2592, %v2509
      %2600 = vst.msk [vmem:[#allocation2 + $0x38] sm:$0xff] %vm2592, %v2511
      %2601 = vst.msk [vmem:[#allocation2 + $0x40] sm:$0xff] %vm2592, %v2513
      %2602 = vst.msk [vmem:[#allocation2 + $0x48] sm:$0xff] %vm2592, %v2515
      %2603 = vst.msk [vmem:[#allocation2 + $0x50] sm:$0xff] %vm2592, %v2517
      %2604 = vst.msk [vmem:[#allocation2 + $0x58] sm:$0xff] %vm2592, %v2519
      %2605 = vst.msk [vmem:[#allocation2 + $0x60] sm:$0xff] %vm2592, %v2521
      %2606 = vst.msk [vmem:[#allocation2 + $0x68] sm:$0xff] %vm2592, %v2523
      %2607 = vst.msk [vmem:[#allocation2 + $0x70] sm:$0xff] %vm2592, %v2525
      %2608 = vst.msk [vmem:[#allocation2 + $0x78] sm:$0xff] %vm2592, %v2527
      %2609 = vst.msk [vmem:[#allocation2 + $0x80] sm:$0xff] %vm2592, %v2529
      %2610 = vst.msk [vmem:[#allocation2 + $0x88] sm:$0xff] %vm2592, %v2531
      %2611 = vst.msk [vmem:[#allocation2 + $0x90] sm:$0xff] %vm2592, %v2533
      %2612 = vst.msk [vmem:[#allocation2 + $0x98] sm:$0xff] %vm2592, %v2535
      %2613 = vst.msk [vmem:[#allocation2 + $0xa0] sm:$0xff] %vm2592, %v2537
      %2614 = vst.msk [vmem:[#allocation2 + $0xa8] sm:$0xff] %vm2592, %v2539
      %2615 = vst.msk [vmem:[#allocation2 + $0xb0] sm:$0xff] %vm2592, %v2541
      %2616 = vst.msk [vmem:[#allocation2 + $0xb8] sm:$0xff] %vm2592, %v2543
      %2617 = vst.msk [vmem:[#allocation2 + $0xc0] sm:$0xff] %vm2592, %v2545
      %2618 = vst.msk [vmem:[#allocation2 + $0xc8] sm:$0xff] %vm2592, %v2547
      %2619 = vst.msk [vmem:[#allocation2 + $0xd0] sm:$0xff] %vm2592, %v2549
      %2620 = vst.msk [vmem:[#allocation2 + $0xd8] sm:$0xff] %vm2592, %v2551
      %2621 = vst.msk [vmem:[#allocation2 + $0xe0] sm:$0xff] %vm2592, %v2553
      %2622 = vst.msk [vmem:[#allocation2 + $0xe8] sm:$0xff] %vm2592, %v2555
      %2623 = vst.msk [vmem:[#allocation2 + $0xf0] sm:$0xff] %vm2592, %v2557
      %2624 = vst.msk [vmem:[#allocation2 + $0xf8] sm:$0xff] %vm2592, %v2559
      %v2625 = vld [vmem:[%s1] sm:$0xff]
      %v2626 = vld [vmem:[#allocation2] sm:$0xff]
      %v2627 = vld [vmem:[#allocation2 + $0x8] sm:$0xff]
      %v2628 = vld [vmem:[#allocation2 + $0x10] sm:$0xff]
      %v2629 = vld [vmem:[#allocation2 + $0x18] sm:$0xff]
      %v2630 = vld [vmem:[#allocation2 + $0x20] sm:$0xff]
      %v2631 = vld [vmem:[#allocation2 + $0x28] sm:$0xff]
      %v2632 = vld [vmem:[#allocation2 + $0x30] sm:$0xff]
      %v2633 = vld [vmem:[#allocation2 + $0x38] sm:$0xff]
      %v2634 = vld [vmem:[#allocation2 + $0x40] sm:$0xff]
      %v2635 = vld [vmem:[#allocation2 + $0x48] sm:$0xff]
      %v2636 = vld [vmem:[#allocation2 + $0x50] sm:$0xff]
      %v2637 = vld [vmem:[#allocation2 + $0x58] sm:$0xff]
      %v2638 = vld [vmem:[#allocation2 + $0x60] sm:$0xff]
      %v2639 = vld [vmem:[#allocation2 + $0x68] sm:$0xff]
      %v2640 = vld [vmem:[#allocation2 + $0x70] sm:$0xff]
      %v2641 = vld [vmem:[#allocation2 + $0x78] sm:$0xff]
      %v2642 = vld [vmem:[#allocation2 + $0x80] sm:$0xff]
      %v2643 = vld [vmem:[#allocation2 + $0x88] sm:$0xff]
      %v2644 = vld [vmem:[#allocation2 + $0x90] sm:$0xff]
      %v2645 = vld [vmem:[#allocation2 + $0x98] sm:$0xff]
      %v2646 = vld [vmem:[#allocation2 + $0xa0] sm:$0xff]
      %v2647 = vld [vmem:[#allocation2 + $0xa8] sm:$0xff]
      %v2648 = vld [vmem:[#allocation2 + $0xb0] sm:$0xff]
      %v2649 = vld [vmem:[#allocation2 + $0xb8] sm:$0xff]
      %v2650 = vld [vmem:[#allocation2 + $0xc0] sm:$0xff]
      %v2651 = vld [vmem:[#allocation2 + $0xc8] sm:$0xff]
      %v2652 = vld [vmem:[#allocation2 + $0xd0] sm:$0xff]
      %v2653 = vld [vmem:[#allocation2 + $0xd8] sm:$0xff]
      %v2654 = vld [vmem:[#allocation2 + $0xe0] sm:$0xff]
      %v2655 = vld [vmem:[#allocation2 + $0xe8] sm:$0xff]
      %v2656 = vld [vmem:[#allocation2 + $0xf0] sm:$0xff]
      %v2657 = vld [vmem:[#allocation2 + $0xf8] sm:$0xff]
      %v2658 = vld [vmem:[%s2] sm:$0xff]
      %2660 = vset.pattern.permute.xlu0 0
      %2661 = vperm.xlu0 %2660, %v2658
      %v2662 = vpop.permute.xlu0 %2661
      %vm2664 = vcmask 293888
      %v2666 = vsel %vm2664, %v2625, 0
      %v2669 = vsel %vm2664, %v2626, 0
      %v2672 = vsel %vm2664, %v2627, 0
      %v2675 = vsel %vm2664, %v2628, 0
      %v2678 = vsel %vm2664, %v2629, 0
      %v2681 = vsel %vm2664, %v2630, 0
      %v2684 = vsel %vm2664, %v2631, 0
      %v2687 = vsel %vm2664, %v2632, 0
      %v2690 = vsel %vm2664, %v2633, 0
      %v2693 = vsel %vm2664, %v2634, 0
      %v2696 = vsel %vm2664, %v2635, 0
      %v2699 = vsel %vm2664, %v2636, 0
      %v2702 = vsel %vm2664, %v2637, 0
      %v2705 = vsel %vm2664, %v2638, 0
      %v2708 = vsel %vm2664, %v2639, 0
      %v2711 = vsel %vm2664, %v2640, 0
      %v2714 = vsel %vm2664, %v2641, 0
      %v2717 = vsel %vm2664, %v2642, 0
      %v2720 = vsel %vm2664, %v2643, 0
      %v2723 = vsel %vm2664, %v2644, 0
      %v2726 = vsel %vm2664, %v2645, 0
      %v2729 = vsel %vm2664, %v2646, 0
      %v2732 = vsel %vm2664, %v2647, 0
      %v2735 = vsel %vm2664, %v2648, 0
      %v2738 = vsel %vm2664, %v2649, 0
      %v2741 = vsel %vm2664, %v2650, 0
      %v2744 = vsel %vm2664, %v2651, 0
      %v2747 = vsel %vm2664, %v2652, 0
      %v2750 = vsel %vm2664, %v2653, 0
      %v2753 = vsel %vm2664, %v2654, 0
      %v2756 = vsel %vm2664, %v2655, 0
      %v2759 = vsel %vm2664, %v2656, 0
      %v2762 = vsel %vm2664, %v2657, 0
      %2764 = vmatpush.xpose.msra.mxu0 %v2714
      %2765 = vmatpush.xpose.msra.mxu0 %v2711
      %2766 = vmatpush.xpose.msra.mxu0 %v2708
      %2767 = vmatpush.xpose.msra.mxu0 %v2705
      %2768 = vmatpush.xpose.msra.mxu0 %v2702
      %2769 = vmatpush.xpose.msra.mxu0 %v2699
      %2770 = vmatpush.xpose.msra.mxu0 %v2696
      %2771 = vmatpush.xpose.msra.mxu0 %v2693
      %2772 = vmatpush.xpose.msra.mxu0 %v2690
      %2773 = vmatpush.xpose.msra.mxu0 %v2687
      %2774 = vmatpush.xpose.msra.mxu0 %v2684
      %2775 = vmatpush.xpose.msra.mxu0 %v2681
      %2776 = vmatpush.xpose.msra.mxu0 %v2678
      %2777 = vmatpush.xpose.msra.mxu0 %v2675
      %2778 = vmatpush.xpose.msra.mxu0 %v2672
      %2779 = vmatpush.xpose.msra.mxu0 %v2669
      %2780 = vmatmul.f32.gmra.mxu0 %v2666
      %v2781 = vpop.f32.mrf.mxu0
      %v2782 = vadd.f32 %v2662, %v2781
      %2783 = vdwg.mxu0
      %2784 = vmatpush.xpose.msra.mxu0 %v2762
      %2785 = vmatpush.xpose.msra.mxu0 %v2759
      %2786 = vmatpush.xpose.msra.mxu0 %v2756
      %2787 = vmatpush.xpose.msra.mxu0 %v2753
      %2788 = vmatpush.xpose.msra.mxu0 %v2750
      %2789 = vmatpush.xpose.msra.mxu0 %v2747
      %2790 = vmatpush.xpose.msra.mxu0 %v2744
      %2791 = vmatpush.xpose.msra.mxu0 %v2741
      %2792 = vmatpush.xpose.msra.mxu0 %v2738
      %2793 = vmatpush.xpose.msra.mxu0 %v2735
      %2794 = vmatpush.xpose.msra.mxu0 %v2732
      %2795 = vmatpush.xpose.msra.mxu0 %v2729
      %2796 = vmatpush.xpose.msra.mxu0 %v2726
      %2797 = vmatpush.xpose.msra.mxu0 %v2723
      %2798 = vmatpush.xpose.msra.mxu0 %v2720
      %2799 = vmatpush.xpose.msra.mxu0 %v2717
      %2800 = vmatmul.f32.gmra.mxu0 %v2666
      %v2801 = vpop.f32.mrf.mxu0
      %v2802 = vadd.f32 %v2662, %v2801
      %2803 = vdwg.mxu0
      %vm2804 = vcmp.ge.f32.partialorder %v2782, 0.0
      %vm2805 = vcmp.ge.f32.partialorder %v2802, 0.0
      %v2806 = vmul.f32 %v2782, 0.01
      %v2807 = vmul.f32 %v2802, 0.01
      %v2808 = vsel %vm2804, %v2782, %v2806
      %v2809 = vsel %vm2805, %v2802, %v2807
      %2810 = vst [vmem:[%s192] sm:$0xff] %v2808
      %2811 = vst [vmem:[%s192 + $0x8] sm:$0xff] %v2809
      %s2812 = smul.u32 2, %s19
      %p2813 = scmp.lt.s32.totalorder %s18, 1
      %s2814 = scalar_select %p2813, %s18, 1
      %p2815 = scmp.lt.s32.totalorder %s2812, 1
      %s2816 = scalar_select %p2815, %s2812, 1
      %s2817 = smul.addr %s2814, 2
      %s2818 = sadd.s32 %s2816, %s2817
      %s2819 = smul.addr %s2818, 8
      %s2820 = scalar_lea.vmem %s3, %s2819
      // Predicated region
      $region33: #{single_conv_relu_batch_fwd.3} parent=31 // pred_check
        %p2821 = pneg %p114
      $region34: #{single_conv_relu_batch_fwd.3} parent=31 // pred_check_branch
        %2823 = sbr.rel (%p2821) target = $region36
      $region35: #{single_conv_relu_batch_fwd.3} parent=31 // pred_region
        %s2824 = smul.u32 2, %s19
      $region36: #{single_conv_relu_batch_fwd.3} parent=31 // pred_fallthru
        _
    $region32: #{single_conv_relu_batch_fwd.3} parent=5 // pred_fallthru
      _
    %p2825 = scmp.le.s32.totalorder 2, %s9
    // Predicated region
    $region37: #{single_conv_relu_batch_fwd.3} parent=5 // pred_check
      %p2826 = pneg %p2825
    $region38: #{single_conv_relu_batch_fwd.3} parent=5 // pred_check_branch
      %2828 = sbr.rel (%p2826) target = $region40
    $region39: #{single_conv_relu_batch_fwd.3} parent=5 // pred_region
      %s2829 = ssub.s32 %s9, 2
      // Predicated region
      $region41: #{single_conv_relu_batch_fwd.3} parent=39 // pred_check
        %p2830 = pneg %p120
      $region42: #{single_conv_relu_batch_fwd.3} parent=39 // pred_check_branch
        %2832 = sbr.rel (%p2830) target = $region44
      $region43: #{single_conv_relu_batch_fwd.3} parent=39 // pred_region
        %s2833 = smul.u32 2, %s21
        %p2834 = scmp.lt.s32.totalorder %s20, 1
        %s2835 = scalar_select %p2834, %s20, 1
        %p2836 = scmp.lt.s32.totalorder %s2833, 1
        %s2837 = scalar_select %p2836, %s2833, 1
        %s2838 = smul.addr %s2835, 2
        %s2839 = sadd.s32 %s2837, %s2838
        %s2840 = smul.addr %s2839, 8
        %s2841 = scalar_lea.vmem %s3, %s2840
      $region44: #{single_conv_relu_batch_fwd.3} parent=39 // pred_fallthru
        _
    $region40: #{single_conv_relu_batch_fwd.3} parent=5 // pred_fallthru
      _
  $region6: #{single_conv_relu_batch_fwd.3} parent=0 // loop_footer
    %s13 = sadd.s32 1, %s9
  $region7: #{single_conv_relu_batch_fwd.3} parent=0 // loop_footer_branch
    %8 = sbr.rel target = $region3
  $region8: #{single_conv_relu_batch_fwd.3} parent=0 // loop_exit
    _

// kernel: single_conv_relu_batch_fwd.2
$region0: #{single_conv_relu_batch_fwd.2}
  #allocation0 [shape = 'u32[]', space=smem, size = 0x4, offset = 0x4, fixed_abs, tag = 'smem constant byte address 0x4 - core index']
  #allocation1 [shape = 'u32[72,128]{1,0:T(1,128)}', space=vmem, size = 0x9000, scoped, tag = 'internal scratch']
  #allocation2 [shape = 'f32[256,36]{1,0:T(8,128)}', space=vmem, size = 0x20000, scoped, tag = 'scratch operand']
  %s0 = inlined_call_operand.vmem [shape: f32[2,290,4], index: 0, kind: input, shape index: {}]
  %s1 = inlined_call_operand.vmem [shape: f32[8,36], index: 1, kind: input, shape index: {}]
  %s2 = inlined_call_operand.vmem [shape: f32[2,1,8,1], index: 2, kind: output, shape index: {0}]
  %s3 = inlined_call_operand.vmem [shape: f32[2,1,8,1], index: 3, kind: output, shape index: {1}]
  %4 = xla_tuple %s2, %s3
  %s5 = sld [smem:[#allocation0]]
  $region49: #{single_conv_relu_batch_fwd.2} parent=0
    _
  %s7 = ssub.s32 1, %s5
  %s8 = scalar_select 0, %s7, %s5
  loop: start=0, step=1, limit=4
  $region2: #{single_conv_relu_batch_fwd.2} parent=0 // loop_pre_header
    _
  $region3: #{single_conv_relu_batch_fwd.2} parent=0 // loop_header
    %s10 = sphi 0, %s14
    %p11 = scmp.ge.s32.totalorder %s10, 4
    %s17 = sphi 0, %s29
    %s18 = sphi 0, %s25
    %s19 = sphi 0, %s17
    %s20 = sphi 0, %s18
    %s21 = sphi 0, %s19
    %s22 = sphi 0, %s20
    %s32 = sphi 0, %s34
    %s35 = sphi 0, %s32
    %s36 = sphi 0, %s35
    %s52 = sphi 0, %s36
    %s56 = sphi 0, %s56
    %s58 = sphi 0, %s56
    %s59 = sphi 0, %s58
    %s73 = sphi 0, %s59
    %s81 = sphi 0, %s83
    %s84 = sphi 0, %s81
    %s85 = sphi 0, %s84
    %s101 = sphi 0, %s85
    %s109 = sphi 0, %s111
    %s112 = sphi 0, %s109
    %s113 = sphi 0, %s112
    %s129 = sphi 0, %s113
  $region4: #{single_conv_relu_batch_fwd.2} parent=0 // loop_header_branch
    %13 = sbr.rel (%p11) target = $region8
  $region5: #{single_conv_relu_batch_fwd.2} parent=0 // loop_body
    %s15 = ssub.s32 %s10, 1
    %s16 = ssub.s32 %s10, 2
    %s23 = sadd.s32 1, %s18
    %p24 = scmp.ge.s32.totalorder %s23, 1
    %s25 = scalar_select %p24, 0, %s23
    %s26 = sadd.s32 1, %s17
    %s27 = scalar_select %p24, %s26, %s17
    %p28 = scmp.ge.s32.totalorder %s27, 2
    %s29 = scalar_select %p28, 0, %s27
    %s30 = ssub.s32 %s17, %s29
    %p31 = scmp.eq.s32.totalorder %s30, 0
    %s33 = sadd.s32 %s32, 1
    %s34 = scalar_select %p31, %s32, %s33
    %p37 = pneg %p31
    %p38 = scmp.eq.s32.totalorder %s10, 1
    %p39 = por %p37, %p38
    %p40 = scmp.ne.s32.totalorder %s32, %s35
    %p41 = scmp.eq.s32.totalorder %s10, 0
    %p42 = por %p40, %p41
    %p43 = scmp.ne.s32.totalorder %s32, %s35
    %p44 = scmp.eq.s32.totalorder %s15, 1
    %p45 = por %p43, %p44
    %p46 = scmp.ne.s32.totalorder %s35, %s36
    %p47 = scmp.eq.s32.totalorder %s15, 0
    %p48 = por %p46, %p47
    %p49 = scmp.ne.s32.totalorder %s35, %s36
    %p50 = scmp.eq.s32.totalorder %s16, 1
    %p51 = por %p49, %p50
    %p53 = scmp.ne.s32.totalorder %s36, %s52
    %p54 = scmp.eq.s32.totalorder %s16, 0
    %p55 = por %p53, %p54
    %s57 = sadd.s32 %s56, 1
    %p60 = scmp.eq.s32.totalorder %s10, 1
    %p61 = scmp.ne.s32.totalorder %s56, %s58
    %p62 = scmp.eq.s32.totalorder %s10, 0
    %p63 = por %p61, %p62
    %p64 = scmp.ne.s32.totalorder %s56, %s58
    %p65 = scmp.eq.s32.totalorder %s15, 1
    %p66 = por %p64, %p65
    %p67 = scmp.ne.s32.totalorder %s58, %s59
    %p68 = scmp.eq.s32.totalorder %s15, 0
    %p69 = por %p67, %p68
    %p70 = scmp.ne.s32.totalorder %s58, %s59
    %p71 = scmp.eq.s32.totalorder %s16, 1
    %p72 = por %p70, %p71
    %p74 = scmp.ne.s32.totalorder %s59, %s73
    %p75 = scmp.eq.s32.totalorder %s16, 0
    %p76 = por %p74, %p75
    %s77 = ssub.s32 %s17, %s29
    %s78 = ssub.s32 %s18, %s25
    %s79 = sor.u32 %s77, %s78
    %p80 = scmp.eq.s32.totalorder %s79, 0
    %s82 = sadd.s32 %s81, 1
    %s83 = scalar_select %p80, %s81, %s82
    %p86 = pneg %p80
    %p87 = scmp.eq.s32.totalorder %s10, 1
    %p88 = por %p86, %p87
    %p89 = scmp.ne.s32.totalorder %s81, %s84
    %p90 = scmp.eq.s32.totalorder %s10, 0
    %p91 = por %p89, %p90
    %p92 = scmp.ne.s32.totalorder %s81, %s84
    %p93 = scmp.eq.s32.totalorder %s15, 1
    %p94 = por %p92, %p93
    %p95 = scmp.ne.s32.totalorder %s84, %s85
    %p96 = scmp.eq.s32.totalorder %s15, 0
    %p97 = por %p95, %p96
    %p98 = scmp.ne.s32.totalorder %s84, %s85
    %p99 = scmp.eq.s32.totalorder %s16, 1
    %p100 = por %p98, %p99
    %p102 = scmp.ne.s32.totalorder %s85, %s101
    %p103 = scmp.eq.s32.totalorder %s16, 0
    %p104 = por %p102, %p103
    %s105 = ssub.s32 %s17, %s29
    %s106 = ssub.s32 %s18, %s25
    %s107 = sor.u32 %s105, %s106
    %p108 = scmp.eq.s32.totalorder %s107, 0
    %s110 = sadd.s32 %s109, 1
    %s111 = scalar_select %p108, %s109, %s110
    %p114 = pneg %p108
    %p115 = scmp.eq.s32.totalorder %s10, 1
    %p116 = por %p114, %p115
    %p117 = scmp.ne.s32.totalorder %s109, %s112
    %p118 = scmp.eq.s32.totalorder %s10, 0
    %p119 = por %p117, %p118
    %p120 = scmp.ne.s32.totalorder %s109, %s112
    %p121 = scmp.eq.s32.totalorder %s15, 1
    %p122 = por %p120, %p121
    %p123 = scmp.ne.s32.totalorder %s112, %s113
    %p124 = scmp.eq.s32.totalorder %s15, 0
    %p125 = por %p123, %p124
    %p126 = scmp.ne.s32.totalorder %s112, %s113
    %p127 = scmp.eq.s32.totalorder %s16, 1
    %p128 = por %p126, %p127
    %p130 = scmp.ne.s32.totalorder %s113, %s129
    %p131 = scmp.eq.s32.totalorder %s16, 0
    %p132 = por %p130, %p131
    %p133 = scmp.le.s32.totalorder 1, %s10
    %p134 = scmp.lt.s32.totalorder %s10, 3
    %p135 = pnand %p133, %p134
    %p136 = pneg %p135
    // Predicated region
    $region9: #{single_conv_relu_batch_fwd.2} parent=5 // pred_check
      _
    $region10: #{single_conv_relu_batch_fwd.2} parent=5 // pred_check_branch
      %138 = sbr.rel (%p135) target = $region12
    $region11: #{single_conv_relu_batch_fwd.2} parent=5 // pred_region
      %s139 = ssub.s32 %s10, 1
      // Predicated region
      $region13: #{single_conv_relu_batch_fwd.2} parent=11 // pred_check
        %p140 = pneg %p69
      $region14: #{single_conv_relu_batch_fwd.2} parent=11 // pred_check_branch
        %142 = sbr.rel (%p140) target = $region16
      $region15: #{single_conv_relu_batch_fwd.2} parent=11 // pred_region
        _
      $region16: #{single_conv_relu_batch_fwd.2} parent=11 // pred_fallthru
        _
    $region12: #{single_conv_relu_batch_fwd.2} parent=5 // pred_fallthru
      _
    %p143 = scmp.lt.s32.totalorder %s10, 2
    // Predicated region
    $region17: #{single_conv_relu_batch_fwd.2} parent=5 // pred_check
      %p144 = pneg %p143
    $region18: #{single_conv_relu_batch_fwd.2} parent=5 // pred_check_branch
      %146 = sbr.rel (%p144) target = $region20
    $region19: #{single_conv_relu_batch_fwd.2} parent=5 // pred_region
      // Predicated region
      $region21: #{single_conv_relu_batch_fwd.2} parent=19 // pred_check
        %p147 = pneg %p42
      $region22: #{single_conv_relu_batch_fwd.2} parent=19 // pred_check_branch
        %149 = sbr.rel (%p147) target = $region24
      $region23: #{single_conv_relu_batch_fwd.2} parent=19 // pred_region
        %p150 = scmp.lt.s32.totalorder %s17, 1
        %s151 = scalar_select %p150, %s17, 1
        %s152 = smul.addr %s151, 37
        %s153 = smul.addr %s152, 8
        %s154 = scalar_lea.vmem %s0, %s153
      $region24: #{single_conv_relu_batch_fwd.2} parent=19 // pred_fallthru
        _
    $region20: #{single_conv_relu_batch_fwd.2} parent=5 // pred_fallthru
      _
    %p155 = scmp.le.s32.totalorder 1, %s10
    %p156 = scmp.lt.s32.totalorder %s10, 3
    %p157 = pnand %p155, %p156
    %p158 = pneg %p157
    // Predicated region
    $region25: #{single_conv_relu_batch_fwd.2} parent=5 // pred_check
      _
    $region26: #{single_conv_relu_batch_fwd.2} parent=5 // pred_check_branch
      %160 = sbr.rel (%p157) target = $region28
    $region27: #{single_conv_relu_batch_fwd.2} parent=5 // pred_region
      %s161 = ssub.s32 %s10, 1
      %p162 = scmp.lt.s32.totalorder %s19, 1
      %s163 = scalar_select %p162, %s19, 1
      %s164 = smul.addr %s163, 37
      %s165 = smul.addr %s164, 8
      %s166 = scalar_lea.vmem %s0, %s165
      %p167 = pneg %p48
      %p168 = pneg %p45
      %p169 = pneg %p69
      %p170 = pneg %p66
      %p171 = pneg %p97
      %p172 = pneg %p94
      %p173 = scmp.lt.s32.totalorder %s19, 1
      %s174 = scalar_select %p173, %s19, 1
      %p175 = scmp.lt.s32.totalorder %s20, 0
      %s176 = scalar_select %p175, %s20, 0
      %s177 = sadd.s32 %s176, %s174
      %s178 = smul.addr %s177, 8
      %s179 = scalar_lea.vmem %s2, %s178
      %p180 = pneg %p125
      %p181 = pneg %p122
      %p182 = scmp.lt.s32.totalorder %s19, 1
      %s183 = scalar_select %p182, %s19, 1
      %p184 = scmp.lt.s32.totalorder %s20, 0
      %s185 = scalar_select %p184, %s20, 0
      %s186 = sadd.s32 %s185, %s183
      %s187 = smul.addr %s186, 8
      %s188 = scalar_lea.vmem %s3, %s187
      %p189 = scmp.lt.s32.totalorder %s19, 1
      %s190 = scalar_select %p189, %s19, 1
      %s191 = smul.addr %s190, 37
      %s192 = smul.addr %s191, 8
      %s193 = scalar_lea.vmem %s0, %s192
      %p194 = scmp.lt.s32.totalorder %s19, 1
      %s195 = scalar_select %p194, %s19, 1
      %p196 = scmp.lt.s32.totalorder %s20, 0
      %s197 = scalar_select %p196, %s20, 0
      %s198 = sadd.s32 %s197, %s195
      %s199 = smul.addr %s198, 8
      %s200 = scalar_lea.vmem %s2, %s199
      %p201 = scmp.lt.s32.totalorder %s19, 1
      %s202 = scalar_select %p201, %s19, 1
      %p203 = scmp.lt.s32.totalorder %s20, 0
      %s204 = scalar_select %p203, %s20, 0
      %s205 = sadd.s32 %s204, %s202
      %s206 = smul.addr %s205, 8
      %s207 = scalar_lea.vmem %s3, %s206
      %s208 = smul.u32 %s20, 16
      %v209 = vlaneseq
      %v210 = vshrl.u32 %v209, 7
      %v211 = vadd.s32 %v210, 8
      %v212 = vadd.s32 %v210, 16
      %v213 = vadd.s32 %v210, 24
      %v214 = vadd.s32 %v210, 32
      %v215 = vadd.s32 %v210, 40
      %v216 = vadd.s32 %v210, 48
      %v217 = vadd.s32 %v210, 56
      %v218 = vadd.s32 %v210, 64
      %v219 = vadd.s32 %v210, 72
      %v220 = vadd.s32 %v210, 80
      %v221 = vadd.s32 %v210, 88
      %v222 = vadd.s32 %v210, 96
      %v223 = vadd.s32 %v210, 104
      %v224 = vadd.s32 %v210, 112
      %v225 = vadd.s32 %v210, 120
      %v226 = vadd.s32 %v210, 128
      %v227 = vadd.s32 %v210, 136
      %v228 = vadd.s32 %v210, 144
      %v229 = vadd.s32 %v210, 152
      %v230 = vadd.s32 %v210, 160
      %v231 = vadd.s32 %v210, 168
      %v232 = vadd.s32 %v210, 176
      %v233 = vadd.s32 %v210, 184
      %v234 = vadd.s32 %v210, 192
      %v235 = vadd.s32 %v210, 200
      %v236 = vadd.s32 %v210, 208
      %v237 = vadd.s32 %v210, 216
      %v238 = vadd.s32 %v210, 224
      %v239 = vadd.s32 %v210, 232
      %v240 = vadd.s32 %v210, 240
      %v241 = vadd.s32 %v210, 248
      %vm242 = vcmp.lt.s32.totalorder %v210, 0
      %v243 = vsub.s32 0, %v210
      %v244 = vsel %vm242, %v243, %v210
      %v245 = vshrl.u32 %v244, 4
      %v246 = vand.u32 %v244, 15
      %v247 = vsub.s32 0, %v246
      %v248 = vsel %vm242, %v247, %v246
      %vm249 = vcmp.lt.s32.totalorder %v211, 0
      %v250 = vsub.s32 0, %v211
      %v251 = vsel %vm249, %v250, %v211
      %v252 = vshrl.u32 %v251, 4
      %v253 = vand.u32 %v251, 15
      %v254 = vsub.s32 0, %v253
      %v255 = vsel %vm249, %v254, %v253
      %vm256 = vcmp.lt.s32.totalorder %v212, 0
      %v257 = vsub.s32 0, %v212
      %v258 = vsel %vm256, %v257, %v212
      %v259 = vshrl.u32 %v258, 4
      %v260 = vand.u32 %v258, 15
      %v261 = vsub.s32 0, %v260
      %v262 = vsel %vm256, %v261, %v260
      %vm263 = vcmp.lt.s32.totalorder %v213, 0
      %v264 = vsub.s32 0, %v213
      %v265 = vsel %vm263, %v264, %v213
      %v266 = vshrl.u32 %v265, 4
      %v267 = vand.u32 %v265, 15
      %v268 = vsub.s32 0, %v267
      %v269 = vsel %vm263, %v268, %v267
      %vm270 = vcmp.lt.s32.totalorder %v214, 0
      %v271 = vsub.s32 0, %v214
      %v272 = vsel %vm270, %v271, %v214
      %v273 = vshrl.u32 %v272, 4
      %v274 = vand.u32 %v272, 15
      %v275 = vsub.s32 0, %v274
      %v276 = vsel %vm270, %v275, %v274
      %vm277 = vcmp.lt.s32.totalorder %v215, 0
      %v278 = vsub.s32 0, %v215
      %v279 = vsel %vm277, %v278, %v215
      %v280 = vshrl.u32 %v279, 4
      %v281 = vand.u32 %v279, 15
      %v282 = vsub.s32 0, %v281
      %v283 = vsel %vm277, %v282, %v281
      %vm284 = vcmp.lt.s32.totalorder %v216, 0
      %v285 = vsub.s32 0, %v216
      %v286 = vsel %vm284, %v285, %v216
      %v287 = vshrl.u32 %v286, 4
      %v288 = vand.u32 %v286, 15
      %v289 = vsub.s32 0, %v288
      %v290 = vsel %vm284, %v289, %v288
      %vm291 = vcmp.lt.s32.totalorder %v217, 0
      %v292 = vsub.s32 0, %v217
      %v293 = vsel %vm291, %v292, %v217
      %v294 = vshrl.u32 %v293, 4
      %v295 = vand.u32 %v293, 15
      %v296 = vsub.s32 0, %v295
      %v297 = vsel %vm291, %v296, %v295
      %vm298 = vcmp.lt.s32.totalorder %v218, 0
      %v299 = vsub.s32 0, %v218
      %v300 = vsel %vm298, %v299, %v218
      %v301 = vshrl.u32 %v300, 4
      %v302 = vand.u32 %v300, 15
      %v303 = vsub.s32 0, %v302
      %v304 = vsel %vm298, %v303, %v302
      %vm305 = vcmp.lt.s32.totalorder %v219, 0
      %v306 = vsub.s32 0, %v219
      %v307 = vsel %vm305, %v306, %v219
      %v308 = vshrl.u32 %v307, 4
      %v309 = vand.u32 %v307, 15
      %v310 = vsub.s32 0, %v309
      %v311 = vsel %vm305, %v310, %v309
      %vm312 = vcmp.lt.s32.totalorder %v220, 0
      %v313 = vsub.s32 0, %v220
      %v314 = vsel %vm312, %v313, %v220
      %v315 = vshrl.u32 %v314, 4
      %v316 = vand.u32 %v314, 15
      %v317 = vsub.s32 0, %v316
      %v318 = vsel %vm312, %v317, %v316
      %vm319 = vcmp.lt.s32.totalorder %v221, 0
      %v320 = vsub.s32 0, %v221
      %v321 = vsel %vm319, %v320, %v221
      %v322 = vshrl.u32 %v321, 4
      %v323 = vand.u32 %v321, 15
      %v324 = vsub.s32 0, %v323
      %v325 = vsel %vm319, %v324, %v323
      %vm326 = vcmp.lt.s32.totalorder %v222, 0
      %v327 = vsub.s32 0, %v222
      %v328 = vsel %vm326, %v327, %v222
      %v329 = vshrl.u32 %v328, 4
      %v330 = vand.u32 %v328, 15
      %v331 = vsub.s32 0, %v330
      %v332 = vsel %vm326, %v331, %v330
      %vm333 = vcmp.lt.s32.totalorder %v223, 0
      %v334 = vsub.s32 0, %v223
      %v335 = vsel %vm333, %v334, %v223
      %v336 = vshrl.u32 %v335, 4
      %v337 = vand.u32 %v335, 15
      %v338 = vsub.s32 0, %v337
      %v339 = vsel %vm333, %v338, %v337
      %vm340 = vcmp.lt.s32.totalorder %v224, 0
      %v341 = vsub.s32 0, %v224
      %v342 = vsel %vm340, %v341, %v224
      %v343 = vshrl.u32 %v342, 4
      %v344 = vand.u32 %v342, 15
      %v345 = vsub.s32 0, %v344
      %v346 = vsel %vm340, %v345, %v344
      %vm347 = vcmp.lt.s32.totalorder %v225, 0
      %v348 = vsub.s32 0, %v225
      %v349 = vsel %vm347, %v348, %v225
      %v350 = vshrl.u32 %v349, 4
      %v351 = vand.u32 %v349, 15
      %v352 = vsub.s32 0, %v351
      %v353 = vsel %vm347, %v352, %v351
      %vm354 = vcmp.lt.s32.totalorder %v226, 0
      %v355 = vsub.s32 0, %v226
      %v356 = vsel %vm354, %v355, %v226
      %v357 = vshrl.u32 %v356, 4
      %v358 = vand.u32 %v356, 15
      %v359 = vsub.s32 0, %v358
      %v360 = vsel %vm354, %v359, %v358
      %vm361 = vcmp.lt.s32.totalorder %v227, 0
      %v362 = vsub.s32 0, %v227
      %v363 = vsel %vm361, %v362, %v227
      %v364 = vshrl.u32 %v363, 4
      %v365 = vand.u32 %v363, 15
      %v366 = vsub.s32 0, %v365
      %v367 = vsel %vm361, %v366, %v365
      %vm368 = vcmp.lt.s32.totalorder %v228, 0
      %v369 = vsub.s32 0, %v228
      %v370 = vsel %vm368, %v369, %v228
      %v371 = vshrl.u32 %v370, 4
      %v372 = vand.u32 %v370, 15
      %v373 = vsub.s32 0, %v372
      %v374 = vsel %vm368, %v373, %v372
      %vm375 = vcmp.lt.s32.totalorder %v229, 0
      %v376 = vsub.s32 0, %v229
      %v377 = vsel %vm375, %v376, %v229
      %v378 = vshrl.u32 %v377, 4
      %v379 = vand.u32 %v377, 15
      %v380 = vsub.s32 0, %v379
      %v381 = vsel %vm375, %v380, %v379
      %vm382 = vcmp.lt.s32.totalorder %v230, 0
      %v383 = vsub.s32 0, %v230
      %v384 = vsel %vm382, %v383, %v230
      %v385 = vshrl.u32 %v384, 4
      %v386 = vand.u32 %v384, 15
      %v387 = vsub.s32 0, %v386
      %v388 = vsel %vm382, %v387, %v386
      %vm389 = vcmp.lt.s32.totalorder %v231, 0
      %v390 = vsub.s32 0, %v231
      %v391 = vsel %vm389, %v390, %v231
      %v392 = vshrl.u32 %v391, 4
      %v393 = vand.u32 %v391, 15
      %v394 = vsub.s32 0, %v393
      %v395 = vsel %vm389, %v394, %v393
      %vm396 = vcmp.lt.s32.totalorder %v232, 0
      %v397 = vsub.s32 0, %v232
      %v398 = vsel %vm396, %v397, %v232
      %v399 = vshrl.u32 %v398, 4
      %v400 = vand.u32 %v398, 15
      %v401 = vsub.s32 0, %v400
      %v402 = vsel %vm396, %v401, %v400
      %vm403 = vcmp.lt.s32.totalorder %v233, 0
      %v404 = vsub.s32 0, %v233
      %v405 = vsel %vm403, %v404, %v233
      %v406 = vshrl.u32 %v405, 4
      %v407 = vand.u32 %v405, 15
      %v408 = vsub.s32 0, %v407
      %v409 = vsel %vm403, %v408, %v407
      %vm410 = vcmp.lt.s32.totalorder %v234, 0
      %v411 = vsub.s32 0, %v234
      %v412 = vsel %vm410, %v411, %v234
      %v413 = vshrl.u32 %v412, 4
      %v414 = vand.u32 %v412, 15
      %v415 = vsub.s32 0, %v414
      %v416 = vsel %vm410, %v415, %v414
      %vm417 = vcmp.lt.s32.totalorder %v235, 0
      %v418 = vsub.s32 0, %v235
      %v419 = vsel %vm417, %v418, %v235
      %v420 = vshrl.u32 %v419, 4
      %v421 = vand.u32 %v419, 15
      %v422 = vsub.s32 0, %v421
      %v423 = vsel %vm417, %v422, %v421
      %vm424 = vcmp.lt.s32.totalorder %v236, 0
      %v425 = vsub.s32 0, %v236
      %v426 = vsel %vm424, %v425, %v236
      %v427 = vshrl.u32 %v426, 4
      %v428 = vand.u32 %v426, 15
      %v429 = vsub.s32 0, %v428
      %v430 = vsel %vm424, %v429, %v428
      %vm431 = vcmp.lt.s32.totalorder %v237, 0
      %v432 = vsub.s32 0, %v237
      %v433 = vsel %vm431, %v432, %v237
      %v434 = vshrl.u32 %v433, 4
      %v435 = vand.u32 %v433, 15
      %v436 = vsub.s32 0, %v435
      %v437 = vsel %vm431, %v436, %v435
      %vm438 = vcmp.lt.s32.totalorder %v238, 0
      %v439 = vsub.s32 0, %v238
      %v440 = vsel %vm438, %v439, %v238
      %v441 = vshrl.u32 %v440, 4
      %v442 = vand.u32 %v440, 15
      %v443 = vsub.s32 0, %v442
      %v444 = vsel %vm438, %v443, %v442
      %vm445 = vcmp.lt.s32.totalorder %v239, 0
      %v446 = vsub.s32 0, %v239
      %v447 = vsel %vm445, %v446, %v239
      %v448 = vshrl.u32 %v447, 4
      %v449 = vand.u32 %v447, 15
      %v450 = vsub.s32 0, %v449
      %v451 = vsel %vm445, %v450, %v449
      %vm452 = vcmp.lt.s32.totalorder %v240, 0
      %v453 = vsub.s32 0, %v240
      %v454 = vsel %vm452, %v453, %v240
      %v455 = vshrl.u32 %v454, 4
      %v456 = vand.u32 %v454, 15
      %v457 = vsub.s32 0, %v456
      %v458 = vsel %vm452, %v457, %v456
      %vm459 = vcmp.lt.s32.totalorder %v241, 0
      %v460 = vsub.s32 0, %v241
      %v461 = vsel %vm459, %v460, %v241
      %v462 = vshrl.u32 %v461, 4
      %v463 = vand.u32 %v461, 15
      %v464 = vsub.s32 0, %v463
      %v465 = vsel %vm459, %v464, %v463
      %vm466 = vcmp.ne.s32.totalorder %v248, 0
      %vm467 = vcmp.ne.s32.totalorder %v255, 0
      %vm468 = vcmp.ne.s32.totalorder %v262, 0
      %vm469 = vcmp.ne.s32.totalorder %v269, 0
      %vm470 = vcmp.ne.s32.totalorder %v276, 0
      %vm471 = vcmp.ne.s32.totalorder %v283, 0
      %vm472 = vcmp.ne.s32.totalorder %v290, 0
      %vm473 = vcmp.ne.s32.totalorder %v297, 0
      %vm474 = vcmp.ne.s32.totalorder %v304, 0
      %vm475 = vcmp.ne.s32.totalorder %v311, 0
      %vm476 = vcmp.ne.s32.totalorder %v318, 0
      %vm477 = vcmp.ne.s32.totalorder %v325, 0
      %vm478 = vcmp.ne.s32.totalorder %v332, 0
      %vm479 = vcmp.ne.s32.totalorder %v339, 0
      %vm480 = vcmp.ne.s32.totalorder %v346, 0
      %vm481 = vcmp.ne.s32.totalorder %v353, 0
      %vm482 = vcmp.ne.s32.totalorder %v360, 0
      %vm483 = vcmp.ne.s32.totalorder %v367, 0
      %vm484 = vcmp.ne.s32.totalorder %v374, 0
      %vm485 = vcmp.ne.s32.totalorder %v381, 0
      %vm486 = vcmp.ne.s32.totalorder %v388, 0
      %vm487 = vcmp.ne.s32.totalorder %v395, 0
      %vm488 = vcmp.ne.s32.totalorder %v402, 0
      %vm489 = vcmp.ne.s32.totalorder %v409, 0
      %vm490 = vcmp.ne.s32.totalorder %v416, 0
      %vm491 = vcmp.ne.s32.totalorder %v423, 0
      %vm492 = vcmp.ne.s32.totalorder %v430, 0
      %vm493 = vcmp.ne.s32.totalorder %v437, 0
      %vm494 = vcmp.ne.s32.totalorder %v444, 0
      %vm495 = vcmp.ne.s32.totalorder %v451, 0
      %vm496 = vcmp.ne.s32.totalorder %v458, 0
      %vm497 = vcmp.ne.s32.totalorder %v465, 0
      %vm498 = vcmp.lt.s32.totalorder %v248, 0
      %vm499 = vcmp.lt.s32.totalorder %v255, 0
      %vm500 = vcmp.lt.s32.totalorder %v262, 0
      %vm501 = vcmp.lt.s32.totalorder %v269, 0
      %vm502 = vcmp.lt.s32.totalorder %v276, 0
      %vm503 = vcmp.lt.s32.totalorder %v283, 0
      %vm504 = vcmp.lt.s32.totalorder %v290, 0
      %vm505 = vcmp.lt.s32.totalorder %v297, 0
      %vm506 = vcmp.lt.s32.totalorder %v304, 0
      %vm507 = vcmp.lt.s32.totalorder %v311, 0
      %vm508 = vcmp.lt.s32.totalorder %v318, 0
      %vm509 = vcmp.lt.s32.totalorder %v325, 0
      %vm510 = vcmp.lt.s32.totalorder %v332, 0
      %vm511 = vcmp.lt.s32.totalorder %v339, 0
      %vm512 = vcmp.lt.s32.totalorder %v346, 0
      %vm513 = vcmp.lt.s32.totalorder %v353, 0
      %vm514 = vcmp.lt.s32.totalorder %v360, 0
      %vm515 = vcmp.lt.s32.totalorder %v367, 0
      %vm516 = vcmp.lt.s32.totalorder %v374, 0
      %vm517 = vcmp.lt.s32.totalorder %v381, 0
      %vm518 = vcmp.lt.s32.totalorder %v388, 0
      %vm519 = vcmp.lt.s32.totalorder %v395, 0
      %vm520 = vcmp.lt.s32.totalorder %v402, 0
      %vm521 = vcmp.lt.s32.totalorder %v409, 0
      %vm522 = vcmp.lt.s32.totalorder %v416, 0
      %vm523 = vcmp.lt.s32.totalorder %v423, 0
      %vm524 = vcmp.lt.s32.totalorder %v430, 0
      %vm525 = vcmp.lt.s32.totalorder %v437, 0
      %vm526 = vcmp.lt.s32.totalorder %v444, 0
      %vm527 = vcmp.lt.s32.totalorder %v451, 0
      %vm528 = vcmp.lt.s32.totalorder %v458, 0
      %vm529 = vcmp.lt.s32.totalorder %v465, 0
      %vm530 = vmand %vm498, %vm466
      %vm531 = vmand %vm499, %vm467
      %vm532 = vmand %vm500, %vm468
      %vm533 = vmand %vm501, %vm469
      %vm534 = vmand %vm502, %vm470
      %vm535 = vmand %vm503, %vm471
      %vm536 = vmand %vm504, %vm472
      %vm537 = vmand %vm505, %vm473
      %vm538 = vmand %vm506, %vm474
      %vm539 = vmand %vm507, %vm475
      %vm540 = vmand %vm508, %vm476
      %vm541 = vmand %vm509, %vm477
      %vm542 = vmand %vm510, %vm478
      %vm543 = vmand %vm511, %vm479
      %vm544 = vmand %vm512, %vm480
      %vm545 = vmand %vm513, %vm481
      %vm546 = vmand %vm514, %vm482
      %vm547 = vmand %vm515, %vm483
      %vm548 = vmand %vm516, %vm484
      %vm549 = vmand %vm517, %vm485
      %vm550 = vmand %vm518, %vm486
      %vm551 = vmand %vm519, %vm487
      %vm552 = vmand %vm520, %vm488
      %vm553 = vmand %vm521, %vm489
      %vm554 = vmand %vm522, %vm490
      %vm555 = vmand %vm523, %vm491
      %vm556 = vmand %vm524, %vm492
      %vm557 = vmand %vm525, %vm493
      %vm558 = vmand %vm526, %vm494
      %vm559 = vmand %vm527, %vm495
      %vm560 = vmand %vm528, %vm496
      %vm561 = vmand %vm529, %vm497
      %v562 = vadd.s32 %v248, 16
      %v563 = vadd.s32 %v255, 16
      %v564 = vadd.s32 %v262, 16
      %v565 = vadd.s32 %v269, 16
      %v566 = vadd.s32 %v276, 16
      %v567 = vadd.s32 %v283, 16
      %v568 = vadd.s32 %v290, 16
      %v569 = vadd.s32 %v297, 16
      %v570 = vadd.s32 %v304, 16
      %v571 = vadd.s32 %v311, 16
      %v572 = vadd.s32 %v318, 16
      %v573 = vadd.s32 %v325, 16
      %v574 = vadd.s32 %v332, 16
      %v575 = vadd.s32 %v339, 16
      %v576 = vadd.s32 %v346, 16
      %v577 = vadd.s32 %v353, 16
      %v578 = vadd.s32 %v360, 16
      %v579 = vadd.s32 %v367, 16
      %v580 = vadd.s32 %v374, 16
      %v581 = vadd.s32 %v381, 16
      %v582 = vadd.s32 %v388, 16
      %v583 = vadd.s32 %v395, 16
      %v584 = vadd.s32 %v402, 16
      %v585 = vadd.s32 %v409, 16
      %v586 = vadd.s32 %v416, 16
      %v587 = vadd.s32 %v423, 16
      %v588 = vadd.s32 %v430, 16
      %v589 = vadd.s32 %v437, 16
      %v590 = vadd.s32 %v444, 16
      %v591 = vadd.s32 %v451, 16
      %v592 = vadd.s32 %v458, 16
      %v593 = vadd.s32 %v465, 16
      %v594 = vsel %vm530, %v562, %v248
      %v595 = vsel %vm531, %v563, %v255
      %v596 = vsel %vm532, %v564, %v262
      %v597 = vsel %vm533, %v565, %v269
      %v598 = vsel %vm534, %v566, %v276
      %v599 = vsel %vm535, %v567, %v283
      %v600 = vsel %vm536, %v568, %v290
      %v601 = vsel %vm537, %v569, %v297
      %v602 = vsel %vm538, %v570, %v304
      %v603 = vsel %vm539, %v571, %v311
      %v604 = vsel %vm540, %v572, %v318
      %v605 = vsel %vm541, %v573, %v325
      %v606 = vsel %vm542, %v574, %v332
      %v607 = vsel %vm543, %v575, %v339
      %v608 = vsel %vm544, %v576, %v346
      %v609 = vsel %vm545, %v577, %v353
      %v610 = vsel %vm546, %v578, %v360
      %v611 = vsel %vm547, %v579, %v367
      %v612 = vsel %vm548, %v580, %v374
      %v613 = vsel %vm549, %v581, %v381
      %v614 = vsel %vm550, %v582, %v388
      %v615 = vsel %vm551, %v583, %v395
      %v616 = vsel %vm552, %v584, %v402
      %v617 = vsel %vm553, %v585, %v409
      %v618 = vsel %vm554, %v586, %v416
      %v619 = vsel %vm555, %v587, %v423
      %v620 = vsel %vm556, %v588, %v430
      %v621 = vsel %vm557, %v589, %v437
      %v622 = vsel %vm558, %v590, %v444
      %v623 = vsel %vm559, %v591, %v451
      %v624 = vsel %vm560, %v592, %v458
      %v625 = vsel %vm561, %v593, %v465
      %vm626 = vcmp.ne.s32.totalorder %v594, 0
      %vm627 = vcmp.ne.s32.totalorder %v595, 0
      %vm628 = vcmp.ne.s32.totalorder %v596, 0
      %vm629 = vcmp.ne.s32.totalorder %v597, 0
      %vm630 = vcmp.ne.s32.totalorder %v598, 0
      %vm631 = vcmp.ne.s32.totalorder %v599, 0
      %vm632 = vcmp.ne.s32.totalorder %v600, 0
      %vm633 = vcmp.ne.s32.totalorder %v601, 0
      %vm634 = vcmp.ne.s32.totalorder %v602, 0
      %vm635 = vcmp.ne.s32.totalorder %v603, 0
      %vm636 = vcmp.ne.s32.totalorder %v604, 0
      %vm637 = vcmp.ne.s32.totalorder %v605, 0
      %vm638 = vcmp.ne.s32.totalorder %v606, 0
      %vm639 = vcmp.ne.s32.totalorder %v607, 0
      %vm640 = vcmp.ne.s32.totalorder %v608, 0
      %vm641 = vcmp.ne.s32.totalorder %v609, 0
      %vm642 = vcmp.ne.s32.totalorder %v610, 0
      %vm643 = vcmp.ne.s32.totalorder %v611, 0
      %vm644 = vcmp.ne.s32.totalorder %v612, 0
      %vm645 = vcmp.ne.s32.totalorder %v613, 0
      %vm646 = vcmp.ne.s32.totalorder %v614, 0
      %vm647 = vcmp.ne.s32.totalorder %v615, 0
      %vm648 = vcmp.ne.s32.totalorder %v616, 0
      %vm649 = vcmp.ne.s32.totalorder %v617, 0
      %vm650 = vcmp.ne.s32.totalorder %v618, 0
      %vm651 = vcmp.ne.s32.totalorder %v619, 0
      %vm652 = vcmp.ne.s32.totalorder %v620, 0
      %vm653 = vcmp.ne.s32.totalorder %v621, 0
      %vm654 = vcmp.ne.s32.totalorder %v622, 0
      %vm655 = vcmp.ne.s32.totalorder %v623, 0
      %vm656 = vcmp.ne.s32.totalorder %v624, 0
      %vm657 = vcmp.ne.s32.totalorder %v625, 0
      %vm658 = vcmp.ne.s32.totalorder %v594, 15
      %vm659 = vcmp.ne.s32.totalorder %v595, 15
      %vm660 = vcmp.ne.s32.totalorder %v596, 15
      %vm661 = vcmp.ne.s32.totalorder %v597, 15
      %vm662 = vcmp.ne.s32.totalorder %v598, 15
      %vm663 = vcmp.ne.s32.totalorder %v599, 15
      %vm664 = vcmp.ne.s32.totalorder %v600, 15
      %vm665 = vcmp.ne.s32.totalorder %v601, 15
      %vm666 = vcmp.ne.s32.totalorder %v602, 15
      %vm667 = vcmp.ne.s32.totalorder %v603, 15
      %vm668 = vcmp.ne.s32.totalorder %v604, 15
      %vm669 = vcmp.ne.s32.totalorder %v605, 15
      %vm670 = vcmp.ne.s32.totalorder %v606, 15
      %vm671 = vcmp.ne.s32.totalorder %v607, 15
      %vm672 = vcmp.ne.s32.totalorder %v608, 15
      %vm673 = vcmp.ne.s32.totalorder %v609, 15
      %vm674 = vcmp.ne.s32.totalorder %v610, 15
      %vm675 = vcmp.ne.s32.totalorder %v611, 15
      %vm676 = vcmp.ne.s32.totalorder %v612, 15
      %vm677 = vcmp.ne.s32.totalorder %v613, 15
      %vm678 = vcmp.ne.s32.totalorder %v614, 15
      %vm679 = vcmp.ne.s32.totalorder %v615, 15
      %vm680 = vcmp.ne.s32.totalorder %v616, 15
      %vm681 = vcmp.ne.s32.totalorder %v617, 15
      %vm682 = vcmp.ne.s32.totalorder %v618, 15
      %vm683 = vcmp.ne.s32.totalorder %v619, 15
      %vm684 = vcmp.ne.s32.totalorder %v620, 15
      %vm685 = vcmp.ne.s32.totalorder %v621, 15
      %vm686 = vcmp.ne.s32.totalorder %v622, 15
      %vm687 = vcmp.ne.s32.totalorder %v623, 15
      %vm688 = vcmp.ne.s32.totalorder %v624, 15
      %vm689 = vcmp.ne.s32.totalorder %v625, 15
      %s690 = smul.u32 %s20, 256
      %s691 = scalar_lea.vmem %s193, %s690
      %v692 = vld [vmem:[%s691] sm:$0xff]
      %v693 = vld [vmem:[%s691 + $0x8] sm:$0xff]
      %v694 = vld [vmem:[%s691 + $0x10] sm:$0xff]
      %v695 = vld [vmem:[%s691 + $0x18] sm:$0xff]
      %v696 = vld [vmem:[%s691 + $0x20] sm:$0xff]
      %v697 = vld [vmem:[%s691 + $0x28] sm:$0xff]
      %v698 = vld [vmem:[%s691 + $0x30] sm:$0xff]
      %v699 = vld [vmem:[%s691 + $0x38] sm:$0xff]
      %v700 = vld [vmem:[%s691 + $0x40] sm:$0xff]
      %v701 = vld [vmem:[%s691 + $0x48] sm:$0xff]
      %v702 = vld [vmem:[%s691 + $0x50] sm:$0xff]
      %v703 = vld [vmem:[%s691 + $0x58] sm:$0xff]
      %v704 = vld [vmem:[%s691 + $0x60] sm:$0xff]
      %v705 = vld [vmem:[%s691 + $0x68] sm:$0xff]
      %v706 = vld [vmem:[%s691 + $0x70] sm:$0xff]
      %v707 = vld [vmem:[%s691 + $0x78] sm:$0xff]
      %v708 = vld [vmem:[%s691 + $0x80] sm:$0xff]
      %v709 = vld [vmem:[%s691 + $0x88] sm:$0xff]
      %v710 = vld [vmem:[%s691 + $0x90] sm:$0xff]
      %v711 = vld [vmem:[%s691 + $0x98] sm:$0xff]
      %v712 = vld [vmem:[%s691 + $0xa0] sm:$0xff]
      %v713 = vld [vmem:[%s691 + $0xa8] sm:$0xff]
      %v714 = vld [vmem:[%s691 + $0xb0] sm:$0xff]
      %v715 = vld [vmem:[%s691 + $0xb8] sm:$0xff]
      %v716 = vld [vmem:[%s691 + $0xc0] sm:$0xff]
      %v717 = vld [vmem:[%s691 + $0xc8] sm:$0xff]
      %v718 = vld [vmem:[%s691 + $0xd0] sm:$0xff]
      %v719 = vld [vmem:[%s691 + $0xd8] sm:$0xff]
      %v720 = vld [vmem:[%s691 + $0xe0] sm:$0xff]
      %v721 = vld [vmem:[%s691 + $0xe8] sm:$0xff]
      %v722 = vld [vmem:[%s691 + $0xf0] sm:$0xff]
      %v723 = vld [vmem:[%s691 + $0xf8] sm:$0xff]
      %v724 = vsel %vm626, 1, 0
      %v725 = vsel %vm627, 1, 0
      %v726 = vsel %vm628, 1, 0
      %v727 = vsel %vm629, 1, 0
      %v728 = vsel %vm630, 1, 0
      %v729 = vsel %vm631, 1, 0
      %v730 = vsel %vm632, 1, 0
      %v731 = vsel %vm633, 1, 0
      %v732 = vsel %vm634, 1, 0
      %v733 = vsel %vm635, 1, 0
      %v734 = vsel %vm636, 1, 0
      %v735 = vsel %vm637, 1, 0
      %v736 = vsel %vm638, 1, 0
      %v737 = vsel %vm639, 1, 0
      %v738 = vsel %vm640, 1, 0
      %v739 = vsel %vm641, 1, 0
      %v740 = vsel %vm642, 1, 0
      %v741 = vsel %vm643, 1, 0
      %v742 = vsel %vm644, 1, 0
      %v743 = vsel %vm645, 1, 0
      %v744 = vsel %vm646, 1, 0
      %v745 = vsel %vm647, 1, 0
      %v746 = vsel %vm648, 1, 0
      %v747 = vsel %vm649, 1, 0
      %v748 = vsel %vm650, 1, 0
      %v749 = vsel %vm651, 1, 0
      %v750 = vsel %vm652, 1, 0
      %v751 = vsel %vm653, 1, 0
      %v752 = vsel %vm654, 1, 0
      %v753 = vsel %vm655, 1, 0
      %v754 = vsel %vm656, 1, 0
      %v755 = vsel %vm657, 1, 0
      %vm756 = vcmp.eq.s32.totalorder %v724, 1
      %vm757 = vcmp.eq.s32.totalorder %v725, 1
      %vm758 = vcmp.eq.s32.totalorder %v726, 1
      %vm759 = vcmp.eq.s32.totalorder %v727, 1
      %vm760 = vcmp.eq.s32.totalorder %v728, 1
      %vm761 = vcmp.eq.s32.totalorder %v729, 1
      %vm762 = vcmp.eq.s32.totalorder %v730, 1
      %vm763 = vcmp.eq.s32.totalorder %v731, 1
      %vm764 = vcmp.eq.s32.totalorder %v732, 1
      %vm765 = vcmp.eq.s32.totalorder %v733, 1
      %vm766 = vcmp.eq.s32.totalorder %v734, 1
      %vm767 = vcmp.eq.s32.totalorder %v735, 1
      %vm768 = vcmp.eq.s32.totalorder %v736, 1
      %vm769 = vcmp.eq.s32.totalorder %v737, 1
      %vm770 = vcmp.eq.s32.totalorder %v738, 1
      %vm771 = vcmp.eq.s32.totalorder %v739, 1
      %vm772 = vcmp.eq.s32.totalorder %v740, 1
      %vm773 = vcmp.eq.s32.totalorder %v741, 1
      %vm774 = vcmp.eq.s32.totalorder %v742, 1
      %vm775 = vcmp.eq.s32.totalorder %v743, 1
      %vm776 = vcmp.eq.s32.totalorder %v744, 1
      %vm777 = vcmp.eq.s32.totalorder %v745, 1
      %vm778 = vcmp.eq.s32.totalorder %v746, 1
      %vm779 = vcmp.eq.s32.totalorder %v747, 1
      %vm780 = vcmp.eq.s32.totalorder %v748, 1
      %vm781 = vcmp.eq.s32.totalorder %v749, 1
      %vm782 = vcmp.eq.s32.totalorder %v750, 1
      %vm783 = vcmp.eq.s32.totalorder %v751, 1
      %vm784 = vcmp.eq.s32.totalorder %v752, 1
      %vm785 = vcmp.eq.s32.totalorder %v753, 1
      %vm786 = vcmp.eq.s32.totalorder %v754, 1
      %vm787 = vcmp.eq.s32.totalorder %v755, 1
      %v788 = vsel %vm756, %v692, 0.0
      %v789 = vsel %vm757, %v693, 0.0
      %v790 = vsel %vm758, %v694, 0.0
      %v791 = vsel %vm759, %v695, 0.0
      %v792 = vsel %vm760, %v696, 0.0
      %v793 = vsel %vm761, %v697, 0.0
      %v794 = vsel %vm762, %v698, 0.0
      %v795 = vsel %vm763, %v699, 0.0
      %v796 = vsel %vm764, %v700, 0.0
      %v797 = vsel %vm765, %v701, 0.0
      %v798 = vsel %vm766, %v702, 0.0
      %v799 = vsel %vm767, %v703, 0.0
      %v800 = vsel %vm768, %v704, 0.0
      %v801 = vsel %vm769, %v705, 0.0
      %v802 = vsel %vm770, %v706, 0.0
      %v803 = vsel %vm771, %v707, 0.0
      %v804 = vsel %vm772, %v708, 0.0
      %v805 = vsel %vm773, %v709, 0.0
      %v806 = vsel %vm774, %v710, 0.0
      %v807 = vsel %vm775, %v711, 0.0
      %v808 = vsel %vm776, %v712, 0.0
      %v809 = vsel %vm777, %v713, 0.0
      %v810 = vsel %vm778, %v714, 0.0
      %v811 = vsel %vm779, %v715, 0.0
      %v812 = vsel %vm780, %v716, 0.0
      %v813 = vsel %vm781, %v717, 0.0
      %v814 = vsel %vm782, %v718, 0.0
      %v815 = vsel %vm783, %v719, 0.0
      %v816 = vsel %vm784, %v720, 0.0
      %v817 = vsel %vm785, %v721, 0.0
      %v818 = vsel %vm786, %v722, 0.0
      %v819 = vsel %vm787, %v723, 0.0
      %vm820 = vcmask 31744
      %821 = vst.msk [vmem:[#allocation2] sm:$0xff] %vm820, %v788
      %822 = vst.msk [vmem:[#allocation2 + $0x8] sm:$0xff] %vm820, %v789
      %823 = vst.msk [vmem:[#allocation2 + $0x10] sm:$0xff] %vm820, %v790
      %824 = vst.msk [vmem:[#allocation2 + $0x18] sm:$0xff] %vm820, %v791
      %825 = vst.msk [vmem:[#allocation2 + $0x20] sm:$0xff] %vm820, %v792
      %826 = vst.msk [vmem:[#allocation2 + $0x28] sm:$0xff] %vm820, %v793
      %827 = vst.msk [vmem:[#allocation2 + $0x30] sm:$0xff] %vm820, %v794
      %828 = vst.msk [vmem:[#allocation2 + $0x38] sm:$0xff] %vm820, %v795
      %829 = vst.msk [vmem:[#allocation2 + $0x40] sm:$0xff] %vm820, %v796
      %830 = vst.msk [vmem:[#allocation2 + $0x48] sm:$0xff] %vm820, %v797
      %831 = vst.msk [vmem:[#allocation2 + $0x50] sm:$0xff] %vm820, %v798
      %832 = vst.msk [vmem:[#allocation2 + $0x58] sm:$0xff] %vm820, %v799
      %833 = vst.msk [vmem:[#allocation2 + $0x60] sm:$0xff] %vm820, %v800
      %834 = vst.msk [vmem:[#allocation2 + $0x68] sm:$0xff] %vm820, %v801
      %835 = vst.msk [vmem:[#allocation2 + $0x70] sm:$0xff] %vm820, %v802
      %836 = vst.msk [vmem:[#allocation2 + $0x78] sm:$0xff] %vm820, %v803
      %837 = vst.msk [vmem:[#allocation2 + $0x80] sm:$0xff] %vm820, %v804
      %838 = vst.msk [vmem:[#allocation2 + $0x88] sm:$0xff] %vm820, %v805
      %839 = vst.msk [vmem:[#allocation2 + $0x90] sm:$0xff] %vm820, %v806
      %840 = vst.msk [vmem:[#allocation2 + $0x98] sm:$0xff] %vm820, %v807
      %841 = vst.msk [vmem:[#allocation2 + $0xa0] sm:$0xff] %vm820, %v808
      %842 = vst.msk [vmem:[#allocation2 + $0xa8] sm:$0xff] %vm820, %v809
      %843 = vst.msk [vmem:[#allocation2 + $0xb0] sm:$0xff] %vm820, %v810
      %844 = vst.msk [vmem:[#allocation2 + $0xb8] sm:$0xff] %vm820, %v811
      %845 = vst.msk [vmem:[#allocation2 + $0xc0] sm:$0xff] %vm820, %v812
      %846 = vst.msk [vmem:[#allocation2 + $0xc8] sm:$0xff] %vm820, %v813
      %847 = vst.msk [vmem:[#allocation2 + $0xd0] sm:$0xff] %vm820, %v814
      %848 = vst.msk [vmem:[#allocation2 + $0xd8] sm:$0xff] %vm820, %v815
      %849 = vst.msk [vmem:[#allocation2 + $0xe0] sm:$0xff] %vm820, %v816
      %850 = vst.msk [vmem:[#allocation2 + $0xe8] sm:$0xff] %vm820, %v817
      %851 = vst.msk [vmem:[#allocation2 + $0xf0] sm:$0xff] %vm820, %v818
      %852 = vst.msk [vmem:[#allocation2 + $0xf8] sm:$0xff] %vm820, %v819
      %s853 = sadd.s32 %s690, 1
      %s854 = scalar_lea.vmem %s193, %s853
      %v855 = vld [vmem:[%s854] sm:$0xff]
      %v856 = vld [vmem:[%s854 + $0x8] sm:$0xff]
      %v857 = vld [vmem:[%s854 + $0x10] sm:$0xff]
      %v858 = vld [vmem:[%s854 + $0x18] sm:$0xff]
      %v859 = vld [vmem:[%s854 + $0x20] sm:$0xff]
      %v860 = vld [vmem:[%s854 + $0x28] sm:$0xff]
      %v861 = vld [vmem:[%s854 + $0x30] sm:$0xff]
      %v862 = vld [vmem:[%s854 + $0x38] sm:$0xff]
      %v863 = vld [vmem:[%s854 + $0x40] sm:$0xff]
      %v864 = vld [vmem:[%s854 + $0x48] sm:$0xff]
      %v865 = vld [vmem:[%s854 + $0x50] sm:$0xff]
      %v866 = vld [vmem:[%s854 + $0x58] sm:$0xff]
      %v867 = vld [vmem:[%s854 + $0x60] sm:$0xff]
      %v868 = vld [vmem:[%s854 + $0x68] sm:$0xff]
      %v869 = vld [vmem:[%s854 + $0x70] sm:$0xff]
      %v870 = vld [vmem:[%s854 + $0x78] sm:$0xff]
      %v871 = vld [vmem:[%s854 + $0x80] sm:$0xff]
      %v872 = vld [vmem:[%s854 + $0x88] sm:$0xff]
      %v873 = vld [vmem:[%s854 + $0x90] sm:$0xff]
      %v874 = vld [vmem:[%s854 + $0x98] sm:$0xff]
      %v875 = vld [vmem:[%s854 + $0xa0] sm:$0xff]
      %v876 = vld [vmem:[%s854 + $0xa8] sm:$0xff]
      %v877 = vld [vmem:[%s854 + $0xb0] sm:$0xff]
      %v878 = vld [vmem:[%s854 + $0xb8] sm:$0xff]
      %v879 = vld [vmem:[%s854 + $0xc0] sm:$0xff]
      %v880 = vld [vmem:[%s854 + $0xc8] sm:$0xff]
      %v881 = vld [vmem:[%s854 + $0xd0] sm:$0xff]
      %v882 = vld [vmem:[%s854 + $0xd8] sm:$0xff]
      %v883 = vld [vmem:[%s854 + $0xe0] sm:$0xff]
      %v884 = vld [vmem:[%s854 + $0xe8] sm:$0xff]
      %v885 = vld [vmem:[%s854 + $0xf0] sm:$0xff]
      %v886 = vld [vmem:[%s854 + $0xf8] sm:$0xff]
      %919 = vrot.lane.b32.xlu0 %v855, 4
      %v920 = vpop.permute.xlu0 %919
      %921 = vrot.lane.b32.xlu0 %v856, 4
      %v922 = vpop.permute.xlu0 %921
      %923 = vrot.lane.b32.xlu0 %v857, 4
      %v924 = vpop.permute.xlu0 %923
      %925 = vrot.lane.b32.xlu0 %v858, 4
      %v926 = vpop.permute.xlu0 %925
      %927 = vrot.lane.b32.xlu0 %v859, 4
      %v928 = vpop.permute.xlu0 %927
      %929 = vrot.lane.b32.xlu0 %v860, 4
      %v930 = vpop.permute.xlu0 %929
      %931 = vrot.lane.b32.xlu0 %v861, 4
      %v932 = vpop.permute.xlu0 %931
      %933 = vrot.lane.b32.xlu0 %v862, 4
      %v934 = vpop.permute.xlu0 %933
      %935 = vrot.lane.b32.xlu0 %v863, 4
      %v936 = vpop.permute.xlu0 %935
      %937 = vrot.lane.b32.xlu0 %v864, 4
      %v938 = vpop.permute.xlu0 %937
      %939 = vrot.lane.b32.xlu0 %v865, 4
      %v940 = vpop.permute.xlu0 %939
      %941 = vrot.lane.b32.xlu0 %v866, 4
      %v942 = vpop.permute.xlu0 %941
      %943 = vrot.lane.b32.xlu0 %v867, 4
      %v944 = vpop.permute.xlu0 %943
      %945 = vrot.lane.b32.xlu0 %v868, 4
      %v946 = vpop.permute.xlu0 %945
      %947 = vrot.lane.b32.xlu0 %v869, 4
      %v948 = vpop.permute.xlu0 %947
      %949 = vrot.lane.b32.xlu0 %v870, 4
      %v950 = vpop.permute.xlu0 %949
      %951 = vrot.lane.b32.xlu0 %v871, 4
      %v952 = vpop.permute.xlu0 %951
      %953 = vrot.lane.b32.xlu0 %v872, 4
      %v954 = vpop.permute.xlu0 %953
      %955 = vrot.lane.b32.xlu0 %v873, 4
      %v956 = vpop.permute.xlu0 %955
      %957 = vrot.lane.b32.xlu0 %v874, 4
      %v958 = vpop.permute.xlu0 %957
      %959 = vrot.lane.b32.xlu0 %v875, 4
      %v960 = vpop.permute.xlu0 %959
      %961 = vrot.lane.b32.xlu0 %v876, 4
      %v962 = vpop.permute.xlu0 %961
      %963 = vrot.lane.b32.xlu0 %v877, 4
      %v964 = vpop.permute.xlu0 %963
      %965 = vrot.lane.b32.xlu0 %v878, 4
      %v966 = vpop.permute.xlu0 %965
      %967 = vrot.lane.b32.xlu0 %v879, 4
      %v968 = vpop.permute.xlu0 %967
      %969 = vrot.lane.b32.xlu0 %v880, 4
      %v970 = vpop.permute.xlu0 %969
      %971 = vrot.lane.b32.xlu0 %v881, 4
      %v972 = vpop.permute.xlu0 %971
      %973 = vrot.lane.b32.xlu0 %v882, 4
      %v974 = vpop.permute.xlu0 %973
      %975 = vrot.lane.b32.xlu0 %v883, 4
      %v976 = vpop.permute.xlu0 %975
      %977 = vrot.lane.b32.xlu0 %v884, 4
      %v978 = vpop.permute.xlu0 %977
      %979 = vrot.lane.b32.xlu0 %v885, 4
      %v980 = vpop.permute.xlu0 %979
      %981 = vrot.lane.b32.xlu0 %v886, 4
      %v982 = vpop.permute.xlu0 %981
      %vm1015 = vcmask 64544
      %1016 = vst.msk [vmem:[#allocation2] sm:$0xff] %vm1015, %v920
      %1017 = vst.msk [vmem:[#allocation2 + $0x8] sm:$0xff] %vm1015, %v922
      %1018 = vst.msk [vmem:[#allocation2 + $0x10] sm:$0xff] %vm1015, %v924
      %1019 = vst.msk [vmem:[#allocation2 + $0x18] sm:$0xff] %vm1015, %v926
      %1020 = vst.msk [vmem:[#allocation2 + $0x20] sm:$0xff] %vm1015, %v928
      %1021 = vst.msk [vmem:[#allocation2 + $0x28] sm:$0xff] %vm1015, %v930
      %1022 = vst.msk [vmem:[#allocation2 + $0x30] sm:$0xff] %vm1015, %v932
      %1023 = vst.msk [vmem:[#allocation2 + $0x38] sm:$0xff] %vm1015, %v934
      %1024 = vst.msk [vmem:[#allocation2 + $0x40] sm:$0xff] %vm1015, %v936
      %1025 = vst.msk [vmem:[#allocation2 + $0x48] sm:$0xff] %vm1015, %v938
      %1026 = vst.msk [vmem:[#allocation2 + $0x50] sm:$0xff] %vm1015, %v940
      %1027 = vst.msk [vmem:[#allocation2 + $0x58] sm:$0xff] %vm1015, %v942
      %1028 = vst.msk [vmem:[#allocation2 + $0x60] sm:$0xff] %vm1015, %v944
      %1029 = vst.msk [vmem:[#allocation2 + $0x68] sm:$0xff] %vm1015, %v946
      %1030 = vst.msk [vmem:[#allocation2 + $0x70] sm:$0xff] %vm1015, %v948
      %1031 = vst.msk [vmem:[#allocation2 + $0x78] sm:$0xff] %vm1015, %v950
      %1032 = vst.msk [vmem:[#allocation2 + $0x80] sm:$0xff] %vm1015, %v952
      %1033 = vst.msk [vmem:[#allocation2 + $0x88] sm:$0xff] %vm1015, %v954
      %1034 = vst.msk [vmem:[#allocation2 + $0x90] sm:$0xff] %vm1015, %v956
      %1035 = vst.msk [vmem:[#allocation2 + $0x98] sm:$0xff] %vm1015, %v958
      %1036 = vst.msk [vmem:[#allocation2 + $0xa0] sm:$0xff] %vm1015, %v960
      %1037 = vst.msk [vmem:[#allocation2 + $0xa8] sm:$0xff] %vm1015, %v962
      %1038 = vst.msk [vmem:[#allocation2 + $0xb0] sm:$0xff] %vm1015, %v964
      %1039 = vst.msk [vmem:[#allocation2 + $0xb8] sm:$0xff] %vm1015, %v966
      %1040 = vst.msk [vmem:[#allocation2 + $0xc0] sm:$0xff] %vm1015, %v968
      %1041 = vst.msk [vmem:[#allocation2 + $0xc8] sm:$0xff] %vm1015, %v970
      %1042 = vst.msk [vmem:[#allocation2 + $0xd0] sm:$0xff] %vm1015, %v972
      %1043 = vst.msk [vmem:[#allocation2 + $0xd8] sm:$0xff] %vm1015, %v974
      %1044 = vst.msk [vmem:[#allocation2 + $0xe0] sm:$0xff] %vm1015, %v976
      %1045 = vst.msk [vmem:[#allocation2 + $0xe8] sm:$0xff] %vm1015, %v978
      %1046 = vst.msk [vmem:[#allocation2 + $0xf0] sm:$0xff] %vm1015, %v980
      %1047 = vst.msk [vmem:[#allocation2 + $0xf8] sm:$0xff] %vm1015, %v982
      %s1048 = sadd.s32 %s690, 2
      %s1049 = scalar_lea.vmem %s193, %s1048
      %v1050 = vld [vmem:[%s1049] sm:$0xff]
      %v1051 = vld [vmem:[%s1049 + $0x8] sm:$0xff]
      %v1052 = vld [vmem:[%s1049 + $0x10] sm:$0xff]
      %v1053 = vld [vmem:[%s1049 + $0x18] sm:$0xff]
      %v1054 = vld [vmem:[%s1049 + $0x20] sm:$0xff]
      %v1055 = vld [vmem:[%s1049 + $0x28] sm:$0xff]
      %v1056 = vld [vmem:[%s1049 + $0x30] sm:$0xff]
      %v1057 = vld [vmem:[%s1049 + $0x38] sm:$0xff]
      %v1058 = vld [vmem:[%s1049 + $0x40] sm:$0xff]
      %v1059 = vld [vmem:[%s1049 + $0x48] sm:$0xff]
      %v1060 = vld [vmem:[%s1049 + $0x50] sm:$0xff]
      %v1061 = vld [vmem:[%s1049 + $0x58] sm:$0xff]
      %v1062 = vld [vmem:[%s1049 + $0x60] sm:$0xff]
      %v1063 = vld [vmem:[%s1049 + $0x68] sm:$0xff]
      %v1064 = vld [vmem:[%s1049 + $0x70] sm:$0xff]
      %v1065 = vld [vmem:[%s1049 + $0x78] sm:$0xff]
      %v1066 = vld [vmem:[%s1049 + $0x80] sm:$0xff]
      %v1067 = vld [vmem:[%s1049 + $0x88] sm:$0xff]
      %v1068 = vld [vmem:[%s1049 + $0x90] sm:$0xff]
      %v1069 = vld [vmem:[%s1049 + $0x98] sm:$0xff]
      %v1070 = vld [vmem:[%s1049 + $0xa0] sm:$0xff]
      %v1071 = vld [vmem:[%s1049 + $0xa8] sm:$0xff]
      %v1072 = vld [vmem:[%s1049 + $0xb0] sm:$0xff]
      %v1073 = vld [vmem:[%s1049 + $0xb8] sm:$0xff]
      %v1074 = vld [vmem:[%s1049 + $0xc0] sm:$0xff]
      %v1075 = vld [vmem:[%s1049 + $0xc8] sm:$0xff]
      %v1076 = vld [vmem:[%s1049 + $0xd0] sm:$0xff]
      %v1077 = vld [vmem:[%s1049 + $0xd8] sm:$0xff]
      %v1078 = vld [vmem:[%s1049 + $0xe0] sm:$0xff]
      %v1079 = vld [vmem:[%s1049 + $0xe8] sm:$0xff]
      %v1080 = vld [vmem:[%s1049 + $0xf0] sm:$0xff]
      %v1081 = vld [vmem:[%s1049 + $0xf8] sm:$0xff]
      %v1082 = vsel %vm658, 1, 0
      %v1083 = vsel %vm659, 1, 0
      %v1084 = vsel %vm660, 1, 0
      %v1085 = vsel %vm661, 1, 0
      %v1086 = vsel %vm662, 1, 0
      %v1087 = vsel %vm663, 1, 0
      %v1088 = vsel %vm664, 1, 0
      %v1089 = vsel %vm665, 1, 0
      %v1090 = vsel %vm666, 1, 0
      %v1091 = vsel %vm667, 1, 0
      %v1092 = vsel %vm668, 1, 0
      %v1093 = vsel %vm669, 1, 0
      %v1094 = vsel %vm670, 1, 0
      %v1095 = vsel %vm671, 1, 0
      %v1096 = vsel %vm672, 1, 0
      %v1097 = vsel %vm673, 1, 0
      %v1098 = vsel %vm674, 1, 0
      %v1099 = vsel %vm675, 1, 0
      %v1100 = vsel %vm676, 1, 0
      %v1101 = vsel %vm677, 1, 0
      %v1102 = vsel %vm678, 1, 0
      %v1103 = vsel %vm679, 1, 0
      %v1104 = vsel %vm680, 1, 0
      %v1105 = vsel %vm681, 1, 0
      %v1106 = vsel %vm682, 1, 0
      %v1107 = vsel %vm683, 1, 0
      %v1108 = vsel %vm684, 1, 0
      %v1109 = vsel %vm685, 1, 0
      %v1110 = vsel %vm686, 1, 0
      %v1111 = vsel %vm687, 1, 0
      %v1112 = vsel %vm688, 1, 0
      %v1113 = vsel %vm689, 1, 0
      %vm1114 = vcmp.eq.s32.totalorder %v1082, 1
      %vm1115 = vcmp.eq.s32.totalorder %v1083, 1
      %vm1116 = vcmp.eq.s32.totalorder %v1084, 1
      %vm1117 = vcmp.eq.s32.totalorder %v1085, 1
      %vm1118 = vcmp.eq.s32.totalorder %v1086, 1
      %vm1119 = vcmp.eq.s32.totalorder %v1087, 1
      %vm1120 = vcmp.eq.s32.totalorder %v1088, 1
      %vm1121 = vcmp.eq.s32.totalorder %v1089, 1
      %vm1122 = vcmp.eq.s32.totalorder %v1090, 1
      %vm1123 = vcmp.eq.s32.totalorder %v1091, 1
      %vm1124 = vcmp.eq.s32.totalorder %v1092, 1
      %vm1125 = vcmp.eq.s32.totalorder %v1093, 1
      %vm1126 = vcmp.eq.s32.totalorder %v1094, 1
      %vm1127 = vcmp.eq.s32.totalorder %v1095, 1
      %vm1128 = vcmp.eq.s32.totalorder %v1096, 1
      %vm1129 = vcmp.eq.s32.totalorder %v1097, 1
      %vm1130 = vcmp.eq.s32.totalorder %v1098, 1
      %vm1131 = vcmp.eq.s32.totalorder %v1099, 1
      %vm1132 = vcmp.eq.s32.totalorder %v1100, 1
      %vm1133 = vcmp.eq.s32.totalorder %v1101, 1
      %vm1134 = vcmp.eq.s32.totalorder %v1102, 1
      %vm1135 = vcmp.eq.s32.totalorder %v1103, 1
      %vm1136 = vcmp.eq.s32.totalorder %v1104, 1
      %vm1137 = vcmp.eq.s32.totalorder %v1105, 1
      %vm1138 = vcmp.eq.s32.totalorder %v1106, 1
      %vm1139 = vcmp.eq.s32.totalorder %v1107, 1
      %vm1140 = vcmp.eq.s32.totalorder %v1108, 1
      %vm1141 = vcmp.eq.s32.totalorder %v1109, 1
      %vm1142 = vcmp.eq.s32.totalorder %v1110, 1
      %vm1143 = vcmp.eq.s32.totalorder %v1111, 1
      %vm1144 = vcmp.eq.s32.totalorder %v1112, 1
      %vm1145 = vcmp.eq.s32.totalorder %v1113, 1
      %v1146 = vsel %vm1114, %v1050, 0.0
      %v1147 = vsel %vm1115, %v1051, 0.0
      %v1148 = vsel %vm1116, %v1052, 0.0
      %v1149 = vsel %vm1117, %v1053, 0.0
      %v1150 = vsel %vm1118, %v1054, 0.0
      %v1151 = vsel %vm1119, %v1055, 0.0
      %v1152 = vsel %vm1120, %v1056, 0.0
      %v1153 = vsel %vm1121, %v1057, 0.0
      %v1154 = vsel %vm1122, %v1058, 0.0
      %v1155 = vsel %vm1123, %v1059, 0.0
      %v1156 = vsel %vm1124, %v1060, 0.0
      %v1157 = vsel %vm1125, %v1061, 0.0
      %v1158 = vsel %vm1126, %v1062, 0.0
      %v1159 = vsel %vm1127, %v1063, 0.0
      %v1160 = vsel %vm1128, %v1064, 0.0
      %v1161 = vsel %vm1129, %v1065, 0.0
      %v1162 = vsel %vm1130, %v1066, 0.0
      %v1163 = vsel %vm1131, %v1067, 0.0
      %v1164 = vsel %vm1132, %v1068, 0.0
      %v1165 = vsel %vm1133, %v1069, 0.0
      %v1166 = vsel %vm1134, %v1070, 0.0
      %v1167 = vsel %vm1135, %v1071, 0.0
      %v1168 = vsel %vm1136, %v1072, 0.0
      %v1169 = vsel %vm1137, %v1073, 0.0
      %v1170 = vsel %vm1138, %v1074, 0.0
      %v1171 = vsel %vm1139, %v1075, 0.0
      %v1172 = vsel %vm1140, %v1076, 0.0
      %v1173 = vsel %vm1141, %v1077, 0.0
      %v1174 = vsel %vm1142, %v1078, 0.0
      %v1175 = vsel %vm1143, %v1079, 0.0
      %v1176 = vsel %vm1144, %v1080, 0.0
      %v1177 = vsel %vm1145, %v1081, 0.0
      %1210 = vrot.lane.b32.xlu0 %v1146, 8
      %v1211 = vpop.permute.xlu0 %1210
      %1212 = vrot.lane.b32.xlu0 %v1147, 8
      %v1213 = vpop.permute.xlu0 %1212
      %1214 = vrot.lane.b32.xlu0 %v1148, 8
      %v1215 = vpop.permute.xlu0 %1214
      %1216 = vrot.lane.b32.xlu0 %v1149, 8
      %v1217 = vpop.permute.xlu0 %1216
      %1218 = vrot.lane.b32.xlu0 %v1150, 8
      %v1219 = vpop.permute.xlu0 %1218
      %1220 = vrot.lane.b32.xlu0 %v1151, 8
      %v1221 = vpop.permute.xlu0 %1220
      %1222 = vrot.lane.b32.xlu0 %v1152, 8
      %v1223 = vpop.permute.xlu0 %1222
      %1224 = vrot.lane.b32.xlu0 %v1153, 8
      %v1225 = vpop.permute.xlu0 %1224
      %1226 = vrot.lane.b32.xlu0 %v1154, 8
      %v1227 = vpop.permute.xlu0 %1226
      %1228 = vrot.lane.b32.xlu0 %v1155, 8
      %v1229 = vpop.permute.xlu0 %1228
      %1230 = vrot.lane.b32.xlu0 %v1156, 8
      %v1231 = vpop.permute.xlu0 %1230
      %1232 = vrot.lane.b32.xlu0 %v1157, 8
      %v1233 = vpop.permute.xlu0 %1232
      %1234 = vrot.lane.b32.xlu0 %v1158, 8
      %v1235 = vpop.permute.xlu0 %1234
      %1236 = vrot.lane.b32.xlu0 %v1159, 8
      %v1237 = vpop.permute.xlu0 %1236
      %1238 = vrot.lane.b32.xlu0 %v1160, 8
      %v1239 = vpop.permute.xlu0 %1238
      %1240 = vrot.lane.b32.xlu0 %v1161, 8
      %v1241 = vpop.permute.xlu0 %1240
      %1242 = vrot.lane.b32.xlu0 %v1162, 8
      %v1243 = vpop.permute.xlu0 %1242
      %1244 = vrot.lane.b32.xlu0 %v1163, 8
      %v1245 = vpop.permute.xlu0 %1244
      %1246 = vrot.lane.b32.xlu0 %v1164, 8
      %v1247 = vpop.permute.xlu0 %1246
      %1248 = vrot.lane.b32.xlu0 %v1165, 8
      %v1249 = vpop.permute.xlu0 %1248
      %1250 = vrot.lane.b32.xlu0 %v1166, 8
      %v1251 = vpop.permute.xlu0 %1250
      %1252 = vrot.lane.b32.xlu0 %v1167, 8
      %v1253 = vpop.permute.xlu0 %1252
      %1254 = vrot.lane.b32.xlu0 %v1168, 8
      %v1255 = vpop.permute.xlu0 %1254
      %1256 = vrot.lane.b32.xlu0 %v1169, 8
      %v1257 = vpop.permute.xlu0 %1256
      %1258 = vrot.lane.b32.xlu0 %v1170, 8
      %v1259 = vpop.permute.xlu0 %1258
      %1260 = vrot.lane.b32.xlu0 %v1171, 8
      %v1261 = vpop.permute.xlu0 %1260
      %1262 = vrot.lane.b32.xlu0 %v1172, 8
      %v1263 = vpop.permute.xlu0 %1262
      %1264 = vrot.lane.b32.xlu0 %v1173, 8
      %v1265 = vpop.permute.xlu0 %1264
      %1266 = vrot.lane.b32.xlu0 %v1174, 8
      %v1267 = vpop.permute.xlu0 %1266
      %1268 = vrot.lane.b32.xlu0 %v1175, 8
      %v1269 = vpop.permute.xlu0 %1268
      %1270 = vrot.lane.b32.xlu0 %v1176, 8
      %v1271 = vpop.permute.xlu0 %1270
      %1272 = vrot.lane.b32.xlu0 %v1177, 8
      %v1273 = vpop.permute.xlu0 %1272
      %vm1306 = vcmask 97344
      %1307 = vst.msk [vmem:[#allocation2] sm:$0xff] %vm1306, %v1211
      %1308 = vst.msk [vmem:[#allocation2 + $0x8] sm:$0xff] %vm1306, %v1213
      %1309 = vst.msk [vmem:[#allocation2 + $0x10] sm:$0xff] %vm1306, %v1215
      %1310 = vst.msk [vmem:[#allocation2 + $0x18] sm:$0xff] %vm1306, %v1217
      %1311 = vst.msk [vmem:[#allocation2 + $0x20] sm:$0xff] %vm1306, %v1219
      %1312 = vst.msk [vmem:[#allocation2 + $0x28] sm:$0xff] %vm1306, %v1221
      %1313 = vst.msk [vmem:[#allocation2 + $0x30] sm:$0xff] %vm1306, %v1223
      %1314 = vst.msk [vmem:[#allocation2 + $0x38] sm:$0xff] %vm1306, %v1225
      %1315 = vst.msk [vmem:[#allocation2 + $0x40] sm:$0xff] %vm1306, %v1227
      %1316 = vst.msk [vmem:[#allocation2 + $0x48] sm:$0xff] %vm1306, %v1229
      %1317 = vst.msk [vmem:[#allocation2 + $0x50] sm:$0xff] %vm1306, %v1231
      %1318 = vst.msk [vmem:[#allocation2 + $0x58] sm:$0xff] %vm1306, %v1233
      %1319 = vst.msk [vmem:[#allocation2 + $0x60] sm:$0xff] %vm1306, %v1235
      %1320 = vst.msk [vmem:[#allocation2 + $0x68] sm:$0xff] %vm1306, %v1237
      %1321 = vst.msk [vmem:[#allocation2 + $0x70] sm:$0xff] %vm1306, %v1239
      %1322 = vst.msk [vmem:[#allocation2 + $0x78] sm:$0xff] %vm1306, %v1241
      %1323 = vst.msk [vmem:[#allocation2 + $0x80] sm:$0xff] %vm1306, %v1243
      %1324 = vst.msk [vmem:[#allocation2 + $0x88] sm:$0xff] %vm1306, %v1245
      %1325 = vst.msk [vmem:[#allocation2 + $0x90] sm:$0xff] %vm1306, %v1247
      %1326 = vst.msk [vmem:[#allocation2 + $0x98] sm:$0xff] %vm1306, %v1249
      %1327 = vst.msk [vmem:[#allocation2 + $0xa0] sm:$0xff] %vm1306, %v1251
      %1328 = vst.msk [vmem:[#allocation2 + $0xa8] sm:$0xff] %vm1306, %v1253
      %1329 = vst.msk [vmem:[#allocation2 + $0xb0] sm:$0xff] %vm1306, %v1255
      %1330 = vst.msk [vmem:[#allocation2 + $0xb8] sm:$0xff] %vm1306, %v1257
      %1331 = vst.msk [vmem:[#allocation2 + $0xc0] sm:$0xff] %vm1306, %v1259
      %1332 = vst.msk [vmem:[#allocation2 + $0xc8] sm:$0xff] %vm1306, %v1261
      %1333 = vst.msk [vmem:[#allocation2 + $0xd0] sm:$0xff] %vm1306, %v1263
      %1334 = vst.msk [vmem:[#allocation2 + $0xd8] sm:$0xff] %vm1306, %v1265
      %1335 = vst.msk [vmem:[#allocation2 + $0xe0] sm:$0xff] %vm1306, %v1267
      %1336 = vst.msk [vmem:[#allocation2 + $0xe8] sm:$0xff] %vm1306, %v1269
      %1337 = vst.msk [vmem:[#allocation2 + $0xf0] sm:$0xff] %vm1306, %v1271
      %1338 = vst.msk [vmem:[#allocation2 + $0xf8] sm:$0xff] %vm1306, %v1273
      %s1339 = sadd.s32 %s208, 1
      %s1340 = smul.u32 %s1339, 16
      %s1341 = scalar_lea.vmem %s193, %s1340
      %v1342 = vld [vmem:[%s1341] sm:$0xff]
      %v1343 = vld [vmem:[%s1341 + $0x8] sm:$0xff]
      %v1344 = vld [vmem:[%s1341 + $0x10] sm:$0xff]
      %v1345 = vld [vmem:[%s1341 + $0x18] sm:$0xff]
      %v1346 = vld [vmem:[%s1341 + $0x20] sm:$0xff]
      %v1347 = vld [vmem:[%s1341 + $0x28] sm:$0xff]
      %v1348 = vld [vmem:[%s1341 + $0x30] sm:$0xff]
      %v1349 = vld [vmem:[%s1341 + $0x38] sm:$0xff]
      %v1350 = vld [vmem:[%s1341 + $0x40] sm:$0xff]
      %v1351 = vld [vmem:[%s1341 + $0x48] sm:$0xff]
      %v1352 = vld [vmem:[%s1341 + $0x50] sm:$0xff]
      %v1353 = vld [vmem:[%s1341 + $0x58] sm:$0xff]
      %v1354 = vld [vmem:[%s1341 + $0x60] sm:$0xff]
      %v1355 = vld [vmem:[%s1341 + $0x68] sm:$0xff]
      %v1356 = vld [vmem:[%s1341 + $0x70] sm:$0xff]
      %v1357 = vld [vmem:[%s1341 + $0x78] sm:$0xff]
      %v1358 = vld [vmem:[%s1341 + $0x80] sm:$0xff]
      %v1359 = vld [vmem:[%s1341 + $0x88] sm:$0xff]
      %v1360 = vld [vmem:[%s1341 + $0x90] sm:$0xff]
      %v1361 = vld [vmem:[%s1341 + $0x98] sm:$0xff]
      %v1362 = vld [vmem:[%s1341 + $0xa0] sm:$0xff]
      %v1363 = vld [vmem:[%s1341 + $0xa8] sm:$0xff]
      %v1364 = vld [vmem:[%s1341 + $0xb0] sm:$0xff]
      %v1365 = vld [vmem:[%s1341 + $0xb8] sm:$0xff]
      %v1366 = vld [vmem:[%s1341 + $0xc0] sm:$0xff]
      %v1367 = vld [vmem:[%s1341 + $0xc8] sm:$0xff]
      %v1368 = vld [vmem:[%s1341 + $0xd0] sm:$0xff]
      %v1369 = vld [vmem:[%s1341 + $0xd8] sm:$0xff]
      %v1370 = vld [vmem:[%s1341 + $0xe0] sm:$0xff]
      %v1371 = vld [vmem:[%s1341 + $0xe8] sm:$0xff]
      %v1372 = vld [vmem:[%s1341 + $0xf0] sm:$0xff]
      %v1373 = vld [vmem:[%s1341 + $0xf8] sm:$0xff]
      %v1374 = vsel %vm756, %v1342, 0.0
      %v1375 = vsel %vm757, %v1343, 0.0
      %v1376 = vsel %vm758, %v1344, 0.0
      %v1377 = vsel %vm759, %v1345, 0.0
      %v1378 = vsel %vm760, %v1346, 0.0
      %v1379 = vsel %vm761, %v1347, 0.0
      %v1380 = vsel %vm762, %v1348, 0.0
      %v1381 = vsel %vm763, %v1349, 0.0
      %v1382 = vsel %vm764, %v1350, 0.0
      %v1383 = vsel %vm765, %v1351, 0.0
      %v1384 = vsel %vm766, %v1352, 0.0
      %v1385 = vsel %vm767, %v1353, 0.0
      %v1386 = vsel %vm768, %v1354, 0.0
      %v1387 = vsel %vm769, %v1355, 0.0
      %v1388 = vsel %vm770, %v1356, 0.0
      %v1389 = vsel %vm771, %v1357, 0.0
      %v1390 = vsel %vm772, %v1358, 0.0
      %v1391 = vsel %vm773, %v1359, 0.0
      %v1392 = vsel %vm774, %v1360, 0.0
      %v1393 = vsel %vm775, %v1361, 0.0
      %v1394 = vsel %vm776, %v1362, 0.0
      %v1395 = vsel %vm777, %v1363, 0.0
      %v1396 = vsel %vm778, %v1364, 0.0
      %v1397 = vsel %vm779, %v1365, 0.0
      %v1398 = vsel %vm780, %v1366, 0.0
      %v1399 = vsel %vm781, %v1367, 0.0
      %v1400 = vsel %vm782, %v1368, 0.0
      %v1401 = vsel %vm783, %v1369, 0.0
      %v1402 = vsel %vm784, %v1370, 0.0
      %v1403 = vsel %vm785, %v1371, 0.0
      %v1404 = vsel %vm786, %v1372, 0.0
      %v1405 = vsel %vm787, %v1373, 0.0
      %1438 = vrot.lane.b32.xlu0 %v1374, 12
      %v1439 = vpop.permute.xlu0 %1438
      %1440 = vrot.lane.b32.xlu0 %v1375, 12
      %v1441 = vpop.permute.xlu0 %1440
      %1442 = vrot.lane.b32.xlu0 %v1376, 12
      %v1443 = vpop.permute.xlu0 %1442
      %1444 = vrot.lane.b32.xlu0 %v1377, 12
      %v1445 = vpop.permute.xlu0 %1444
      %1446 = vrot.lane.b32.xlu0 %v1378, 12
      %v1447 = vpop.permute.xlu0 %1446
      %1448 = vrot.lane.b32.xlu0 %v1379, 12
      %v1449 = vpop.permute.xlu0 %1448
      %1450 = vrot.lane.b32.xlu0 %v1380, 12
      %v1451 = vpop.permute.xlu0 %1450
      %1452 = vrot.lane.b32.xlu0 %v1381, 12
      %v1453 = vpop.permute.xlu0 %1452
      %1454 = vrot.lane.b32.xlu0 %v1382, 12
      %v1455 = vpop.permute.xlu0 %1454
      %1456 = vrot.lane.b32.xlu0 %v1383, 12
      %v1457 = vpop.permute.xlu0 %1456
      %1458 = vrot.lane.b32.xlu0 %v1384, 12
      %v1459 = vpop.permute.xlu0 %1458
      %1460 = vrot.lane.b32.xlu0 %v1385, 12
      %v1461 = vpop.permute.xlu0 %1460
      %1462 = vrot.lane.b32.xlu0 %v1386, 12
      %v1463 = vpop.permute.xlu0 %1462
      %1464 = vrot.lane.b32.xlu0 %v1387, 12
      %v1465 = vpop.permute.xlu0 %1464
      %1466 = vrot.lane.b32.xlu0 %v1388, 12
      %v1467 = vpop.permute.xlu0 %1466
      %1468 = vrot.lane.b32.xlu0 %v1389, 12
      %v1469 = vpop.permute.xlu0 %1468
      %1470 = vrot.lane.b32.xlu0 %v1390, 12
      %v1471 = vpop.permute.xlu0 %1470
      %1472 = vrot.lane.b32.xlu0 %v1391, 12
      %v1473 = vpop.permute.xlu0 %1472
      %1474 = vrot.lane.b32.xlu0 %v1392, 12
      %v1475 = vpop.permute.xlu0 %1474
      %1476 = vrot.lane.b32.xlu0 %v1393, 12
      %v1477 = vpop.permute.xlu0 %1476
      %1478 = vrot.lane.b32.xlu0 %v1394, 12
      %v1479 = vpop.permute.xlu0 %1478
      %1480 = vrot.lane.b32.xlu0 %v1395, 12
      %v1481 = vpop.permute.xlu0 %1480
      %1482 = vrot.lane.b32.xlu0 %v1396, 12
      %v1483 = vpop.permute.xlu0 %1482
      %1484 = vrot.lane.b32.xlu0 %v1397, 12
      %v1485 = vpop.permute.xlu0 %1484
      %1486 = vrot.lane.b32.xlu0 %v1398, 12
      %v1487 = vpop.permute.xlu0 %1486
      %1488 = vrot.lane.b32.xlu0 %v1399, 12
      %v1489 = vpop.permute.xlu0 %1488
      %1490 = vrot.lane.b32.xlu0 %v1400, 12
      %v1491 = vpop.permute.xlu0 %1490
      %1492 = vrot.lane.b32.xlu0 %v1401, 12
      %v1493 = vpop.permute.xlu0 %1492
      %1494 = vrot.lane.b32.xlu0 %v1402, 12
      %v1495 = vpop.permute.xlu0 %1494
      %1496 = vrot.lane.b32.xlu0 %v1403, 12
      %v1497 = vpop.permute.xlu0 %1496
      %1498 = vrot.lane.b32.xlu0 %v1404, 12
      %v1499 = vpop.permute.xlu0 %1498
      %1500 = vrot.lane.b32.xlu0 %v1405, 12
      %v1501 = vpop.permute.xlu0 %1500
      %vm1534 = vcmask 130144
      %1535 = vst.msk [vmem:[#allocation2] sm:$0xff] %vm1534, %v1439
      %1536 = vst.msk [vmem:[#allocation2 + $0x8] sm:$0xff] %vm1534, %v1441
      %1537 = vst.msk [vmem:[#allocation2 + $0x10] sm:$0xff] %vm1534, %v1443
      %1538 = vst.msk [vmem:[#allocation2 + $0x18] sm:$0xff] %vm1534, %v1445
      %1539 = vst.msk [vmem:[#allocation2 + $0x20] sm:$0xff] %vm1534, %v1447
      %1540 = vst.msk [vmem:[#allocation2 + $0x28] sm:$0xff] %vm1534, %v1449
      %1541 = vst.msk [vmem:[#allocation2 + $0x30] sm:$0xff] %vm1534, %v1451
      %1542 = vst.msk [vmem:[#allocation2 + $0x38] sm:$0xff] %vm1534, %v1453
      %1543 = vst.msk [vmem:[#allocation2 + $0x40] sm:$0xff] %vm1534, %v1455
      %1544 = vst.msk [vmem:[#allocation2 + $0x48] sm:$0xff] %vm1534, %v1457
      %1545 = vst.msk [vmem:[#allocation2 + $0x50] sm:$0xff] %vm1534, %v1459
      %1546 = vst.msk [vmem:[#allocation2 + $0x58] sm:$0xff] %vm1534, %v1461
      %1547 = vst.msk [vmem:[#allocation2 + $0x60] sm:$0xff] %vm1534, %v1463
      %1548 = vst.msk [vmem:[#allocation2 + $0x68] sm:$0xff] %vm1534, %v1465
      %1549 = vst.msk [vmem:[#allocation2 + $0x70] sm:$0xff] %vm1534, %v1467
      %1550 = vst.msk [vmem:[#allocation2 + $0x78] sm:$0xff] %vm1534, %v1469
      %1551 = vst.msk [vmem:[#allocation2 + $0x80] sm:$0xff] %vm1534, %v1471
      %1552 = vst.msk [vmem:[#allocation2 + $0x88] sm:$0xff] %vm1534, %v1473
      %1553 = vst.msk [vmem:[#allocation2 + $0x90] sm:$0xff] %vm1534, %v1475
      %1554 = vst.msk [vmem:[#allocation2 + $0x98] sm:$0xff] %vm1534, %v1477
      %1555 = vst.msk [vmem:[#allocation2 + $0xa0] sm:$0xff] %vm1534, %v1479
      %1556 = vst.msk [vmem:[#allocation2 + $0xa8] sm:$0xff] %vm1534, %v1481
      %1557 = vst.msk [vmem:[#allocation2 + $0xb0] sm:$0xff] %vm1534, %v1483
      %1558 = vst.msk [vmem:[#allocation2 + $0xb8] sm:$0xff] %vm1534, %v1485
      %1559 = vst.msk [vmem:[#allocation2 + $0xc0] sm:$0xff] %vm1534, %v1487
      %1560 = vst.msk [vmem:[#allocation2 + $0xc8] sm:$0xff] %vm1534, %v1489
      %1561 = vst.msk [vmem:[#allocation2 + $0xd0] sm:$0xff] %vm1534, %v1491
      %1562 = vst.msk [vmem:[#allocation2 + $0xd8] sm:$0xff] %vm1534, %v1493
      %1563 = vst.msk [vmem:[#allocation2 + $0xe0] sm:$0xff] %vm1534, %v1495
      %1564 = vst.msk [vmem:[#allocation2 + $0xe8] sm:$0xff] %vm1534, %v1497
      %1565 = vst.msk [vmem:[#allocation2 + $0xf0] sm:$0xff] %vm1534, %v1499
      %1566 = vst.msk [vmem:[#allocation2 + $0xf8] sm:$0xff] %vm1534, %v1501
      %s1567 = sadd.s32 %s1340, 1
      %s1568 = scalar_lea.vmem %s193, %s1567
      %v1569 = vld [vmem:[%s1568] sm:$0xff]
      %v1570 = vld [vmem:[%s1568 + $0x8] sm:$0xff]
      %v1571 = vld [vmem:[%s1568 + $0x10] sm:$0xff]
      %v1572 = vld [vmem:[%s1568 + $0x18] sm:$0xff]
      %v1573 = vld [vmem:[%s1568 + $0x20] sm:$0xff]
      %v1574 = vld [vmem:[%s1568 + $0x28] sm:$0xff]
      %v1575 = vld [vmem:[%s1568 + $0x30] sm:$0xff]
      %v1576 = vld [vmem:[%s1568 + $0x38] sm:$0xff]
      %v1577 = vld [vmem:[%s1568 + $0x40] sm:$0xff]
      %v1578 = vld [vmem:[%s1568 + $0x48] sm:$0xff]
      %v1579 = vld [vmem:[%s1568 + $0x50] sm:$0xff]
      %v1580 = vld [vmem:[%s1568 + $0x58] sm:$0xff]
      %v1581 = vld [vmem:[%s1568 + $0x60] sm:$0xff]
      %v1582 = vld [vmem:[%s1568 + $0x68] sm:$0xff]
      %v1583 = vld [vmem:[%s1568 + $0x70] sm:$0xff]
      %v1584 = vld [vmem:[%s1568 + $0x78] sm:$0xff]
      %v1585 = vld [vmem:[%s1568 + $0x80] sm:$0xff]
      %v1586 = vld [vmem:[%s1568 + $0x88] sm:$0xff]
      %v1587 = vld [vmem:[%s1568 + $0x90] sm:$0xff]
      %v1588 = vld [vmem:[%s1568 + $0x98] sm:$0xff]
      %v1589 = vld [vmem:[%s1568 + $0xa0] sm:$0xff]
      %v1590 = vld [vmem:[%s1568 + $0xa8] sm:$0xff]
      %v1591 = vld [vmem:[%s1568 + $0xb0] sm:$0xff]
      %v1592 = vld [vmem:[%s1568 + $0xb8] sm:$0xff]
      %v1593 = vld [vmem:[%s1568 + $0xc0] sm:$0xff]
      %v1594 = vld [vmem:[%s1568 + $0xc8] sm:$0xff]
      %v1595 = vld [vmem:[%s1568 + $0xd0] sm:$0xff]
      %v1596 = vld [vmem:[%s1568 + $0xd8] sm:$0xff]
      %v1597 = vld [vmem:[%s1568 + $0xe0] sm:$0xff]
      %v1598 = vld [vmem:[%s1568 + $0xe8] sm:$0xff]
      %v1599 = vld [vmem:[%s1568 + $0xf0] sm:$0xff]
      %v1600 = vld [vmem:[%s1568 + $0xf8] sm:$0xff]
      %1633 = vrot.lane.b32.xlu0 %v1569, 16
      %v1634 = vpop.permute.xlu0 %1633
      %1635 = vrot.lane.b32.xlu0 %v1570, 16
      %v1636 = vpop.permute.xlu0 %1635
      %1637 = vrot.lane.b32.xlu0 %v1571, 16
      %v1638 = vpop.permute.xlu0 %1637
      %1639 = vrot.lane.b32.xlu0 %v1572, 16
      %v1640 = vpop.permute.xlu0 %1639
      %1641 = vrot.lane.b32.xlu0 %v1573, 16
      %v1642 = vpop.permute.xlu0 %1641
      %1643 = vrot.lane.b32.xlu0 %v1574, 16
      %v1644 = vpop.permute.xlu0 %1643
      %1645 = vrot.lane.b32.xlu0 %v1575, 16
      %v1646 = vpop.permute.xlu0 %1645
      %1647 = vrot.lane.b32.xlu0 %v1576, 16
      %v1648 = vpop.permute.xlu0 %1647
      %1649 = vrot.lane.b32.xlu0 %v1577, 16
      %v1650 = vpop.permute.xlu0 %1649
      %1651 = vrot.lane.b32.xlu0 %v1578, 16
      %v1652 = vpop.permute.xlu0 %1651
      %1653 = vrot.lane.b32.xlu0 %v1579, 16
      %v1654 = vpop.permute.xlu0 %1653
      %1655 = vrot.lane.b32.xlu0 %v1580, 16
      %v1656 = vpop.permute.xlu0 %1655
      %1657 = vrot.lane.b32.xlu0 %v1581, 16
      %v1658 = vpop.permute.xlu0 %1657
      %1659 = vrot.lane.b32.xlu0 %v1582, 16
      %v1660 = vpop.permute.xlu0 %1659
      %1661 = vrot.lane.b32.xlu0 %v1583, 16
      %v1662 = vpop.permute.xlu0 %1661
      %1663 = vrot.lane.b32.xlu0 %v1584, 16
      %v1664 = vpop.permute.xlu0 %1663
      %1665 = vrot.lane.b32.xlu0 %v1585, 16
      %v1666 = vpop.permute.xlu0 %1665
      %1667 = vrot.lane.b32.xlu0 %v1586, 16
      %v1668 = vpop.permute.xlu0 %1667
      %1669 = vrot.lane.b32.xlu0 %v1587, 16
      %v1670 = vpop.permute.xlu0 %1669
      %1671 = vrot.lane.b32.xlu0 %v1588, 16
      %v1672 = vpop.permute.xlu0 %1671
      %1673 = vrot.lane.b32.xlu0 %v1589, 16
      %v1674 = vpop.permute.xlu0 %1673
      %1675 = vrot.lane.b32.xlu0 %v1590, 16
      %v1676 = vpop.permute.xlu0 %1675
      %1677 = vrot.lane.b32.xlu0 %v1591, 16
      %v1678 = vpop.permute.xlu0 %1677
      %1679 = vrot.lane.b32.xlu0 %v1592, 16
      %v1680 = vpop.permute.xlu0 %1679
      %1681 = vrot.lane.b32.xlu0 %v1593, 16
      %v1682 = vpop.permute.xlu0 %1681
      %1683 = vrot.lane.b32.xlu0 %v1594, 16
      %v1684 = vpop.permute.xlu0 %1683
      %1685 = vrot.lane.b32.xlu0 %v1595, 16
      %v1686 = vpop.permute.xlu0 %1685
      %1687 = vrot.lane.b32.xlu0 %v1596, 16
      %v1688 = vpop.permute.xlu0 %1687
      %1689 = vrot.lane.b32.xlu0 %v1597, 16
      %v1690 = vpop.permute.xlu0 %1689
      %1691 = vrot.lane.b32.xlu0 %v1598, 16
      %v1692 = vpop.permute.xlu0 %1691
      %1693 = vrot.lane.b32.xlu0 %v1599, 16
      %v1694 = vpop.permute.xlu0 %1693
      %1695 = vrot.lane.b32.xlu0 %v1600, 16
      %v1696 = vpop.permute.xlu0 %1695
      %vm1729 = vcmask 162944
      %1730 = vst.msk [vmem:[#allocation2] sm:$0xff] %vm1729, %v1634
      %1731 = vst.msk [vmem:[#allocation2 + $0x8] sm:$0xff] %vm1729, %v1636
      %1732 = vst.msk [vmem:[#allocation2 + $0x10] sm:$0xff] %vm1729, %v1638
      %1733 = vst.msk [vmem:[#allocation2 + $0x18] sm:$0xff] %vm1729, %v1640
      %1734 = vst.msk [vmem:[#allocation2 + $0x20] sm:$0xff] %vm1729, %v1642
      %1735 = vst.msk [vmem:[#allocation2 + $0x28] sm:$0xff] %vm1729, %v1644
      %1736 = vst.msk [vmem:[#allocation2 + $0x30] sm:$0xff] %vm1729, %v1646
      %1737 = vst.msk [vmem:[#allocation2 + $0x38] sm:$0xff] %vm1729, %v1648
      %1738 = vst.msk [vmem:[#allocation2 + $0x40] sm:$0xff] %vm1729, %v1650
      %1739 = vst.msk [vmem:[#allocation2 + $0x48] sm:$0xff] %vm1729, %v1652
      %1740 = vst.msk [vmem:[#allocation2 + $0x50] sm:$0xff] %vm1729, %v1654
      %1741 = vst.msk [vmem:[#allocation2 + $0x58] sm:$0xff] %vm1729, %v1656
      %1742 = vst.msk [vmem:[#allocation2 + $0x60] sm:$0xff] %vm1729, %v1658
      %1743 = vst.msk [vmem:[#allocation2 + $0x68] sm:$0xff] %vm1729, %v1660
      %1744 = vst.msk [vmem:[#allocation2 + $0x70] sm:$0xff] %vm1729, %v1662
      %1745 = vst.msk [vmem:[#allocation2 + $0x78] sm:$0xff] %vm1729, %v1664
      %1746 = vst.msk [vmem:[#allocation2 + $0x80] sm:$0xff] %vm1729, %v1666
      %1747 = vst.msk [vmem:[#allocation2 + $0x88] sm:$0xff] %vm1729, %v1668
      %1748 = vst.msk [vmem:[#allocation2 + $0x90] sm:$0xff] %vm1729, %v1670
      %1749 = vst.msk [vmem:[#allocation2 + $0x98] sm:$0xff] %vm1729, %v1672
      %1750 = vst.msk [vmem:[#allocation2 + $0xa0] sm:$0xff] %vm1729, %v1674
      %1751 = vst.msk [vmem:[#allocation2 + $0xa8] sm:$0xff] %vm1729, %v1676
      %1752 = vst.msk [vmem:[#allocation2 + $0xb0] sm:$0xff] %vm1729, %v1678
      %1753 = vst.msk [vmem:[#allocation2 + $0xb8] sm:$0xff] %vm1729, %v1680
      %1754 = vst.msk [vmem:[#allocation2 + $0xc0] sm:$0xff] %vm1729, %v1682
      %1755 = vst.msk [vmem:[#allocation2 + $0xc8] sm:$0xff] %vm1729, %v1684
      %1756 = vst.msk [vmem:[#allocation2 + $0xd0] sm:$0xff] %vm1729, %v1686
      %1757 = vst.msk [vmem:[#allocation2 + $0xd8] sm:$0xff] %vm1729, %v1688
      %1758 = vst.msk [vmem:[#allocation2 + $0xe0] sm:$0xff] %vm1729, %v1690
      %1759 = vst.msk [vmem:[#allocation2 + $0xe8] sm:$0xff] %vm1729, %v1692
      %1760 = vst.msk [vmem:[#allocation2 + $0xf0] sm:$0xff] %vm1729, %v1694
      %1761 = vst.msk [vmem:[#allocation2 + $0xf8] sm:$0xff] %vm1729, %v1696
      %s1762 = sadd.s32 %s1340, 2
      %s1763 = scalar_lea.vmem %s193, %s1762
      %v1764 = vld [vmem:[%s1763] sm:$0xff]
      %v1765 = vld [vmem:[%s1763 + $0x8] sm:$0xff]
      %v1766 = vld [vmem:[%s1763 + $0x10] sm:$0xff]
      %v1767 = vld [vmem:[%s1763 + $0x18] sm:$0xff]
      %v1768 = vld [vmem:[%s1763 + $0x20] sm:$0xff]
      %v1769 = vld [vmem:[%s1763 + $0x28] sm:$0xff]
      %v1770 = vld [vmem:[%s1763 + $0x30] sm:$0xff]
      %v1771 = vld [vmem:[%s1763 + $0x38] sm:$0xff]
      %v1772 = vld [vmem:[%s1763 + $0x40] sm:$0xff]
      %v1773 = vld [vmem:[%s1763 + $0x48] sm:$0xff]
      %v1774 = vld [vmem:[%s1763 + $0x50] sm:$0xff]
      %v1775 = vld [vmem:[%s1763 + $0x58] sm:$0xff]
      %v1776 = vld [vmem:[%s1763 + $0x60] sm:$0xff]
      %v1777 = vld [vmem:[%s1763 + $0x68] sm:$0xff]
      %v1778 = vld [vmem:[%s1763 + $0x70] sm:$0xff]
      %v1779 = vld [vmem:[%s1763 + $0x78] sm:$0xff]
      %v1780 = vld [vmem:[%s1763 + $0x80] sm:$0xff]
      %v1781 = vld [vmem:[%s1763 + $0x88] sm:$0xff]
      %v1782 = vld [vmem:[%s1763 + $0x90] sm:$0xff]
      %v1783 = vld [vmem:[%s1763 + $0x98] sm:$0xff]
      %v1784 = vld [vmem:[%s1763 + $0xa0] sm:$0xff]
      %v1785 = vld [vmem:[%s1763 + $0xa8] sm:$0xff]
      %v1786 = vld [vmem:[%s1763 + $0xb0] sm:$0xff]
      %v1787 = vld [vmem:[%s1763 + $0xb8] sm:$0xff]
      %v1788 = vld [vmem:[%s1763 + $0xc0] sm:$0xff]
      %v1789 = vld [vmem:[%s1763 + $0xc8] sm:$0xff]
      %v1790 = vld [vmem:[%s1763 + $0xd0] sm:$0xff]
      %v1791 = vld [vmem:[%s1763 + $0xd8] sm:$0xff]
      %v1792 = vld [vmem:[%s1763 + $0xe0] sm:$0xff]
      %v1793 = vld [vmem:[%s1763 + $0xe8] sm:$0xff]
      %v1794 = vld [vmem:[%s1763 + $0xf0] sm:$0xff]
      %v1795 = vld [vmem:[%s1763 + $0xf8] sm:$0xff]
      %v1796 = vsel %vm1114, %v1764, 0.0
      %v1797 = vsel %vm1115, %v1765, 0.0
      %v1798 = vsel %vm1116, %v1766, 0.0
      %v1799 = vsel %vm1117, %v1767, 0.0
      %v1800 = vsel %vm1118, %v1768, 0.0
      %v1801 = vsel %vm1119, %v1769, 0.0
      %v1802 = vsel %vm1120, %v1770, 0.0
      %v1803 = vsel %vm1121, %v1771, 0.0
      %v1804 = vsel %vm1122, %v1772, 0.0
      %v1805 = vsel %vm1123, %v1773, 0.0
      %v1806 = vsel %vm1124, %v1774, 0.0
      %v1807 = vsel %vm1125, %v1775, 0.0
      %v1808 = vsel %vm1126, %v1776, 0.0
      %v1809 = vsel %vm1127, %v1777, 0.0
      %v1810 = vsel %vm1128, %v1778, 0.0
      %v1811 = vsel %vm1129, %v1779, 0.0
      %v1812 = vsel %vm1130, %v1780, 0.0
      %v1813 = vsel %vm1131, %v1781, 0.0
      %v1814 = vsel %vm1132, %v1782, 0.0
      %v1815 = vsel %vm1133, %v1783, 0.0
      %v1816 = vsel %vm1134, %v1784, 0.0
      %v1817 = vsel %vm1135, %v1785, 0.0
      %v1818 = vsel %vm1136, %v1786, 0.0
      %v1819 = vsel %vm1137, %v1787, 0.0
      %v1820 = vsel %vm1138, %v1788, 0.0
      %v1821 = vsel %vm1139, %v1789, 0.0
      %v1822 = vsel %vm1140, %v1790, 0.0
      %v1823 = vsel %vm1141, %v1791, 0.0
      %v1824 = vsel %vm1142, %v1792, 0.0
      %v1825 = vsel %vm1143, %v1793, 0.0
      %v1826 = vsel %vm1144, %v1794, 0.0
      %v1827 = vsel %vm1145, %v1795, 0.0
      %1860 = vrot.lane.b32.xlu0 %v1796, 20
      %v1861 = vpop.permute.xlu0 %1860
      %1862 = vrot.lane.b32.xlu0 %v1797, 20
      %v1863 = vpop.permute.xlu0 %1862
      %1864 = vrot.lane.b32.xlu0 %v1798, 20
      %v1865 = vpop.permute.xlu0 %1864
      %1866 = vrot.lane.b32.xlu0 %v1799, 20
      %v1867 = vpop.permute.xlu0 %1866
      %1868 = vrot.lane.b32.xlu0 %v1800, 20
      %v1869 = vpop.permute.xlu0 %1868
      %1870 = vrot.lane.b32.xlu0 %v1801, 20
      %v1871 = vpop.permute.xlu0 %1870
      %1872 = vrot.lane.b32.xlu0 %v1802, 20
      %v1873 = vpop.permute.xlu0 %1872
      %1874 = vrot.lane.b32.xlu0 %v1803, 20
      %v1875 = vpop.permute.xlu0 %1874
      %1876 = vrot.lane.b32.xlu0 %v1804, 20
      %v1877 = vpop.permute.xlu0 %1876
      %1878 = vrot.lane.b32.xlu0 %v1805, 20
      %v1879 = vpop.permute.xlu0 %1878
      %1880 = vrot.lane.b32.xlu0 %v1806, 20
      %v1881 = vpop.permute.xlu0 %1880
      %1882 = vrot.lane.b32.xlu0 %v1807, 20
      %v1883 = vpop.permute.xlu0 %1882
      %1884 = vrot.lane.b32.xlu0 %v1808, 20
      %v1885 = vpop.permute.xlu0 %1884
      %1886 = vrot.lane.b32.xlu0 %v1809, 20
      %v1887 = vpop.permute.xlu0 %1886
      %1888 = vrot.lane.b32.xlu0 %v1810, 20
      %v1889 = vpop.permute.xlu0 %1888
      %1890 = vrot.lane.b32.xlu0 %v1811, 20
      %v1891 = vpop.permute.xlu0 %1890
      %1892 = vrot.lane.b32.xlu0 %v1812, 20
      %v1893 = vpop.permute.xlu0 %1892
      %1894 = vrot.lane.b32.xlu0 %v1813, 20
      %v1895 = vpop.permute.xlu0 %1894
      %1896 = vrot.lane.b32.xlu0 %v1814, 20
      %v1897 = vpop.permute.xlu0 %1896
      %1898 = vrot.lane.b32.xlu0 %v1815, 20
      %v1899 = vpop.permute.xlu0 %1898
      %1900 = vrot.lane.b32.xlu0 %v1816, 20
      %v1901 = vpop.permute.xlu0 %1900
      %1902 = vrot.lane.b32.xlu0 %v1817, 20
      %v1903 = vpop.permute.xlu0 %1902
      %1904 = vrot.lane.b32.xlu0 %v1818, 20
      %v1905 = vpop.permute.xlu0 %1904
      %1906 = vrot.lane.b32.xlu0 %v1819, 20
      %v1907 = vpop.permute.xlu0 %1906
      %1908 = vrot.lane.b32.xlu0 %v1820, 20
      %v1909 = vpop.permute.xlu0 %1908
      %1910 = vrot.lane.b32.xlu0 %v1821, 20
      %v1911 = vpop.permute.xlu0 %1910
      %1912 = vrot.lane.b32.xlu0 %v1822, 20
      %v1913 = vpop.permute.xlu0 %1912
      %1914 = vrot.lane.b32.xlu0 %v1823, 20
      %v1915 = vpop.permute.xlu0 %1914
      %1916 = vrot.lane.b32.xlu0 %v1824, 20
      %v1917 = vpop.permute.xlu0 %1916
      %1918 = vrot.lane.b32.xlu0 %v1825, 20
      %v1919 = vpop.permute.xlu0 %1918
      %1920 = vrot.lane.b32.xlu0 %v1826, 20
      %v1921 = vpop.permute.xlu0 %1920
      %1922 = vrot.lane.b32.xlu0 %v1827, 20
      %v1923 = vpop.permute.xlu0 %1922
      %vm1956 = vcmask 195744
      %1957 = vst.msk [vmem:[#allocation2] sm:$0xff] %vm1956, %v1861
      %1958 = vst.msk [vmem:[#allocation2 + $0x8] sm:$0xff] %vm1956, %v1863
      %1959 = vst.msk [vmem:[#allocation2 + $0x10] sm:$0xff] %vm1956, %v1865
      %1960 = vst.msk [vmem:[#allocation2 + $0x18] sm:$0xff] %vm1956, %v1867
      %1961 = vst.msk [vmem:[#allocation2 + $0x20] sm:$0xff] %vm1956, %v1869
      %1962 = vst.msk [vmem:[#allocation2 + $0x28] sm:$0xff] %vm1956, %v1871
      %1963 = vst.msk [vmem:[#allocation2 + $0x30] sm:$0xff] %vm1956, %v1873
      %1964 = vst.msk [vmem:[#allocation2 + $0x38] sm:$0xff] %vm1956, %v1875
      %1965 = vst.msk [vmem:[#allocation2 + $0x40] sm:$0xff] %vm1956, %v1877
      %1966 = vst.msk [vmem:[#allocation2 + $0x48] sm:$0xff] %vm1956, %v1879
      %1967 = vst.msk [vmem:[#allocation2 + $0x50] sm:$0xff] %vm1956, %v1881
      %1968 = vst.msk [vmem:[#allocation2 + $0x58] sm:$0xff] %vm1956, %v1883
      %1969 = vst.msk [vmem:[#allocation2 + $0x60] sm:$0xff] %vm1956, %v1885
      %1970 = vst.msk [vmem:[#allocation2 + $0x68] sm:$0xff] %vm1956, %v1887
      %1971 = vst.msk [vmem:[#allocation2 + $0x70] sm:$0xff] %vm1956, %v1889
      %1972 = vst.msk [vmem:[#allocation2 + $0x78] sm:$0xff] %vm1956, %v1891
      %1973 = vst.msk [vmem:[#allocation2 + $0x80] sm:$0xff] %vm1956, %v1893
      %1974 = vst.msk [vmem:[#allocation2 + $0x88] sm:$0xff] %vm1956, %v1895
      %1975 = vst.msk [vmem:[#allocation2 + $0x90] sm:$0xff] %vm1956, %v1897
      %1976 = vst.msk [vmem:[#allocation2 + $0x98] sm:$0xff] %vm1956, %v1899
      %1977 = vst.msk [vmem:[#allocation2 + $0xa0] sm:$0xff] %vm1956, %v1901
      %1978 = vst.msk [vmem:[#allocation2 + $0xa8] sm:$0xff] %vm1956, %v1903
      %1979 = vst.msk [vmem:[#allocation2 + $0xb0] sm:$0xff] %vm1956, %v1905
      %1980 = vst.msk [vmem:[#allocation2 + $0xb8] sm:$0xff] %vm1956, %v1907
      %1981 = vst.msk [vmem:[#allocation2 + $0xc0] sm:$0xff] %vm1956, %v1909
      %1982 = vst.msk [vmem:[#allocation2 + $0xc8] sm:$0xff] %vm1956, %v1911
      %1983 = vst.msk [vmem:[#allocation2 + $0xd0] sm:$0xff] %vm1956, %v1913
      %1984 = vst.msk [vmem:[#allocation2 + $0xd8] sm:$0xff] %vm1956, %v1915
      %1985 = vst.msk [vmem:[#allocation2 + $0xe0] sm:$0xff] %vm1956, %v1917
      %1986 = vst.msk [vmem:[#allocation2 + $0xe8] sm:$0xff] %vm1956, %v1919
      %1987 = vst.msk [vmem:[#allocation2 + $0xf0] sm:$0xff] %vm1956, %v1921
      %1988 = vst.msk [vmem:[#allocation2 + $0xf8] sm:$0xff] %vm1956, %v1923
      %s1989 = sadd.s32 %s208, 2
      %s1990 = smul.u32 %s1989, 16
      %s1991 = scalar_lea.vmem %s193, %s1990
      %v1992 = vld [vmem:[%s1991] sm:$0xff]
      %v1993 = vld [vmem:[%s1991 + $0x8] sm:$0xff]
      %v1994 = vld [vmem:[%s1991 + $0x10] sm:$0xff]
      %v1995 = vld [vmem:[%s1991 + $0x18] sm:$0xff]
      %v1996 = vld [vmem:[%s1991 + $0x20] sm:$0xff]
      %v1997 = vld [vmem:[%s1991 + $0x28] sm:$0xff]
      %v1998 = vld [vmem:[%s1991 + $0x30] sm:$0xff]
      %v1999 = vld [vmem:[%s1991 + $0x38] sm:$0xff]
      %v2000 = vld [vmem:[%s1991 + $0x40] sm:$0xff]
      %v2001 = vld [vmem:[%s1991 + $0x48] sm:$0xff]
      %v2002 = vld [vmem:[%s1991 + $0x50] sm:$0xff]
      %v2003 = vld [vmem:[%s1991 + $0x58] sm:$0xff]
      %v2004 = vld [vmem:[%s1991 + $0x60] sm:$0xff]
      %v2005 = vld [vmem:[%s1991 + $0x68] sm:$0xff]
      %v2006 = vld [vmem:[%s1991 + $0x70] sm:$0xff]
      %v2007 = vld [vmem:[%s1991 + $0x78] sm:$0xff]
      %v2008 = vld [vmem:[%s1991 + $0x80] sm:$0xff]
      %v2009 = vld [vmem:[%s1991 + $0x88] sm:$0xff]
      %v2010 = vld [vmem:[%s1991 + $0x90] sm:$0xff]
      %v2011 = vld [vmem:[%s1991 + $0x98] sm:$0xff]
      %v2012 = vld [vmem:[%s1991 + $0xa0] sm:$0xff]
      %v2013 = vld [vmem:[%s1991 + $0xa8] sm:$0xff]
      %v2014 = vld [vmem:[%s1991 + $0xb0] sm:$0xff]
      %v2015 = vld [vmem:[%s1991 + $0xb8] sm:$0xff]
      %v2016 = vld [vmem:[%s1991 + $0xc0] sm:$0xff]
      %v2017 = vld [vmem:[%s1991 + $0xc8] sm:$0xff]
      %v2018 = vld [vmem:[%s1991 + $0xd0] sm:$0xff]
      %v2019 = vld [vmem:[%s1991 + $0xd8] sm:$0xff]
      %v2020 = vld [vmem:[%s1991 + $0xe0] sm:$0xff]
      %v2021 = vld [vmem:[%s1991 + $0xe8] sm:$0xff]
      %v2022 = vld [vmem:[%s1991 + $0xf0] sm:$0xff]
      %v2023 = vld [vmem:[%s1991 + $0xf8] sm:$0xff]
      %v2024 = vsel %vm756, %v1992, 0.0
      %v2025 = vsel %vm757, %v1993, 0.0
      %v2026 = vsel %vm758, %v1994, 0.0
      %v2027 = vsel %vm759, %v1995, 0.0
      %v2028 = vsel %vm760, %v1996, 0.0
      %v2029 = vsel %vm761, %v1997, 0.0
      %v2030 = vsel %vm762, %v1998, 0.0
      %v2031 = vsel %vm763, %v1999, 0.0
      %v2032 = vsel %vm764, %v2000, 0.0
      %v2033 = vsel %vm765, %v2001, 0.0
      %v2034 = vsel %vm766, %v2002, 0.0
      %v2035 = vsel %vm767, %v2003, 0.0
      %v2036 = vsel %vm768, %v2004, 0.0
      %v2037 = vsel %vm769, %v2005, 0.0
      %v2038 = vsel %vm770, %v2006, 0.0
      %v2039 = vsel %vm771, %v2007, 0.0
      %v2040 = vsel %vm772, %v2008, 0.0
      %v2041 = vsel %vm773, %v2009, 0.0
      %v2042 = vsel %vm774, %v2010, 0.0
      %v2043 = vsel %vm775, %v2011, 0.0
      %v2044 = vsel %vm776, %v2012, 0.0
      %v2045 = vsel %vm777, %v2013, 0.0
      %v2046 = vsel %vm778, %v2014, 0.0
      %v2047 = vsel %vm779, %v2015, 0.0
      %v2048 = vsel %vm780, %v2016, 0.0
      %v2049 = vsel %vm781, %v2017, 0.0
      %v2050 = vsel %vm782, %v2018, 0.0
      %v2051 = vsel %vm783, %v2019, 0.0
      %v2052 = vsel %vm784, %v2020, 0.0
      %v2053 = vsel %vm785, %v2021, 0.0
      %v2054 = vsel %vm786, %v2022, 0.0
      %v2055 = vsel %vm787, %v2023, 0.0
      %2088 = vrot.lane.b32.xlu0 %v2024, 24
      %v2089 = vpop.permute.xlu0 %2088
      %2090 = vrot.lane.b32.xlu0 %v2025, 24
      %v2091 = vpop.permute.xlu0 %2090
      %2092 = vrot.lane.b32.xlu0 %v2026, 24
      %v2093 = vpop.permute.xlu0 %2092
      %2094 = vrot.lane.b32.xlu0 %v2027, 24
      %v2095 = vpop.permute.xlu0 %2094
      %2096 = vrot.lane.b32.xlu0 %v2028, 24
      %v2097 = vpop.permute.xlu0 %2096
      %2098 = vrot.lane.b32.xlu0 %v2029, 24
      %v2099 = vpop.permute.xlu0 %2098
      %2100 = vrot.lane.b32.xlu0 %v2030, 24
      %v2101 = vpop.permute.xlu0 %2100
      %2102 = vrot.lane.b32.xlu0 %v2031, 24
      %v2103 = vpop.permute.xlu0 %2102
      %2104 = vrot.lane.b32.xlu0 %v2032, 24
      %v2105 = vpop.permute.xlu0 %2104
      %2106 = vrot.lane.b32.xlu0 %v2033, 24
      %v2107 = vpop.permute.xlu0 %2106
      %2108 = vrot.lane.b32.xlu0 %v2034, 24
      %v2109 = vpop.permute.xlu0 %2108
      %2110 = vrot.lane.b32.xlu0 %v2035, 24
      %v2111 = vpop.permute.xlu0 %2110
      %2112 = vrot.lane.b32.xlu0 %v2036, 24
      %v2113 = vpop.permute.xlu0 %2112
      %2114 = vrot.lane.b32.xlu0 %v2037, 24
      %v2115 = vpop.permute.xlu0 %2114
      %2116 = vrot.lane.b32.xlu0 %v2038, 24
      %v2117 = vpop.permute.xlu0 %2116
      %2118 = vrot.lane.b32.xlu0 %v2039, 24
      %v2119 = vpop.permute.xlu0 %2118
      %2120 = vrot.lane.b32.xlu0 %v2040, 24
      %v2121 = vpop.permute.xlu0 %2120
      %2122 = vrot.lane.b32.xlu0 %v2041, 24
      %v2123 = vpop.permute.xlu0 %2122
      %2124 = vrot.lane.b32.xlu0 %v2042, 24
      %v2125 = vpop.permute.xlu0 %2124
      %2126 = vrot.lane.b32.xlu0 %v2043, 24
      %v2127 = vpop.permute.xlu0 %2126
      %2128 = vrot.lane.b32.xlu0 %v2044, 24
      %v2129 = vpop.permute.xlu0 %2128
      %2130 = vrot.lane.b32.xlu0 %v2045, 24
      %v2131 = vpop.permute.xlu0 %2130
      %2132 = vrot.lane.b32.xlu0 %v2046, 24
      %v2133 = vpop.permute.xlu0 %2132
      %2134 = vrot.lane.b32.xlu0 %v2047, 24
      %v2135 = vpop.permute.xlu0 %2134
      %2136 = vrot.lane.b32.xlu0 %v2048, 24
      %v2137 = vpop.permute.xlu0 %2136
      %2138 = vrot.lane.b32.xlu0 %v2049, 24
      %v2139 = vpop.permute.xlu0 %2138
      %2140 = vrot.lane.b32.xlu0 %v2050, 24
      %v2141 = vpop.permute.xlu0 %2140
      %2142 = vrot.lane.b32.xlu0 %v2051, 24
      %v2143 = vpop.permute.xlu0 %2142
      %2144 = vrot.lane.b32.xlu0 %v2052, 24
      %v2145 = vpop.permute.xlu0 %2144
      %2146 = vrot.lane.b32.xlu0 %v2053, 24
      %v2147 = vpop.permute.xlu0 %2146
      %2148 = vrot.lane.b32.xlu0 %v2054, 24
      %v2149 = vpop.permute.xlu0 %2148
      %2150 = vrot.lane.b32.xlu0 %v2055, 24
      %v2151 = vpop.permute.xlu0 %2150
      %vm2184 = vcmask 228544
      %2185 = vst.msk [vmem:[#allocation2] sm:$0xff] %vm2184, %v2089
      %2186 = vst.msk [vmem:[#allocation2 + $0x8] sm:$0xff] %vm2184, %v2091
      %2187 = vst.msk [vmem:[#allocation2 + $0x10] sm:$0xff] %vm2184, %v2093
      %2188 = vst.msk [vmem:[#allocation2 + $0x18] sm:$0xff] %vm2184, %v2095
      %2189 = vst.msk [vmem:[#allocation2 + $0x20] sm:$0xff] %vm2184, %v2097
      %2190 = vst.msk [vmem:[#allocation2 + $0x28] sm:$0xff] %vm2184, %v2099
      %2191 = vst.msk [vmem:[#allocation2 + $0x30] sm:$0xff] %vm2184, %v2101
      %2192 = vst.msk [vmem:[#allocation2 + $0x38] sm:$0xff] %vm2184, %v2103
      %2193 = vst.msk [vmem:[#allocation2 + $0x40] sm:$0xff] %vm2184, %v2105
      %2194 = vst.msk [vmem:[#allocation2 + $0x48] sm:$0xff] %vm2184, %v2107
      %2195 = vst.msk [vmem:[#allocation2 + $0x50] sm:$0xff] %vm2184, %v2109
      %2196 = vst.msk [vmem:[#allocation2 + $0x58] sm:$0xff] %vm2184, %v2111
      %2197 = vst.msk [vmem:[#allocation2 + $0x60] sm:$0xff] %vm2184, %v2113
      %2198 = vst.msk [vmem:[#allocation2 + $0x68] sm:$0xff] %vm2184, %v2115
      %2199 = vst.msk [vmem:[#allocation2 + $0x70] sm:$0xff] %vm2184, %v2117
      %2200 = vst.msk [vmem:[#allocation2 + $0x78] sm:$0xff] %vm2184, %v2119
      %2201 = vst.msk [vmem:[#allocation2 + $0x80] sm:$0xff] %vm2184, %v2121
      %2202 = vst.msk [vmem:[#allocation2 + $0x88] sm:$0xff] %vm2184, %v2123
      %2203 = vst.msk [vmem:[#allocation2 + $0x90] sm:$0xff] %vm2184, %v2125
      %2204 = vst.msk [vmem:[#allocation2 + $0x98] sm:$0xff] %vm2184, %v2127
      %2205 = vst.msk [vmem:[#allocation2 + $0xa0] sm:$0xff] %vm2184, %v2129
      %2206 = vst.msk [vmem:[#allocation2 + $0xa8] sm:$0xff] %vm2184, %v2131
      %2207 = vst.msk [vmem:[#allocation2 + $0xb0] sm:$0xff] %vm2184, %v2133
      %2208 = vst.msk [vmem:[#allocation2 + $0xb8] sm:$0xff] %vm2184, %v2135
      %2209 = vst.msk [vmem:[#allocation2 + $0xc0] sm:$0xff] %vm2184, %v2137
      %2210 = vst.msk [vmem:[#allocation2 + $0xc8] sm:$0xff] %vm2184, %v2139
      %2211 = vst.msk [vmem:[#allocation2 + $0xd0] sm:$0xff] %vm2184, %v2141
      %2212 = vst.msk [vmem:[#allocation2 + $0xd8] sm:$0xff] %vm2184, %v2143
      %2213 = vst.msk [vmem:[#allocation2 + $0xe0] sm:$0xff] %vm2184, %v2145
      %2214 = vst.msk [vmem:[#allocation2 + $0xe8] sm:$0xff] %vm2184, %v2147
      %2215 = vst.msk [vmem:[#allocation2 + $0xf0] sm:$0xff] %vm2184, %v2149
      %2216 = vst.msk [vmem:[#allocation2 + $0xf8] sm:$0xff] %vm2184, %v2151
      %s2217 = sadd.s32 %s1990, 1
      %s2218 = scalar_lea.vmem %s193, %s2217
      %v2219 = vld [vmem:[%s2218] sm:$0xff]
      %v2220 = vld [vmem:[%s2218 + $0x8] sm:$0xff]
      %v2221 = vld [vmem:[%s2218 + $0x10] sm:$0xff]
      %v2222 = vld [vmem:[%s2218 + $0x18] sm:$0xff]
      %v2223 = vld [vmem:[%s2218 + $0x20] sm:$0xff]
      %v2224 = vld [vmem:[%s2218 + $0x28] sm:$0xff]
      %v2225 = vld [vmem:[%s2218 + $0x30] sm:$0xff]
      %v2226 = vld [vmem:[%s2218 + $0x38] sm:$0xff]
      %v2227 = vld [vmem:[%s2218 + $0x40] sm:$0xff]
      %v2228 = vld [vmem:[%s2218 + $0x48] sm:$0xff]
      %v2229 = vld [vmem:[%s2218 + $0x50] sm:$0xff]
      %v2230 = vld [vmem:[%s2218 + $0x58] sm:$0xff]
      %v2231 = vld [vmem:[%s2218 + $0x60] sm:$0xff]
      %v2232 = vld [vmem:[%s2218 + $0x68] sm:$0xff]
      %v2233 = vld [vmem:[%s2218 + $0x70] sm:$0xff]
      %v2234 = vld [vmem:[%s2218 + $0x78] sm:$0xff]
      %v2235 = vld [vmem:[%s2218 + $0x80] sm:$0xff]
      %v2236 = vld [vmem:[%s2218 + $0x88] sm:$0xff]
      %v2237 = vld [vmem:[%s2218 + $0x90] sm:$0xff]
      %v2238 = vld [vmem:[%s2218 + $0x98] sm:$0xff]
      %v2239 = vld [vmem:[%s2218 + $0xa0] sm:$0xff]
      %v2240 = vld [vmem:[%s2218 + $0xa8] sm:$0xff]
      %v2241 = vld [vmem:[%s2218 + $0xb0] sm:$0xff]
      %v2242 = vld [vmem:[%s2218 + $0xb8] sm:$0xff]
      %v2243 = vld [vmem:[%s2218 + $0xc0] sm:$0xff]
      %v2244 = vld [vmem:[%s2218 + $0xc8] sm:$0xff]
      %v2245 = vld [vmem:[%s2218 + $0xd0] sm:$0xff]
      %v2246 = vld [vmem:[%s2218 + $0xd8] sm:$0xff]
      %v2247 = vld [vmem:[%s2218 + $0xe0] sm:$0xff]
      %v2248 = vld [vmem:[%s2218 + $0xe8] sm:$0xff]
      %v2249 = vld [vmem:[%s2218 + $0xf0] sm:$0xff]
      %v2250 = vld [vmem:[%s2218 + $0xf8] sm:$0xff]
      %2283 = vrot.lane.b32.xlu0 %v2219, 28
      %v2284 = vpop.permute.xlu0 %2283
      %2285 = vrot.lane.b32.xlu0 %v2220, 28
      %v2286 = vpop.permute.xlu0 %2285
      %2287 = vrot.lane.b32.xlu0 %v2221, 28
      %v2288 = vpop.permute.xlu0 %2287
      %2289 = vrot.lane.b32.xlu0 %v2222, 28
      %v2290 = vpop.permute.xlu0 %2289
      %2291 = vrot.lane.b32.xlu0 %v2223, 28
      %v2292 = vpop.permute.xlu0 %2291
      %2293 = vrot.lane.b32.xlu0 %v2224, 28
      %v2294 = vpop.permute.xlu0 %2293
      %2295 = vrot.lane.b32.xlu0 %v2225, 28
      %v2296 = vpop.permute.xlu0 %2295
      %2297 = vrot.lane.b32.xlu0 %v2226, 28
      %v2298 = vpop.permute.xlu0 %2297
      %2299 = vrot.lane.b32.xlu0 %v2227, 28
      %v2300 = vpop.permute.xlu0 %2299
      %2301 = vrot.lane.b32.xlu0 %v2228, 28
      %v2302 = vpop.permute.xlu0 %2301
      %2303 = vrot.lane.b32.xlu0 %v2229, 28
      %v2304 = vpop.permute.xlu0 %2303
      %2305 = vrot.lane.b32.xlu0 %v2230, 28
      %v2306 = vpop.permute.xlu0 %2305
      %2307 = vrot.lane.b32.xlu0 %v2231, 28
      %v2308 = vpop.permute.xlu0 %2307
      %2309 = vrot.lane.b32.xlu0 %v2232, 28
      %v2310 = vpop.permute.xlu0 %2309
      %2311 = vrot.lane.b32.xlu0 %v2233, 28
      %v2312 = vpop.permute.xlu0 %2311
      %2313 = vrot.lane.b32.xlu0 %v2234, 28
      %v2314 = vpop.permute.xlu0 %2313
      %2315 = vrot.lane.b32.xlu0 %v2235, 28
      %v2316 = vpop.permute.xlu0 %2315
      %2317 = vrot.lane.b32.xlu0 %v2236, 28
      %v2318 = vpop.permute.xlu0 %2317
      %2319 = vrot.lane.b32.xlu0 %v2237, 28
      %v2320 = vpop.permute.xlu0 %2319
      %2321 = vrot.lane.b32.xlu0 %v2238, 28
      %v2322 = vpop.permute.xlu0 %2321
      %2323 = vrot.lane.b32.xlu0 %v2239, 28
      %v2324 = vpop.permute.xlu0 %2323
      %2325 = vrot.lane.b32.xlu0 %v2240, 28
      %v2326 = vpop.permute.xlu0 %2325
      %2327 = vrot.lane.b32.xlu0 %v2241, 28
      %v2328 = vpop.permute.xlu0 %2327
      %2329 = vrot.lane.b32.xlu0 %v2242, 28
      %v2330 = vpop.permute.xlu0 %2329
      %2331 = vrot.lane.b32.xlu0 %v2243, 28
      %v2332 = vpop.permute.xlu0 %2331
      %2333 = vrot.lane.b32.xlu0 %v2244, 28
      %v2334 = vpop.permute.xlu0 %2333
      %2335 = vrot.lane.b32.xlu0 %v2245, 28
      %v2336 = vpop.permute.xlu0 %2335
      %2337 = vrot.lane.b32.xlu0 %v2246, 28
      %v2338 = vpop.permute.xlu0 %2337
      %2339 = vrot.lane.b32.xlu0 %v2247, 28
      %v2340 = vpop.permute.xlu0 %2339
      %2341 = vrot.lane.b32.xlu0 %v2248, 28
      %v2342 = vpop.permute.xlu0 %2341
      %2343 = vrot.lane.b32.xlu0 %v2249, 28
      %v2344 = vpop.permute.xlu0 %2343
      %2345 = vrot.lane.b32.xlu0 %v2250, 28
      %v2346 = vpop.permute.xlu0 %2345
      %vm2379 = vcmask 261344
      %2380 = vst.msk [vmem:[#allocation2] sm:$0xff] %vm2379, %v2284
      %2381 = vst.msk [vmem:[#allocation2 + $0x8] sm:$0xff] %vm2379, %v2286
      %2382 = vst.msk [vmem:[#allocation2 + $0x10] sm:$0xff] %vm2379, %v2288
      %2383 = vst.msk [vmem:[#allocation2 + $0x18] sm:$0xff] %vm2379, %v2290
      %2384 = vst.msk [vmem:[#allocation2 + $0x20] sm:$0xff] %vm2379, %v2292
      %2385 = vst.msk [vmem:[#allocation2 + $0x28] sm:$0xff] %vm2379, %v2294
      %2386 = vst.msk [vmem:[#allocation2 + $0x30] sm:$0xff] %vm2379, %v2296
      %2387 = vst.msk [vmem:[#allocation2 + $0x38] sm:$0xff] %vm2379, %v2298
      %2388 = vst.msk [vmem:[#allocation2 + $0x40] sm:$0xff] %vm2379, %v2300
      %2389 = vst.msk [vmem:[#allocation2 + $0x48] sm:$0xff] %vm2379, %v2302
      %2390 = vst.msk [vmem:[#allocation2 + $0x50] sm:$0xff] %vm2379, %v2304
      %2391 = vst.msk [vmem:[#allocation2 + $0x58] sm:$0xff] %vm2379, %v2306
      %2392 = vst.msk [vmem:[#allocation2 + $0x60] sm:$0xff] %vm2379, %v2308
      %2393 = vst.msk [vmem:[#allocation2 + $0x68] sm:$0xff] %vm2379, %v2310
      %2394 = vst.msk [vmem:[#allocation2 + $0x70] sm:$0xff] %vm2379, %v2312
      %2395 = vst.msk [vmem:[#allocation2 + $0x78] sm:$0xff] %vm2379, %v2314
      %2396 = vst.msk [vmem:[#allocation2 + $0x80] sm:$0xff] %vm2379, %v2316
      %2397 = vst.msk [vmem:[#allocation2 + $0x88] sm:$0xff] %vm2379, %v2318
      %2398 = vst.msk [vmem:[#allocation2 + $0x90] sm:$0xff] %vm2379, %v2320
      %2399 = vst.msk [vmem:[#allocation2 + $0x98] sm:$0xff] %vm2379, %v2322
      %2400 = vst.msk [vmem:[#allocation2 + $0xa0] sm:$0xff] %vm2379, %v2324
      %2401 = vst.msk [vmem:[#allocation2 + $0xa8] sm:$0xff] %vm2379, %v2326
      %2402 = vst.msk [vmem:[#allocation2 + $0xb0] sm:$0xff] %vm2379, %v2328
      %2403 = vst.msk [vmem:[#allocation2 + $0xb8] sm:$0xff] %vm2379, %v2330
      %2404 = vst.msk [vmem:[#allocation2 + $0xc0] sm:$0xff] %vm2379, %v2332
      %2405 = vst.msk [vmem:[#allocation2 + $0xc8] sm:$0xff] %vm2379, %v2334
      %2406 = vst.msk [vmem:[#allocation2 + $0xd0] sm:$0xff] %vm2379, %v2336
      %2407 = vst.msk [vmem:[#allocation2 + $0xd8] sm:$0xff] %vm2379, %v2338
      %2408 = vst.msk [vmem:[#allocation2 + $0xe0] sm:$0xff] %vm2379, %v2340
      %2409 = vst.msk [vmem:[#allocation2 + $0xe8] sm:$0xff] %vm2379, %v2342
      %2410 = vst.msk [vmem:[#allocation2 + $0xf0] sm:$0xff] %vm2379, %v2344
      %2411 = vst.msk [vmem:[#allocation2 + $0xf8] sm:$0xff] %vm2379, %v2346
      %s2412 = sadd.s32 %s1990, 2
      %s2413 = scalar_lea.vmem %s193, %s2412
      %v2414 = vld [vmem:[%s2413] sm:$0xff]
      %v2415 = vld [vmem:[%s2413 + $0x8] sm:$0xff]
      %v2416 = vld [vmem:[%s2413 + $0x10] sm:$0xff]
      %v2417 = vld [vmem:[%s2413 + $0x18] sm:$0xff]
      %v2418 = vld [vmem:[%s2413 + $0x20] sm:$0xff]
      %v2419 = vld [vmem:[%s2413 + $0x28] sm:$0xff]
      %v2420 = vld [vmem:[%s2413 + $0x30] sm:$0xff]
      %v2421 = vld [vmem:[%s2413 + $0x38] sm:$0xff]
      %v2422 = vld [vmem:[%s2413 + $0x40] sm:$0xff]
      %v2423 = vld [vmem:[%s2413 + $0x48] sm:$0xff]
      %v2424 = vld [vmem:[%s2413 + $0x50] sm:$0xff]
      %v2425 = vld [vmem:[%s2413 + $0x58] sm:$0xff]
      %v2426 = vld [vmem:[%s2413 + $0x60] sm:$0xff]
      %v2427 = vld [vmem:[%s2413 + $0x68] sm:$0xff]
      %v2428 = vld [vmem:[%s2413 + $0x70] sm:$0xff]
      %v2429 = vld [vmem:[%s2413 + $0x78] sm:$0xff]
      %v2430 = vld [vmem:[%s2413 + $0x80] sm:$0xff]
      %v2431 = vld [vmem:[%s2413 + $0x88] sm:$0xff]
      %v2432 = vld [vmem:[%s2413 + $0x90] sm:$0xff]
      %v2433 = vld [vmem:[%s2413 + $0x98] sm:$0xff]
      %v2434 = vld [vmem:[%s2413 + $0xa0] sm:$0xff]
      %v2435 = vld [vmem:[%s2413 + $0xa8] sm:$0xff]
      %v2436 = vld [vmem:[%s2413 + $0xb0] sm:$0xff]
      %v2437 = vld [vmem:[%s2413 + $0xb8] sm:$0xff]
      %v2438 = vld [vmem:[%s2413 + $0xc0] sm:$0xff]
      %v2439 = vld [vmem:[%s2413 + $0xc8] sm:$0xff]
      %v2440 = vld [vmem:[%s2413 + $0xd0] sm:$0xff]
      %v2441 = vld [vmem:[%s2413 + $0xd8] sm:$0xff]
      %v2442 = vld [vmem:[%s2413 + $0xe0] sm:$0xff]
      %v2443 = vld [vmem:[%s2413 + $0xe8] sm:$0xff]
      %v2444 = vld [vmem:[%s2413 + $0xf0] sm:$0xff]
      %v2445 = vld [vmem:[%s2413 + $0xf8] sm:$0xff]
      %v2446 = vsel %vm1114, %v2414, 0.0
      %v2447 = vsel %vm1115, %v2415, 0.0
      %v2448 = vsel %vm1116, %v2416, 0.0
      %v2449 = vsel %vm1117, %v2417, 0.0
      %v2450 = vsel %vm1118, %v2418, 0.0
      %v2451 = vsel %vm1119, %v2419, 0.0
      %v2452 = vsel %vm1120, %v2420, 0.0
      %v2453 = vsel %vm1121, %v2421, 0.0
      %v2454 = vsel %vm1122, %v2422, 0.0
      %v2455 = vsel %vm1123, %v2423, 0.0
      %v2456 = vsel %vm1124, %v2424, 0.0
      %v2457 = vsel %vm1125, %v2425, 0.0
      %v2458 = vsel %vm1126, %v2426, 0.0
      %v2459 = vsel %vm1127, %v2427, 0.0
      %v2460 = vsel %vm1128, %v2428, 0.0
      %v2461 = vsel %vm1129, %v2429, 0.0
      %v2462 = vsel %vm1130, %v2430, 0.0
      %v2463 = vsel %vm1131, %v2431, 0.0
      %v2464 = vsel %vm1132, %v2432, 0.0
      %v2465 = vsel %vm1133, %v2433, 0.0
      %v2466 = vsel %vm1134, %v2434, 0.0
      %v2467 = vsel %vm1135, %v2435, 0.0
      %v2468 = vsel %vm1136, %v2436, 0.0
      %v2469 = vsel %vm1137, %v2437, 0.0
      %v2470 = vsel %vm1138, %v2438, 0.0
      %v2471 = vsel %vm1139, %v2439, 0.0
      %v2472 = vsel %vm1140, %v2440, 0.0
      %v2473 = vsel %vm1141, %v2441, 0.0
      %v2474 = vsel %vm1142, %v2442, 0.0
      %v2475 = vsel %vm1143, %v2443, 0.0
      %v2476 = vsel %vm1144, %v2444, 0.0
      %v2477 = vsel %vm1145, %v2445, 0.0
      %2510 = vrot.lane.b32.xlu0 %v2446, 32
      %v2511 = vpop.permute.xlu0 %2510
      %2512 = vrot.lane.b32.xlu0 %v2447, 32
      %v2513 = vpop.permute.xlu0 %2512
      %2514 = vrot.lane.b32.xlu0 %v2448, 32
      %v2515 = vpop.permute.xlu0 %2514
      %2516 = vrot.lane.b32.xlu0 %v2449, 32
      %v2517 = vpop.permute.xlu0 %2516
      %2518 = vrot.lane.b32.xlu0 %v2450, 32
      %v2519 = vpop.permute.xlu0 %2518
      %2520 = vrot.lane.b32.xlu0 %v2451, 32
      %v2521 = vpop.permute.xlu0 %2520
      %2522 = vrot.lane.b32.xlu0 %v2452, 32
      %v2523 = vpop.permute.xlu0 %2522
      %2524 = vrot.lane.b32.xlu0 %v2453, 32
      %v2525 = vpop.permute.xlu0 %2524
      %2526 = vrot.lane.b32.xlu0 %v2454, 32
      %v2527 = vpop.permute.xlu0 %2526
      %2528 = vrot.lane.b32.xlu0 %v2455, 32
      %v2529 = vpop.permute.xlu0 %2528
      %2530 = vrot.lane.b32.xlu0 %v2456, 32
      %v2531 = vpop.permute.xlu0 %2530
      %2532 = vrot.lane.b32.xlu0 %v2457, 32
      %v2533 = vpop.permute.xlu0 %2532
      %2534 = vrot.lane.b32.xlu0 %v2458, 32
      %v2535 = vpop.permute.xlu0 %2534
      %2536 = vrot.lane.b32.xlu0 %v2459, 32
      %v2537 = vpop.permute.xlu0 %2536
      %2538 = vrot.lane.b32.xlu0 %v2460, 32
      %v2539 = vpop.permute.xlu0 %2538
      %2540 = vrot.lane.b32.xlu0 %v2461, 32
      %v2541 = vpop.permute.xlu0 %2540
      %2542 = vrot.lane.b32.xlu0 %v2462, 32
      %v2543 = vpop.permute.xlu0 %2542
      %2544 = vrot.lane.b32.xlu0 %v2463, 32
      %v2545 = vpop.permute.xlu0 %2544
      %2546 = vrot.lane.b32.xlu0 %v2464, 32
      %v2547 = vpop.permute.xlu0 %2546
      %2548 = vrot.lane.b32.xlu0 %v2465, 32
      %v2549 = vpop.permute.xlu0 %2548
      %2550 = vrot.lane.b32.xlu0 %v2466, 32
      %v2551 = vpop.permute.xlu0 %2550
      %2552 = vrot.lane.b32.xlu0 %v2467, 32
      %v2553 = vpop.permute.xlu0 %2552
      %2554 = vrot.lane.b32.xlu0 %v2468, 32
      %v2555 = vpop.permute.xlu0 %2554
      %2556 = vrot.lane.b32.xlu0 %v2469, 32
      %v2557 = vpop.permute.xlu0 %2556
      %2558 = vrot.lane.b32.xlu0 %v2470, 32
      %v2559 = vpop.permute.xlu0 %2558
      %2560 = vrot.lane.b32.xlu0 %v2471, 32
      %v2561 = vpop.permute.xlu0 %2560
      %2562 = vrot.lane.b32.xlu0 %v2472, 32
      %v2563 = vpop.permute.xlu0 %2562
      %2564 = vrot.lane.b32.xlu0 %v2473, 32
      %v2565 = vpop.permute.xlu0 %2564
      %2566 = vrot.lane.b32.xlu0 %v2474, 32
      %v2567 = vpop.permute.xlu0 %2566
      %2568 = vrot.lane.b32.xlu0 %v2475, 32
      %v2569 = vpop.permute.xlu0 %2568
      %2570 = vrot.lane.b32.xlu0 %v2476, 32
      %v2571 = vpop.permute.xlu0 %2570
      %2572 = vrot.lane.b32.xlu0 %v2477, 32
      %v2573 = vpop.permute.xlu0 %2572
      %vm2606 = vcmask 294144
      %2607 = vst.msk [vmem:[#allocation2] sm:$0xff] %vm2606, %v2511
      %2608 = vst.msk [vmem:[#allocation2 + $0x8] sm:$0xff] %vm2606, %v2513
      %2609 = vst.msk [vmem:[#allocation2 + $0x10] sm:$0xff] %vm2606, %v2515
      %2610 = vst.msk [vmem:[#allocation2 + $0x18] sm:$0xff] %vm2606, %v2517
      %2611 = vst.msk [vmem:[#allocation2 + $0x20] sm:$0xff] %vm2606, %v2519
      %2612 = vst.msk [vmem:[#allocation2 + $0x28] sm:$0xff] %vm2606, %v2521
      %2613 = vst.msk [vmem:[#allocation2 + $0x30] sm:$0xff] %vm2606, %v2523
      %2614 = vst.msk [vmem:[#allocation2 + $0x38] sm:$0xff] %vm2606, %v2525
      %2615 = vst.msk [vmem:[#allocation2 + $0x40] sm:$0xff] %vm2606, %v2527
      %2616 = vst.msk [vmem:[#allocation2 + $0x48] sm:$0xff] %vm2606, %v2529
      %2617 = vst.msk [vmem:[#allocation2 + $0x50] sm:$0xff] %vm2606, %v2531
      %2618 = vst.msk [vmem:[#allocation2 + $0x58] sm:$0xff] %vm2606, %v2533
      %2619 = vst.msk [vmem:[#allocation2 + $0x60] sm:$0xff] %vm2606, %v2535
      %2620 = vst.msk [vmem:[#allocation2 + $0x68] sm:$0xff] %vm2606, %v2537
      %2621 = vst.msk [vmem:[#allocation2 + $0x70] sm:$0xff] %vm2606, %v2539
      %2622 = vst.msk [vmem:[#allocation2 + $0x78] sm:$0xff] %vm2606, %v2541
      %2623 = vst.msk [vmem:[#allocation2 + $0x80] sm:$0xff] %vm2606, %v2543
      %2624 = vst.msk [vmem:[#allocation2 + $0x88] sm:$0xff] %vm2606, %v2545
      %2625 = vst.msk [vmem:[#allocation2 + $0x90] sm:$0xff] %vm2606, %v2547
      %2626 = vst.msk [vmem:[#allocation2 + $0x98] sm:$0xff] %vm2606, %v2549
      %2627 = vst.msk [vmem:[#allocation2 + $0xa0] sm:$0xff] %vm2606, %v2551
      %2628 = vst.msk [vmem:[#allocation2 + $0xa8] sm:$0xff] %vm2606, %v2553
      %2629 = vst.msk [vmem:[#allocation2 + $0xb0] sm:$0xff] %vm2606, %v2555
      %2630 = vst.msk [vmem:[#allocation2 + $0xb8] sm:$0xff] %vm2606, %v2557
      %2631 = vst.msk [vmem:[#allocation2 + $0xc0] sm:$0xff] %vm2606, %v2559
      %2632 = vst.msk [vmem:[#allocation2 + $0xc8] sm:$0xff] %vm2606, %v2561
      %2633 = vst.msk [vmem:[#allocation2 + $0xd0] sm:$0xff] %vm2606, %v2563
      %2634 = vst.msk [vmem:[#allocation2 + $0xd8] sm:$0xff] %vm2606, %v2565
      %2635 = vst.msk [vmem:[#allocation2 + $0xe0] sm:$0xff] %vm2606, %v2567
      %2636 = vst.msk [vmem:[#allocation2 + $0xe8] sm:$0xff] %vm2606, %v2569
      %2637 = vst.msk [vmem:[#allocation2 + $0xf0] sm:$0xff] %vm2606, %v2571
      %2638 = vst.msk [vmem:[#allocation2 + $0xf8] sm:$0xff] %vm2606, %v2573
      %v2639 = vld [vmem:[%s1] sm:$0xff]
      %v2640 = vld [vmem:[#allocation2] sm:$0xff]
      %v2641 = vld [vmem:[#allocation2 + $0x8] sm:$0xff]
      %v2642 = vld [vmem:[#allocation2 + $0x10] sm:$0xff]
      %v2643 = vld [vmem:[#allocation2 + $0x18] sm:$0xff]
      %v2644 = vld [vmem:[#allocation2 + $0x20] sm:$0xff]
      %v2645 = vld [vmem:[#allocation2 + $0x28] sm:$0xff]
      %v2646 = vld [vmem:[#allocation2 + $0x30] sm:$0xff]
      %v2647 = vld [vmem:[#allocation2 + $0x38] sm:$0xff]
      %v2648 = vld [vmem:[#allocation2 + $0x40] sm:$0xff]
      %v2649 = vld [vmem:[#allocation2 + $0x48] sm:$0xff]
      %v2650 = vld [vmem:[#allocation2 + $0x50] sm:$0xff]
      %v2651 = vld [vmem:[#allocation2 + $0x58] sm:$0xff]
      %v2652 = vld [vmem:[#allocation2 + $0x60] sm:$0xff]
      %v2653 = vld [vmem:[#allocation2 + $0x68] sm:$0xff]
      %v2654 = vld [vmem:[#allocation2 + $0x70] sm:$0xff]
      %v2655 = vld [vmem:[#allocation2 + $0x78] sm:$0xff]
      %v2656 = vld [vmem:[#allocation2 + $0x80] sm:$0xff]
      %v2657 = vld [vmem:[#allocation2 + $0x88] sm:$0xff]
      %v2658 = vld [vmem:[#allocation2 + $0x90] sm:$0xff]
      %v2659 = vld [vmem:[#allocation2 + $0x98] sm:$0xff]
      %v2660 = vld [vmem:[#allocation2 + $0xa0] sm:$0xff]
      %v2661 = vld [vmem:[#allocation2 + $0xa8] sm:$0xff]
      %v2662 = vld [vmem:[#allocation2 + $0xb0] sm:$0xff]
      %v2663 = vld [vmem:[#allocation2 + $0xb8] sm:$0xff]
      %v2664 = vld [vmem:[#allocation2 + $0xc0] sm:$0xff]
      %v2665 = vld [vmem:[#allocation2 + $0xc8] sm:$0xff]
      %v2666 = vld [vmem:[#allocation2 + $0xd0] sm:$0xff]
      %v2667 = vld [vmem:[#allocation2 + $0xd8] sm:$0xff]
      %v2668 = vld [vmem:[#allocation2 + $0xe0] sm:$0xff]
      %v2669 = vld [vmem:[#allocation2 + $0xe8] sm:$0xff]
      %v2670 = vld [vmem:[#allocation2 + $0xf0] sm:$0xff]
      %v2671 = vld [vmem:[#allocation2 + $0xf8] sm:$0xff]
      %vm2672 = vcmask 293888
      %v2674 = vsel %vm2672, %v2639, 0
      %v2677 = vsel %vm2672, %v2640, 0
      %v2680 = vsel %vm2672, %v2641, 0
      %v2683 = vsel %vm2672, %v2642, 0
      %v2686 = vsel %vm2672, %v2643, 0
      %v2689 = vsel %vm2672, %v2644, 0
      %v2692 = vsel %vm2672, %v2645, 0
      %v2695 = vsel %vm2672, %v2646, 0
      %v2698 = vsel %vm2672, %v2647, 0
      %v2701 = vsel %vm2672, %v2648, 0
      %v2704 = vsel %vm2672, %v2649, 0
      %v2707 = vsel %vm2672, %v2650, 0
      %v2710 = vsel %vm2672, %v2651, 0
      %v2713 = vsel %vm2672, %v2652, 0
      %v2716 = vsel %vm2672, %v2653, 0
      %v2719 = vsel %vm2672, %v2654, 0
      %v2722 = vsel %vm2672, %v2655, 0
      %v2725 = vsel %vm2672, %v2656, 0
      %v2728 = vsel %vm2672, %v2657, 0
      %v2731 = vsel %vm2672, %v2658, 0
      %v2734 = vsel %vm2672, %v2659, 0
      %v2737 = vsel %vm2672, %v2660, 0
      %v2740 = vsel %vm2672, %v2661, 0
      %v2743 = vsel %vm2672, %v2662, 0
      %v2746 = vsel %vm2672, %v2663, 0
      %v2749 = vsel %vm2672, %v2664, 0
      %v2752 = vsel %vm2672, %v2665, 0
      %v2755 = vsel %vm2672, %v2666, 0
      %v2758 = vsel %vm2672, %v2667, 0
      %v2761 = vsel %vm2672, %v2668, 0
      %v2764 = vsel %vm2672, %v2669, 0
      %v2767 = vsel %vm2672, %v2670, 0
      %v2770 = vsel %vm2672, %v2671, 0
      %2772 = vmatpush.xpose.msra.mxu0 %v2722
      %2773 = vmatpush.xpose.msra.mxu0 %v2719
      %2774 = vmatpush.xpose.msra.mxu0 %v2716
      %2775 = vmatpush.xpose.msra.mxu0 %v2713
      %2776 = vmatpush.xpose.msra.mxu0 %v2710
      %2777 = vmatpush.xpose.msra.mxu0 %v2707
      %2778 = vmatpush.xpose.msra.mxu0 %v2704
      %2779 = vmatpush.xpose.msra.mxu0 %v2701
      %2780 = vmatpush.xpose.msra.mxu0 %v2698
      %2781 = vmatpush.xpose.msra.mxu0 %v2695
      %2782 = vmatpush.xpose.msra.mxu0 %v2692
      %2783 = vmatpush.xpose.msra.mxu0 %v2689
      %2784 = vmatpush.xpose.msra.mxu0 %v2686
      %2785 = vmatpush.xpose.msra.mxu0 %v2683
      %2786 = vmatpush.xpose.msra.mxu0 %v2680
      %2787 = vmatpush.xpose.msra.mxu0 %v2677
      %2788 = vmatmul.f32.gmra.mxu0 %v2674
      %v2789 = vpop.f32.mrf.mxu0
      %v2790 = vadd.f32 0.0, %v2789
      %2791 = vdwg.mxu0
      %2792 = vmatpush.xpose.msra.mxu0 %v2770
      %2793 = vmatpush.xpose.msra.mxu0 %v2767
      %2794 = vmatpush.xpose.msra.mxu0 %v2764
      %2795 = vmatpush.xpose.msra.mxu0 %v2761
      %2796 = vmatpush.xpose.msra.mxu0 %v2758
      %2797 = vmatpush.xpose.msra.mxu0 %v2755
      %2798 = vmatpush.xpose.msra.mxu0 %v2752
      %2799 = vmatpush.xpose.msra.mxu0 %v2749
      %2800 = vmatpush.xpose.msra.mxu0 %v2746
      %2801 = vmatpush.xpose.msra.mxu0 %v2743
      %2802 = vmatpush.xpose.msra.mxu0 %v2740
      %2803 = vmatpush.xpose.msra.mxu0 %v2737
      %2804 = vmatpush.xpose.msra.mxu0 %v2734
      %2805 = vmatpush.xpose.msra.mxu0 %v2731
      %2806 = vmatpush.xpose.msra.mxu0 %v2728
      %2807 = vmatpush.xpose.msra.mxu0 %v2725
      %2808 = vmatmul.f32.gmra.mxu0 %v2674
      %v2809 = vpop.f32.mrf.mxu0
      %v2810 = vadd.f32 0.0, %v2809
      %2811 = vdwg.mxu0
      %v2812 = vadd.f32 %v2790, %v2810
      %2813 = vadd.xlane.f32.xlu0 %v2812
      %v2814 = vpop.xlane.xlu0 %2813
      %v2815 = vmul.f32 %v2814, 0.00390625
      %v2816 = vsub.f32 %v2790, %v2815
      %v2817 = vsub.f32 %v2810, %v2815
      %v2818 = vmul.f32 %v2816, %v2816
      %v2819 = vmul.f32 %v2817, %v2817
      %v2820 = vadd.f32 %v2818, %v2819
      %2821 = vadd.xlane.f32.xlu0 %v2820
      %v2822 = vpop.xlane.xlu0 %2821
      %vm2823 = vcmask 7168
      %2824 = vst.msk [vmem:[%s200] sm:$0xff] %vm2823, %v2814
      %2825 = vst.msk [vmem:[%s207] sm:$0xff] %vm2823, %v2822
      %p2826 = scmp.lt.s32.totalorder %s19, 1
      %s2827 = scalar_select %p2826, %s19, 1
      %p2828 = scmp.lt.s32.totalorder %s20, 0
      %s2829 = scalar_select %p2828, %s20, 0
      %s2830 = sadd.s32 %s2829, %s2827
      %s2831 = smul.addr %s2830, 8
      %s2832 = scalar_lea.vmem %s2, %s2831
      %p2833 = scmp.lt.s32.totalorder %s19, 1
      %s2834 = scalar_select %p2833, %s19, 1
      %p2835 = scmp.lt.s32.totalorder %s20, 0
      %s2836 = scalar_select %p2835, %s20, 0
      %s2837 = sadd.s32 %s2836, %s2834
      %s2838 = smul.addr %s2837, 8
      %s2839 = scalar_lea.vmem %s3, %s2838
      // Predicated region
      $region29: #{single_conv_relu_batch_fwd.2} parent=27 // pred_check
        %p2840 = pneg %p94
      $region30: #{single_conv_relu_batch_fwd.2} parent=27 // pred_check_branch
        %2842 = sbr.rel (%p2840) target = $region32
      $region31: #{single_conv_relu_batch_fwd.2} parent=27 // pred_region
        _
      $region32: #{single_conv_relu_batch_fwd.2} parent=27 // pred_fallthru
        _
      // Predicated region
      $region33: #{single_conv_relu_batch_fwd.2} parent=27 // pred_check
        %p2843 = pneg %p122
      $region34: #{single_conv_relu_batch_fwd.2} parent=27 // pred_check_branch
        %2845 = sbr.rel (%p2843) target = $region36
      $region35: #{single_conv_relu_batch_fwd.2} parent=27 // pred_region
        _
      $region36: #{single_conv_relu_batch_fwd.2} parent=27 // pred_fallthru
        _
    $region28: #{single_conv_relu_batch_fwd.2} parent=5 // pred_fallthru
      _
    %p2846 = scmp.le.s32.totalorder 2, %s10
    // Predicated region
    $region37: #{single_conv_relu_batch_fwd.2} parent=5 // pred_check
      %p2847 = pneg %p2846
    $region38: #{single_conv_relu_batch_fwd.2} parent=5 // pred_check_branch
      %2849 = sbr.rel (%p2847) target = $region40
    $region39: #{single_conv_relu_batch_fwd.2} parent=5 // pred_region
      %s2850 = ssub.s32 %s10, 2
      // Predicated region
      $region41: #{single_conv_relu_batch_fwd.2} parent=39 // pred_check
        %p2851 = pneg %p100
      $region42: #{single_conv_relu_batch_fwd.2} parent=39 // pred_check_branch
        %2853 = sbr.rel (%p2851) target = $region44
      $region43: #{single_conv_relu_batch_fwd.2} parent=39 // pred_region
        %p2854 = scmp.lt.s32.totalorder %s21, 1
        %s2855 = scalar_select %p2854, %s21, 1
        %p2856 = scmp.lt.s32.totalorder %s22, 0
        %s2857 = scalar_select %p2856, %s22, 0
        %s2858 = sadd.s32 %s2857, %s2855
        %s2859 = smul.addr %s2858, 8
        %s2860 = scalar_lea.vmem %s2, %s2859
      $region44: #{single_conv_relu_batch_fwd.2} parent=39 // pred_fallthru
        _
      // Predicated region
      $region45: #{single_conv_relu_batch_fwd.2} parent=39 // pred_check
        %p2861 = pneg %p128
      $region46: #{single_conv_relu_batch_fwd.2} parent=39 // pred_check_branch
        %2863 = sbr.rel (%p2861) target = $region48
      $region47: #{single_conv_relu_batch_fwd.2} parent=39 // pred_region
        %p2864 = scmp.lt.s32.totalorder %s21, 1
        %s2865 = scalar_select %p2864, %s21, 1
        %p2866 = scmp.lt.s32.totalorder %s22, 0
        %s2867 = scalar_select %p2866, %s22, 0
        %s2868 = sadd.s32 %s2867, %s2865
        %s2869 = smul.addr %s2868, 8
        %s2870 = scalar_lea.vmem %s3, %s2869
      $region48: #{single_conv_relu_batch_fwd.2} parent=39 // pred_fallthru
        _
    $region40: #{single_conv_relu_batch_fwd.2} parent=5 // pred_fallthru
      _
  $region6: #{single_conv_relu_batch_fwd.2} parent=0 // loop_footer
    %s14 = sadd.s32 1, %s10
  $region7: #{single_conv_relu_batch_fwd.2} parent=0 // loop_footer_branch
    %9 = sbr.rel target = $region3
  $region8: #{single_conv_relu_batch_fwd.2} parent=0 // loop_exit
    _

</llo_original>
